<compile_context>
chip_gen: v7x
topology: tpu7x:2x2x1
jax: 0.10.0
libtpu: 0.0.40
codegen_flags: <defaults>
</compile_context>

<pallas_src>
import math

import jax
import jax.numpy as jnp
from jax.experimental import pallas as pl
from jax.experimental.pallas import tpu as pltpu


_M = 320                 # latent channels (TCM M=320)
_MP = 384                # lane-padded latent channels (3 x 128)
_C = 3                   # image channels
_K = 16                  # total downsampling factor of the analysis transform
_D_IN = _C * _K * _K     # 768
_INV_LN2 = 1.0 / math.log(2.0)


# ----------------------------------------------------------------------------
# Fused kernel: analysis matmul -> quantize -> factorized entropy -> synthesis
# ----------------------------------------------------------------------------
def _fused_codec_kernel(p_ref, wa_ref, ba_ref, ws_ref, bs_ref,
                        invs_ref, c_ref, log1mc_ref, wnll_ref,
                        rec_ref, lik_ref, nll_ref):
    # analysis transform g_a: (tm, 768) bf16 @ (768, 384) bf16 -> f32 latent y
    y = jnp.dot(p_ref[...], wa_ref[...],
                preferred_element_type=jnp.float32) + ba_ref[...]

    # eval-mode quantization (round)
    # TODO(synk): torch.round is round-half-to-even; floor(y+0.5) differs at exact .5
    y_hat = jnp.floor(y + 0.5)

    # factorized logistic entropy model, single-exp stable form:
    #   p = sigmoid((y_hat+0.5)/s) - sigmoid((y_hat-0.5)/s) = e*(1-c)/((1+e)(1+e*c))
    #   with e = exp(a), a = clip(-(y_hat-0.5)/s, +-30), c = exp(-1/s) (precomputed)
    inv_s = invs_ref[...]                       # (1, MP) broadcast over rows
    c = c_ref[...]                              # (1, MP)
    a = jnp.clip(-(y_hat - 0.5) * inv_s, -30.0, 30.0)
    e = jnp.exp(a)
    den = (1.0 + e) * (1.0 + e * c)
    lik = e * (1.0 - c) * pl.reciprocal(den, approx=True)
    lik_ref[...] = jnp.maximum(lik, 1e-9).astype(lik_ref.dtype)   # bf16 store

    # bpp numerator, analytic (no approx-recip error, no clamp on this path):
    #   -ln p = ln(den) - a - ln(1-c);  wnll = 1/ln2 for real lanes, 0 for padded.
    nll_bits = (jnp.log(den) - a - log1mc_ref[...]) * wnll_ref[...]
    tile_sum = jnp.sum(nll_bits)
    nll_ref[...] = jnp.broadcast_to(tile_sum.reshape(1, 1, 1), nll_ref.shape)

    # synthesis transform g_s: (tm, 384) bf16 @ (384, 768) bf16 -> f32 -> bf16
    rec = jnp.dot(y_hat.astype(jnp.bfloat16), ws_ref[...],
                  preferred_element_type=jnp.float32) + bs_ref[...]
    rec_ref[...] = rec.astype(rec_ref.dtype)


def fused_codec(patches_bf16, wa, b_a, ws, b_s, inv_scale, c, log1mc, w_nll):
    """patches: [R, 768] bf16 -> (rec [R,768] bf16, lik [R,384] bf16, nll_sum f32)."""
    R, d_in = patches_bf16.shape
    assert d_in == _D_IN

    # largest row tile that divides R, capped so the grid has >= 2 tiles
    # ("parallel" grid axis then shards across both TensorCores on v7x).
    cap = max(8, R // 2)
    tm = 8
    for cand in (1024, 512, 256, 128, 64, 32, 16, 8):
        if cand <= cap and R % cand == 0:
            tm = cand
            break
    n_tiles = R // tm

    # explicit scoped-VMEM budget from the per-tile footprint (+50% headroom),
    # clamped to stay above v5e/v6e/v7x defaults and below v7x physical VMEM.
    resident = 2 * (2 * _D_IN * _MP * 2) + 6 * _MP * 4 + _D_IN * 4      # weights + consts
    io = 2 * tm * (2 * _D_IN * 2 + _MP * 2) + 2 * 8 * 128 * 4           # double-buffered tiles
    temps = tm * (6 * _MP * 4 + _D_IN * 4)                              # f32 intermediates
    vmem_limit = int(min(48 << 20, max(32 << 20, int(1.5 * (resident + io + temps)))))

    grid_spec = pltpu.PrefetchScalarGridSpec(
        num_scalar_prefetch=0,
        grid=(n_tiles,),
        in_specs=[
            pl.BlockSpec((tm, _D_IN), lambda i: (i, 0)),     # patch tile
            pl.BlockSpec((_D_IN, _MP), lambda i: (0, 0)),    # W_a   (VMEM resident)
            pl.BlockSpec((1, _MP), lambda i: (0, 0)),        # b_a
            pl.BlockSpec((_MP, _D_IN), lambda i: (0, 0)),    # W_s
            pl.BlockSpec((1, _D_IN), lambda i: (0, 0)),      # b_s
            pl.BlockSpec((1, _MP), lambda i: (0, 0)),        # 1/scale
            pl.BlockSpec((1, _MP), lambda i: (0, 0)),        # exp(-1/scale)
            pl.BlockSpec((1, _MP), lambda i: (0, 0)),        # log(1 - exp(-1/scale))
            pl.BlockSpec((1, _MP), lambda i: (0, 0)),        # nll weight (1/ln2 | 0)
        ],
        out_specs=[
            pl.BlockSpec((tm, _D_IN), lambda i: (i, 0)),     # reconstructed patches (bf16)
            pl.BlockSpec((tm, _MP), lambda i: (i, 0)),       # likelihoods (bf16)
            pl.BlockSpec((1, 8, 128), lambda i: (i, 0, 0)),  # per-tile nll partial sums
        ],
    )

    rec, lik, nll_part = pl.pallas_call(
        _fused_codec_kernel,
        out_shape=(
            jax.ShapeDtypeStruct((R, _D_IN), jnp.bfloat16),
            jax.ShapeDtypeStruct((R, _MP), jnp.bfloat16),
            jax.ShapeDtypeStruct((n_tiles, 8, 128), jnp.float32),
        ),
        grid_spec=grid_spec,
        compiler_params=pltpu.CompilerParams(
            dimension_semantics=("parallel",),
            vmem_limit_bytes=vmem_limit,
        ),
    )(patches_bf16, wa, b_a, ws, b_s, inv_scale, c, log1mc, w_nll)

    nll_sum = jnp.sum(nll_part[:, 0, 0])
    return rec, lik, nll_sum


# ----------------------------------------------------------------------------
# Parameters (deterministic synthetic init; no checkpoint load)
# ----------------------------------------------------------------------------
def init_params(key):
    k1, k2, k3 = jax.random.split(key, 3)
    return {
        "W_a": 0.02 * jax.random.normal(k1, (_D_IN, _M), jnp.float32),
        "b_a": jnp.zeros((_M,), jnp.float32),
        "W_s": 0.02 * jax.random.normal(k2, (_M, _D_IN), jnp.float32),
        "b_s": jnp.zeros((_D_IN,), jnp.float32),
        "scale": 0.5 + 0.1 * jnp.abs(jax.random.normal(k3, (1, _M), jnp.float32)),
    }


# ----------------------------------------------------------------------------
# CodecModel.forward equivalent
# ----------------------------------------------------------------------------
def codec_forward(image, params):
    """image: [B, 3, H, W] float32 (NCHW, like the PyTorch module)."""
    B, C, H, W = image.shape
    assert C == _C

    # pad(x, p=128): center-pad H, W up to multiples of 128 with zeros
    p = 128
    new_h = (H + p - 1) // p * p
    new_w = (W + p - 1) // p * p
    pad_l = (new_w - W) // 2
    pad_r = new_w - W - pad_l
    pad_t = (new_h - H) // 2
    pad_b = new_h - H - pad_t
    x_padded = jnp.pad(image, ((0, 0), (0, 0), (pad_t, pad_b), (pad_l, pad_r)))

    # patchify: stride-16 / kernel-16 conv == per-patch matmul.
    # Cast to bf16 BEFORE the transpose so the layout copy is half-width.
    # TODO(synk): for large images fold patchify/unpatchify into the kernel via a
    #             (B, hP) grid with NCHW 16-row-strip BlockSpecs instead of XLA transposes.
    hP, wP = new_h // _K, new_w // _K
    patches = (
        x_padded.astype(jnp.bfloat16)
        .reshape(B, C, hP, _K, wP, _K)
        .transpose(0, 2, 4, 1, 3, 5)
        .reshape(B * hP * wP, _D_IN)
    )

    # lane-pad latent dim 320 -> 384 (3 x 128); padded lanes get scale=1 and are
    # excluded from bpp via w_nll, and sliced off the likelihood output below.
    pad_m = _MP - _M
    wa = jnp.pad(params["W_a"], ((0, 0), (0, pad_m))).astype(jnp.bfloat16)
    ws = jnp.pad(params["W_s"], ((0, pad_m), (0, 0))).astype(jnp.bfloat16)
    b_a = jnp.pad(params["b_a"], (0, pad_m)).reshape(1, _MP)
    b_s = params["b_s"].reshape(1, _D_IN)
    scale = jnp.pad(params["scale"], ((0, 0), (0, pad_m)), constant_values=1.0)
    inv_scale = 1.0 / scale
    c = jnp.exp(-inv_scale)
    log1mc = jnp.log1p(-c)
    w_nll = jnp.pad(jnp.full((1, _M), _INV_LN2, jnp.float32), ((0, 0), (0, pad_m)))

    rec_patches, lik, nll_sum = fused_codec(
        patches, wa, b_a, ws, b_s, inv_scale, c, log1mc, w_nll)

    # unpatchify (bf16) -> crop(x_hat, padding) -> f32 at the module boundary
    x_hat = (
        rec_patches.reshape(B, hP, wP, _C, _K, _K)
        .transpose(0, 3, 1, 4, 2, 5)
        .reshape(B, _C, new_h, new_w)
    )
    compressed = x_hat[:, :, pad_t:pad_t + H, pad_l:pad_l + W].astype(jnp.float32)

    # bpp = sum(-log2(likelihoods['y'])) / (B * H * W)   (original image pixels)
    num_pixels = B * H * W
    bpp = nll_sum / num_pixels

    # likelihoods['y'] in NCHW like the torch module (transpose done on bf16 data)
    likelihoods_y = (
        lik[:, :_M].reshape(B, hP, wP, _M).transpose(0, 3, 1, 2).astype(jnp.float32)
    )

    return {"x_hat": compressed, "likelihoods": {"y": likelihoods_y}, "bpp": bpp}


# ----------------------------------------------------------------------------
if __name__ == "__main__":
    root = jax.random.PRNGKey(0)
    k_params, k_image = jax.random.split(root)

    params = init_params(k_params)

    # small NCHW image, gets padded to 128x128 internally
    image = jax.random.uniform(k_image, (2, 3, 20, 24), dtype=jnp.float32)

    out = jax.jit(codec_forward)(image, params)
    jax.block_until_ready(out["x_hat"])
    jax.block_until_ready(out["likelihoods"]["y"])
    jax.block_until_ready(out["bpp"])

    assert out["x_hat"].shape == image.shape
    assert out["likelihoods"]["y"].shape == (2, _M, 8, 8)
    assert out["bpp"].shape == ()
    assert bool(jnp.isfinite(out["bpp"]))
    assert bool(jnp.all(jnp.isfinite(out["x_hat"])))

    print("KERNEL_OK")
</pallas_src>

<mosaic_0001>
module attributes {stable_mosaic.version = 11 : i64} {
  func.func @_fused_codec_kernel(%arg0: i32, %arg1: memref<64x768xbf16, #tpu.memory_space<vmem>>, %arg2: memref<768x384xbf16, #tpu.memory_space<vmem>>, %arg3: memref<1x384xf32, #tpu.memory_space<vmem>>, %arg4: memref<384x768xbf16, #tpu.memory_space<vmem>>, %arg5: memref<1x768xf32, #tpu.memory_space<vmem>>, %arg6: memref<1x384xf32, #tpu.memory_space<vmem>>, %arg7: memref<1x384xf32, #tpu.memory_space<vmem>>, %arg8: memref<1x384xf32, #tpu.memory_space<vmem>>, %arg9: memref<1x384xf32, #tpu.memory_space<vmem>>, %arg10: memref<64x768xbf16, #tpu.memory_space<vmem>>, %arg11: memref<64x384xbf16, #tpu.memory_space<vmem>>, %arg12: memref<1x8x128xf32, #tpu.memory_space<vmem>>) attributes {dimension_semantics = [#tpu.dimension_semantics<parallel>], iteration_bounds = array<i64: 2>, scalar_prefetch = 0 : i64, scratch_operands = 0 : i64, tpu.core_type = #tpu.core_type<tc>, window_params = [{transform_indices = @transform_0, window_bounds = array<i64: 64, 768>}, {pipeline_mode = #tpu.pipeline_mode<synchronous>, transform_indices = @transform_1, window_bounds = array<i64: 768, 384>}, {pipeline_mode = #tpu.pipeline_mode<synchronous>, transform_indices = @transform_2, window_bounds = array<i64: 1, 384>}, {pipeline_mode = #tpu.pipeline_mode<synchronous>, transform_indices = @transform_3, window_bounds = array<i64: 384, 768>}, {pipeline_mode = #tpu.pipeline_mode<synchronous>, transform_indices = @transform_4, window_bounds = array<i64: 1, 768>}, {pipeline_mode = #tpu.pipeline_mode<synchronous>, transform_indices = @transform_5, window_bounds = array<i64: 1, 384>}, {pipeline_mode = #tpu.pipeline_mode<synchronous>, transform_indices = @transform_6, window_bounds = array<i64: 1, 384>}, {pipeline_mode = #tpu.pipeline_mode<synchronous>, transform_indices = @transform_7, window_bounds = array<i64: 1, 384>}, {pipeline_mode = #tpu.pipeline_mode<synchronous>, transform_indices = @transform_8, window_bounds = array<i64: 1, 384>}, {transform_indices = @transform_9, window_bounds = array<i64: 64, 768>}, {transform_indices = @transform_10, window_bounds = array<i64: 64, 384>}, {transform_indices = @transform_11, window_bounds = array<i64: 1, 8, 128>}]} {
    %c0 = arith.constant 0 : index
    %c0_0 = arith.constant 0 : index
    %0 = vector.load %arg1[%c0, %c0_0] : memref<64x768xbf16, #tpu.memory_space<vmem>>, vector<64x768xbf16>
    %c0_1 = arith.constant 0 : index
    %c0_2 = arith.constant 0 : index
    %1 = vector.load %arg2[%c0_1, %c0_2] : memref<768x384xbf16, #tpu.memory_space<vmem>>, vector<768x384xbf16>
    %cst = arith.constant dense<0.000000e+00> : vector<64x384xf32>
    %2 = tpu.matmul %0, %1, %cst {dimension_numbers = #tpu.dot_dimension_numbers<[1], [0], [0], [1], [0, 0, 1, 1], [], []>} : vector<64x768xbf16>, vector<768x384xbf16>, vector<64x384xf32> -> vector<64x384xf32>
    %c0_3 = arith.constant 0 : index
    %c0_4 = arith.constant 0 : index
    %3 = vector.load %arg3[%c0_3, %c0_4] : memref<1x384xf32, #tpu.memory_space<vmem>>, vector<1x384xf32>
    %4 = vector.broadcast %3 : vector<1x384xf32> to vector<64x384xf32>
    %5 = arith.addf %2, %4 : vector<64x384xf32>
    %cst_5 = arith.constant 5.000000e-01 : f32
    %6 = vector.broadcast %cst_5 : f32 to vector<64x384xf32>
    %7 = arith.addf %5, %6 : vector<64x384xf32>
    %8 = math.floor %7 : vector<64x384xf32>
    %c0_6 = arith.constant 0 : index
    %c0_7 = arith.constant 0 : index
    %9 = vector.load %arg6[%c0_6, %c0_7] : memref<1x384xf32, #tpu.memory_space<vmem>>, vector<1x384xf32>
    %c0_8 = arith.constant 0 : index
    %c0_9 = arith.constant 0 : index
    %10 = vector.load %arg7[%c0_8, %c0_9] : memref<1x384xf32, #tpu.memory_space<vmem>>, vector<1x384xf32>
    %cst_10 = arith.constant 5.000000e-01 : f32
    %11 = vector.broadcast %cst_10 : f32 to vector<64x384xf32>
    %12 = arith.subf %8, %11 : vector<64x384xf32>
    %cst_11 = arith.constant 0.000000e+00 : f32
    %13 = vector.broadcast %cst_11 : f32 to vector<64x384xf32>
    %14 = arith.subf %13, %12 : vector<64x384xf32>
    %15 = vector.broadcast %9 : vector<1x384xf32> to vector<64x384xf32>
    %16 = arith.mulf %14, %15 : vector<64x384xf32>
    %cst_12 = arith.constant -3.000000e+01 : f32
    %cst_13 = arith.constant 3.000000e+01 : f32
    %17 = vector.broadcast %cst_12 : f32 to vector<64x384xf32>
    %18 = arith.maximumf %17, %16 : vector<64x384xf32>
    %19 = vector.broadcast %cst_13 : f32 to vector<64x384xf32>
    %20 = arith.minimumf %19, %18 : vector<64x384xf32>
    %21 = math.exp %20 : vector<64x384xf32>
    %cst_14 = arith.constant 1.000000e+00 : f32
    %22 = vector.broadcast %cst_14 : f32 to vector<64x384xf32>
    %23 = arith.addf %22, %21 : vector<64x384xf32>
    %24 = vector.broadcast %10 : vector<1x384xf32> to vector<64x384xf32>
    %25 = arith.mulf %21, %24 : vector<64x384xf32>
    %cst_15 = arith.constant 1.000000e+00 : f32
    %26 = vector.broadcast %cst_15 : f32 to vector<64x384xf32>
    %27 = arith.addf %26, %25 : vector<64x384xf32>
    %28 = arith.mulf %23, %27 : vector<64x384xf32>
    %cst_16 = arith.constant 1.000000e+00 : f32
    %29 = vector.broadcast %cst_16 : f32 to vector<1x384xf32>
    %30 = arith.subf %29, %10 : vector<1x384xf32>
    %31 = vector.broadcast %30 : vector<1x384xf32> to vector<64x384xf32>
    %32 = arith.mulf %21, %31 : vector<64x384xf32>
    %33 = tpu.reciprocal %28 {approx = true} : vector<64x384xf32> -> vector<64x384xf32>
    %34 = arith.mulf %32, %33 : vector<64x384xf32>
    %cst_17 = arith.constant 9.99999971E-10 : f32
    %35 = vector.broadcast %cst_17 : f32 to vector<64x384xf32>
    %36 = arith.maximumf %34, %35 : vector<64x384xf32>
    %37 = arith.truncf %36 : vector<64x384xf32> to vector<64x384xbf16>
    %c0_18 = arith.constant 0 : index
    %c0_19 = arith.constant 0 : index
    %38 = vector.load %arg11[%c0_18, %c0_19] : memref<64x384xbf16, #tpu.memory_space<vmem>>, vector<64x384xbf16>
    tpu.vector_store %arg11[%c0_18, %c0_19], %37 {strides = array<i32>} : memref<64x384xbf16, #tpu.memory_space<vmem>>, vector<64x384xbf16>,
    %39 = math.log %28 : vector<64x384xf32>
    %40 = arith.subf %39, %20 : vector<64x384xf32>
    %c0_20 = arith.constant 0 : index
    %c0_21 = arith.constant 0 : index
    %41 = vector.load %arg8[%c0_20, %c0_21] : memref<1x384xf32, #tpu.memory_space<vmem>>, vector<1x384xf32>
    %42 = vector.broadcast %41 : vector<1x384xf32> to vector<64x384xf32>
    %43 = arith.subf %40, %42 : vector<64x384xf32>
    %c0_22 = arith.constant 0 : index
    %c0_23 = arith.constant 0 : index
    %44 = vector.load %arg9[%c0_22, %c0_23] : memref<1x384xf32, #tpu.memory_space<vmem>>, vector<1x384xf32>
    %45 = vector.broadcast %44 : vector<1x384xf32> to vector<64x384xf32>
    %46 = arith.mulf %43, %45 : vector<64x384xf32>
    %47 = vector.shape_cast %46 : vector<64x384xf32> to vector<1x64x384xf32>
    %cst_24 = arith.constant dense<0.000000e+00> : vector<1xf32>
    %48 = vector.multi_reduction <add>, %47, %cst_24 [1, 2] : vector<1x64x384xf32> to vector<1xf32>
    %49 = vector.shape_cast %48 : vector<1xf32> to vector<1x1x1xf32>
    %50 = vector.extract %49[0, 0, 0] : f32 from vector<1x1x1xf32>
    %51 = vector.broadcast %50 : f32 to vector<1x1x1xf32>
    %52 = vector.shape_cast %51 : vector<1x1x1xf32> to vector<1x1x1xf32>
    %53 = vector.broadcast %52 : vector<1x1x1xf32> to vector<1x8x128xf32>
    %c0_25 = arith.constant 0 : index
    %c0_26 = arith.constant 0 : index
    %c0_27 = arith.constant 0 : index
    %54 = vector.load %arg12[%c0_25, %c0_26, %c0_27] : memref<1x8x128xf32, #tpu.memory_space<vmem>>, vector<1x8x128xf32>
    tpu.vector_store %arg12[%c0_25, %c0_26, %c0_27], %53 {strides = array<i32>} : memref<1x8x128xf32, #tpu.memory_space<vmem>>, vector<1x8x128xf32>,
    %55 = arith.truncf %8 : vector<64x384xf32> to vector<64x384xbf16>
    %c0_28 = arith.constant 0 : index
    %c0_29 = arith.constant 0 : index
    %56 = vector.load %arg4[%c0_28, %c0_29] : memref<384x768xbf16, #tpu.memory_space<vmem>>, vector<384x768xbf16>
    %cst_30 = arith.constant dense<0.000000e+00> : vector<64x768xf32>
    %57 = tpu.matmul %55, %56, %cst_30 {dimension_numbers = #tpu.dot_dimension_numbers<[1], [0], [0], [1], [0, 0, 1, 1], [], []>} : vector<64x384xbf16>, vector<384x768xbf16>, vector<64x768xf32> -> vector<64x768xf32>
    %c0_31 = arith.constant 0 : index
    %c0_32 = arith.constant 0 : index
    %58 = vector.load %arg5[%c0_31, %c0_32] : memref<1x768xf32, #tpu.memory_space<vmem>>, vector<1x768xf32>
    %59 = vector.broadcast %58 : vector<1x768xf32> to vector<64x768xf32>
    %60 = arith.addf %57, %59 : vector<64x768xf32>
    %61 = arith.truncf %60 : vector<64x768xf32> to vector<64x768xbf16>
    %c0_33 = arith.constant 0 : index
    %c0_34 = arith.constant 0 : index
    %62 = vector.load %arg10[%c0_33, %c0_34] : memref<64x768xbf16, #tpu.memory_space<vmem>>, vector<64x768xbf16>
    tpu.vector_store %arg10[%c0_33, %c0_34], %61 {strides = array<i32>} : memref<64x768xbf16, #tpu.memory_space<vmem>>, vector<64x768xbf16>,
    return
  }
  func.func @transform_0(%arg0: i32) -> (i32, i32) {
    %c0_i32 = arith.constant 0 : i32
    %c0_i32_0 = arith.constant 0 : i32
    return %arg0, %c0_i32 : i32, i32
  }
  func.func @transform_1(%arg0: i32) -> (i32, i32) {
    %c0_i32 = arith.constant 0 : i32
    %c0_i32_0 = arith.constant 0 : i32
    %c0_i32_1 = arith.constant 0 : i32
    return %c0_i32, %c0_i32_0 : i32, i32
  }
  func.func @transform_2(%arg0: i32) -> (i32, i32) {
    %c0_i32 = arith.constant 0 : i32
    %c0_i32_0 = arith.constant 0 : i32
    %c0_i32_1 = arith.constant 0 : i32
    return %c0_i32, %c0_i32_0 : i32, i32
  }
  func.func @transform_3(%arg0: i32) -> (i32, i32) {
    %c0_i32 = arith.constant 0 : i32
    %c0_i32_0 = arith.constant 0 : i32
    %c0_i32_1 = arith.constant 0 : i32
    return %c0_i32, %c0_i32_0 : i32, i32
  }
  func.func @transform_4(%arg0: i32) -> (i32, i32) {
    %c0_i32 = arith.constant 0 : i32
    %c0_i32_0 = arith.constant 0 : i32
    %c0_i32_1 = arith.constant 0 : i32
    return %c0_i32, %c0_i32_0 : i32, i32
  }
  func.func @transform_5(%arg0: i32) -> (i32, i32) {
    %c0_i32 = arith.constant 0 : i32
    %c0_i32_0 = arith.constant 0 : i32
    %c0_i32_1 = arith.constant 0 : i32
    return %c0_i32, %c0_i32_0 : i32, i32
  }
  func.func @transform_6(%arg0: i32) -> (i32, i32) {
    %c0_i32 = arith.constant 0 : i32
    %c0_i32_0 = arith.constant 0 : i32
    %c0_i32_1 = arith.constant 0 : i32
    return %c0_i32, %c0_i32_0 : i32, i32
  }
  func.func @transform_7(%arg0: i32) -> (i32, i32) {
    %c0_i32 = arith.constant 0 : i32
    %c0_i32_0 = arith.constant 0 : i32
    %c0_i32_1 = arith.constant 0 : i32
    return %c0_i32, %c0_i32_0 : i32, i32
  }
  func.func @transform_8(%arg0: i32) -> (i32, i32) {
    %c0_i32 = arith.constant 0 : i32
    %c0_i32_0 = arith.constant 0 : i32
    %c0_i32_1 = arith.constant 0 : i32
    return %c0_i32, %c0_i32_0 : i32, i32
  }
  func.func @transform_9(%arg0: i32) -> (i32, i32) {
    %c0_i32 = arith.constant 0 : i32
    %c0_i32_0 = arith.constant 0 : i32
    return %arg0, %c0_i32 : i32, i32
  }
  func.func @transform_10(%arg0: i32) -> (i32, i32) {
    %c0_i32 = arith.constant 0 : i32
    %c0_i32_0 = arith.constant 0 : i32
    return %arg0, %c0_i32 : i32, i32
  }
  func.func @transform_11(%arg0: i32) -> (i32, i32, i32) {
    %c0_i32 = arith.constant 0 : i32
    %c0_i32_0 = arith.constant 0 : i32
    %c0_i32_1 = arith.constant 0 : i32
    return %arg0, %c0_i32, %c0_i32_0 : i32, i32, i32
  }
}

</mosaic_0001>

<llo_original>
// kernel: codec_forward.1
$region0: #{codec_forward.1}
  #allocation0 [shape = 'u32[]', space=smem, size = 0x4, offset = 0x4, fixed_abs, tag = 'smem constant byte address 0x4 - core index']
  #allocation1 [shape = 'u32[144,128]{1,0:T(1,128)}', space=vmem, size = 0x12000, scoped, tag = 'internal scratch']
  %s0 = inlined_call_operand.vmem [shape: bf16[128,768], index: 0, kind: input, shape index: {}]
  %s1 = inlined_call_operand.vmem [shape: bf16[768,384], index: 1, kind: input, shape index: {}]
  %s2 = inlined_call_operand.vmem [shape: f32[1,384], index: 2, kind: input, shape index: {}]
  %s3 = inlined_call_operand.vmem [shape: bf16[384,768], index: 3, kind: input, shape index: {}]
  %s4 = inlined_call_operand.vmem [shape: f32[1,768], index: 4, kind: input, shape index: {}]
  %s5 = inlined_call_operand.vmem [shape: f32[1,384], index: 5, kind: input, shape index: {}]
  %s6 = inlined_call_operand.vmem [shape: f32[1,384], index: 6, kind: input, shape index: {}]
  %s7 = inlined_call_operand.vmem [shape: f32[1,384], index: 7, kind: input, shape index: {}]
  %s8 = inlined_call_operand.vmem [shape: f32[1,384], index: 8, kind: input, shape index: {}]
  %s9 = inlined_call_operand.vmem [shape: bf16[128,768], index: 9, kind: output, shape index: {0}]
  %s10 = inlined_call_operand.vmem [shape: bf16[128,384], index: 10, kind: output, shape index: {1}]
  %s11 = inlined_call_operand.vmem [shape: f32[2,8,128], index: 11, kind: output, shape index: {2}]
  %12 = xla_tuple %s9, %s10, %s11
  %s13 = sld [smem:[#allocation0]]
  $region85: #{codec_forward.1} parent=0
    _
  %s15 = ssub.s32 1, %s13
  %s16 = scalar_select 0, %s15, %s13
  loop: start=0, step=1, limit=4
  $region2: #{codec_forward.1} parent=0 // loop_pre_header
    _
  $region3: #{codec_forward.1} parent=0 // loop_header
    %s18 = sphi 0, %s22
    %p19 = scmp.ge.s32.totalorder %s18, 4
    %s28 = sphi 0, %s30
    %s31 = sphi 0, %s28
    %s32 = sphi 0, %s31
    %s48 = sphi 0, %s32
    %s52 = sphi 0, %s52
    %s54 = sphi 0, %s52
    %s55 = sphi 0, %s54
    %s69 = sphi 0, %s55
    %s73 = sphi 0, %s73
    %s75 = sphi 0, %s73
    %s76 = sphi 0, %s75
    %s90 = sphi 0, %s76
    %s94 = sphi 0, %s94
    %s96 = sphi 0, %s94
    %s97 = sphi 0, %s96
    %s111 = sphi 0, %s97
    %s115 = sphi 0, %s115
    %s117 = sphi 0, %s115
    %s118 = sphi 0, %s117
    %s132 = sphi 0, %s118
    %s136 = sphi 0, %s136
    %s138 = sphi 0, %s136
    %s139 = sphi 0, %s138
    %s153 = sphi 0, %s139
    %s157 = sphi 0, %s157
    %s159 = sphi 0, %s157
    %s160 = sphi 0, %s159
    %s174 = sphi 0, %s160
    %s178 = sphi 0, %s178
    %s180 = sphi 0, %s178
    %s181 = sphi 0, %s180
    %s195 = sphi 0, %s181
    %s199 = sphi 0, %s199
    %s201 = sphi 0, %s199
    %s202 = sphi 0, %s201
    %s216 = sphi 0, %s202
    %s222 = sphi 0, %s224
    %s225 = sphi 0, %s222
    %s226 = sphi 0, %s225
    %s242 = sphi 0, %s226
    %s248 = sphi 0, %s250
    %s251 = sphi 0, %s248
    %s252 = sphi 0, %s251
    %s268 = sphi 0, %s252
    %s274 = sphi 0, %s276
    %s277 = sphi 0, %s274
    %s278 = sphi 0, %s277
    %s294 = sphi 0, %s278
  $region4: #{codec_forward.1} parent=0 // loop_header_branch
    %21 = sbr.rel (%p19) target = $region8
  $region5: #{codec_forward.1} parent=0 // loop_body
    %s23 = ssub.s32 %s18, 1
    %s24 = ssub.s32 %s18, 2
    %s25 = sadd.s32 %s18, 1
    %s26 = ssub.s32 %s18, %s25
    %p27 = scmp.eq.s32.totalorder %s26, 0
    %s29 = sadd.s32 %s28, 1
    %s30 = scalar_select %p27, %s28, %s29
    %p33 = pneg %p27
    %p34 = scmp.eq.s32.totalorder %s18, 1
    %p35 = por %p33, %p34
    %p36 = scmp.ne.s32.totalorder %s28, %s31
    %p37 = scmp.eq.s32.totalorder %s18, 0
    %p38 = por %p36, %p37
    %p39 = scmp.ne.s32.totalorder %s28, %s31
    %p40 = scmp.eq.s32.totalorder %s23, 1
    %p41 = por %p39, %p40
    %p42 = scmp.ne.s32.totalorder %s31, %s32
    %p43 = scmp.eq.s32.totalorder %s23, 0
    %p44 = por %p42, %p43
    %p45 = scmp.ne.s32.totalorder %s31, %s32
    %p46 = scmp.eq.s32.totalorder %s24, 1
    %p47 = por %p45, %p46
    %p49 = scmp.ne.s32.totalorder %s32, %s48
    %p50 = scmp.eq.s32.totalorder %s24, 0
    %p51 = por %p49, %p50
    %s53 = sadd.s32 %s52, 1
    %p56 = scmp.eq.s32.totalorder %s18, 1
    %p57 = scmp.ne.s32.totalorder %s52, %s54
    %p58 = scmp.eq.s32.totalorder %s18, 0
    %p59 = por %p57, %p58
    %p60 = scmp.ne.s32.totalorder %s52, %s54
    %p61 = scmp.eq.s32.totalorder %s23, 1
    %p62 = por %p60, %p61
    %p63 = scmp.ne.s32.totalorder %s54, %s55
    %p64 = scmp.eq.s32.totalorder %s23, 0
    %p65 = por %p63, %p64
    %p66 = scmp.ne.s32.totalorder %s54, %s55
    %p67 = scmp.eq.s32.totalorder %s24, 1
    %p68 = por %p66, %p67
    %p70 = scmp.ne.s32.totalorder %s55, %s69
    %p71 = scmp.eq.s32.totalorder %s24, 0
    %p72 = por %p70, %p71
    %s74 = sadd.s32 %s73, 1
    %p77 = scmp.eq.s32.totalorder %s18, 1
    %p78 = scmp.ne.s32.totalorder %s73, %s75
    %p79 = scmp.eq.s32.totalorder %s18, 0
    %p80 = por %p78, %p79
    %p81 = scmp.ne.s32.totalorder %s73, %s75
    %p82 = scmp.eq.s32.totalorder %s23, 1
    %p83 = por %p81, %p82
    %p84 = scmp.ne.s32.totalorder %s75, %s76
    %p85 = scmp.eq.s32.totalorder %s23, 0
    %p86 = por %p84, %p85
    %p87 = scmp.ne.s32.totalorder %s75, %s76
    %p88 = scmp.eq.s32.totalorder %s24, 1
    %p89 = por %p87, %p88
    %p91 = scmp.ne.s32.totalorder %s76, %s90
    %p92 = scmp.eq.s32.totalorder %s24, 0
    %p93 = por %p91, %p92
    %s95 = sadd.s32 %s94, 1
    %p98 = scmp.eq.s32.totalorder %s18, 1
    %p99 = scmp.ne.s32.totalorder %s94, %s96
    %p100 = scmp.eq.s32.totalorder %s18, 0
    %p101 = por %p99, %p100
    %p102 = scmp.ne.s32.totalorder %s94, %s96
    %p103 = scmp.eq.s32.totalorder %s23, 1
    %p104 = por %p102, %p103
    %p105 = scmp.ne.s32.totalorder %s96, %s97
    %p106 = scmp.eq.s32.totalorder %s23, 0
    %p107 = por %p105, %p106
    %p108 = scmp.ne.s32.totalorder %s96, %s97
    %p109 = scmp.eq.s32.totalorder %s24, 1
    %p110 = por %p108, %p109
    %p112 = scmp.ne.s32.totalorder %s97, %s111
    %p113 = scmp.eq.s32.totalorder %s24, 0
    %p114 = por %p112, %p113
    %s116 = sadd.s32 %s115, 1
    %p119 = scmp.eq.s32.totalorder %s18, 1
    %p120 = scmp.ne.s32.totalorder %s115, %s117
    %p121 = scmp.eq.s32.totalorder %s18, 0
    %p122 = por %p120, %p121
    %p123 = scmp.ne.s32.totalorder %s115, %s117
    %p124 = scmp.eq.s32.totalorder %s23, 1
    %p125 = por %p123, %p124
    %p126 = scmp.ne.s32.totalorder %s117, %s118
    %p127 = scmp.eq.s32.totalorder %s23, 0
    %p128 = por %p126, %p127
    %p129 = scmp.ne.s32.totalorder %s117, %s118
    %p130 = scmp.eq.s32.totalorder %s24, 1
    %p131 = por %p129, %p130
    %p133 = scmp.ne.s32.totalorder %s118, %s132
    %p134 = scmp.eq.s32.totalorder %s24, 0
    %p135 = por %p133, %p134
    %s137 = sadd.s32 %s136, 1
    %p140 = scmp.eq.s32.totalorder %s18, 1
    %p141 = scmp.ne.s32.totalorder %s136, %s138
    %p142 = scmp.eq.s32.totalorder %s18, 0
    %p143 = por %p141, %p142
    %p144 = scmp.ne.s32.totalorder %s136, %s138
    %p145 = scmp.eq.s32.totalorder %s23, 1
    %p146 = por %p144, %p145
    %p147 = scmp.ne.s32.totalorder %s138, %s139
    %p148 = scmp.eq.s32.totalorder %s23, 0
    %p149 = por %p147, %p148
    %p150 = scmp.ne.s32.totalorder %s138, %s139
    %p151 = scmp.eq.s32.totalorder %s24, 1
    %p152 = por %p150, %p151
    %p154 = scmp.ne.s32.totalorder %s139, %s153
    %p155 = scmp.eq.s32.totalorder %s24, 0
    %p156 = por %p154, %p155
    %s158 = sadd.s32 %s157, 1
    %p161 = scmp.eq.s32.totalorder %s18, 1
    %p162 = scmp.ne.s32.totalorder %s157, %s159
    %p163 = scmp.eq.s32.totalorder %s18, 0
    %p164 = por %p162, %p163
    %p165 = scmp.ne.s32.totalorder %s157, %s159
    %p166 = scmp.eq.s32.totalorder %s23, 1
    %p167 = por %p165, %p166
    %p168 = scmp.ne.s32.totalorder %s159, %s160
    %p169 = scmp.eq.s32.totalorder %s23, 0
    %p170 = por %p168, %p169
    %p171 = scmp.ne.s32.totalorder %s159, %s160
    %p172 = scmp.eq.s32.totalorder %s24, 1
    %p173 = por %p171, %p172
    %p175 = scmp.ne.s32.totalorder %s160, %s174
    %p176 = scmp.eq.s32.totalorder %s24, 0
    %p177 = por %p175, %p176
    %s179 = sadd.s32 %s178, 1
    %p182 = scmp.eq.s32.totalorder %s18, 1
    %p183 = scmp.ne.s32.totalorder %s178, %s180
    %p184 = scmp.eq.s32.totalorder %s18, 0
    %p185 = por %p183, %p184
    %p186 = scmp.ne.s32.totalorder %s178, %s180
    %p187 = scmp.eq.s32.totalorder %s23, 1
    %p188 = por %p186, %p187
    %p189 = scmp.ne.s32.totalorder %s180, %s181
    %p190 = scmp.eq.s32.totalorder %s23, 0
    %p191 = por %p189, %p190
    %p192 = scmp.ne.s32.totalorder %s180, %s181
    %p193 = scmp.eq.s32.totalorder %s24, 1
    %p194 = por %p192, %p193
    %p196 = scmp.ne.s32.totalorder %s181, %s195
    %p197 = scmp.eq.s32.totalorder %s24, 0
    %p198 = por %p196, %p197
    %s200 = sadd.s32 %s199, 1
    %p203 = scmp.eq.s32.totalorder %s18, 1
    %p204 = scmp.ne.s32.totalorder %s199, %s201
    %p205 = scmp.eq.s32.totalorder %s18, 0
    %p206 = por %p204, %p205
    %p207 = scmp.ne.s32.totalorder %s199, %s201
    %p208 = scmp.eq.s32.totalorder %s23, 1
    %p209 = por %p207, %p208
    %p210 = scmp.ne.s32.totalorder %s201, %s202
    %p211 = scmp.eq.s32.totalorder %s23, 0
    %p212 = por %p210, %p211
    %p213 = scmp.ne.s32.totalorder %s201, %s202
    %p214 = scmp.eq.s32.totalorder %s24, 1
    %p215 = por %p213, %p214
    %p217 = scmp.ne.s32.totalorder %s202, %s216
    %p218 = scmp.eq.s32.totalorder %s24, 0
    %p219 = por %p217, %p218
    %s220 = ssub.s32 %s18, %s25
    %p221 = scmp.eq.s32.totalorder %s220, 0
    %s223 = sadd.s32 %s222, 1
    %s224 = scalar_select %p221, %s222, %s223
    %p227 = pneg %p221
    %p228 = scmp.eq.s32.totalorder %s18, 1
    %p229 = por %p227, %p228
    %p230 = scmp.ne.s32.totalorder %s222, %s225
    %p231 = scmp.eq.s32.totalorder %s18, 0
    %p232 = por %p230, %p231
    %p233 = scmp.ne.s32.totalorder %s222, %s225
    %p234 = scmp.eq.s32.totalorder %s23, 1
    %p235 = por %p233, %p234
    %p236 = scmp.ne.s32.totalorder %s225, %s226
    %p237 = scmp.eq.s32.totalorder %s23, 0
    %p238 = por %p236, %p237
    %p239 = scmp.ne.s32.totalorder %s225, %s226
    %p240 = scmp.eq.s32.totalorder %s24, 1
    %p241 = por %p239, %p240
    %p243 = scmp.ne.s32.totalorder %s226, %s242
    %p244 = scmp.eq.s32.totalorder %s24, 0
    %p245 = por %p243, %p244
    %s246 = ssub.s32 %s18, %s25
    %p247 = scmp.eq.s32.totalorder %s246, 0
    %s249 = sadd.s32 %s248, 1
    %s250 = scalar_select %p247, %s248, %s249
    %p253 = pneg %p247
    %p254 = scmp.eq.s32.totalorder %s18, 1
    %p255 = por %p253, %p254
    %p256 = scmp.ne.s32.totalorder %s248, %s251
    %p257 = scmp.eq.s32.totalorder %s18, 0
    %p258 = por %p256, %p257
    %p259 = scmp.ne.s32.totalorder %s248, %s251
    %p260 = scmp.eq.s32.totalorder %s23, 1
    %p261 = por %p259, %p260
    %p262 = scmp.ne.s32.totalorder %s251, %s252
    %p263 = scmp.eq.s32.totalorder %s23, 0
    %p264 = por %p262, %p263
    %p265 = scmp.ne.s32.totalorder %s251, %s252
    %p266 = scmp.eq.s32.totalorder %s24, 1
    %p267 = por %p265, %p266
    %p269 = scmp.ne.s32.totalorder %s252, %s268
    %p270 = scmp.eq.s32.totalorder %s24, 0
    %p271 = por %p269, %p270
    %s272 = ssub.s32 %s18, %s25
    %p273 = scmp.eq.s32.totalorder %s272, 0
    %s275 = sadd.s32 %s274, 1
    %s276 = scalar_select %p273, %s274, %s275
    %p279 = pneg %p273
    %p280 = scmp.eq.s32.totalorder %s18, 1
    %p281 = por %p279, %p280
    %p282 = scmp.ne.s32.totalorder %s274, %s277
    %p283 = scmp.eq.s32.totalorder %s18, 0
    %p284 = por %p282, %p283
    %p285 = scmp.ne.s32.totalorder %s274, %s277
    %p286 = scmp.eq.s32.totalorder %s23, 1
    %p287 = por %p285, %p286
    %p288 = scmp.ne.s32.totalorder %s277, %s278
    %p289 = scmp.eq.s32.totalorder %s23, 0
    %p290 = por %p288, %p289
    %p291 = scmp.ne.s32.totalorder %s277, %s278
    %p292 = scmp.eq.s32.totalorder %s24, 1
    %p293 = por %p291, %p292
    %p295 = scmp.ne.s32.totalorder %s278, %s294
    %p296 = scmp.eq.s32.totalorder %s24, 0
    %p297 = por %p295, %p296
    %p298 = scmp.le.s32.totalorder 1, %s18
    %p299 = scmp.lt.s32.totalorder %s18, 3
    %p300 = pnand %p298, %p299
    %p301 = pneg %p300
    // Predicated region
    $region9: #{codec_forward.1} parent=5 // pred_check
      _
    $region10: #{codec_forward.1} parent=5 // pred_check_branch
      %303 = sbr.rel (%p300) target = $region12
    $region11: #{codec_forward.1} parent=5 // pred_region
      %s304 = ssub.s32 %s18, 1
      // Predicated region
      $region13: #{codec_forward.1} parent=11 // pred_check
        %p305 = pneg %p65
      $region14: #{codec_forward.1} parent=11 // pred_check_branch
        %307 = sbr.rel (%p305) target = $region16
      $region15: #{codec_forward.1} parent=11 // pred_region
        _
      $region16: #{codec_forward.1} parent=11 // pred_fallthru
        _
      // Predicated region
      $region17: #{codec_forward.1} parent=11 // pred_check
        %p308 = pneg %p86
      $region18: #{codec_forward.1} parent=11 // pred_check_branch
        %310 = sbr.rel (%p308) target = $region20
      $region19: #{codec_forward.1} parent=11 // pred_region
        _
      $region20: #{codec_forward.1} parent=11 // pred_fallthru
        _
      // Predicated region
      $region21: #{codec_forward.1} parent=11 // pred_check
        %p311 = pneg %p107
      $region22: #{codec_forward.1} parent=11 // pred_check_branch
        %313 = sbr.rel (%p311) target = $region24
      $region23: #{codec_forward.1} parent=11 // pred_region
        _
      $region24: #{codec_forward.1} parent=11 // pred_fallthru
        _
      // Predicated region
      $region25: #{codec_forward.1} parent=11 // pred_check
        %p314 = pneg %p128
      $region26: #{codec_forward.1} parent=11 // pred_check_branch
        %316 = sbr.rel (%p314) target = $region28
      $region27: #{codec_forward.1} parent=11 // pred_region
        _
      $region28: #{codec_forward.1} parent=11 // pred_fallthru
        _
      // Predicated region
      $region29: #{codec_forward.1} parent=11 // pred_check
        %p317 = pneg %p149
      $region30: #{codec_forward.1} parent=11 // pred_check_branch
        %319 = sbr.rel (%p317) target = $region32
      $region31: #{codec_forward.1} parent=11 // pred_region
        _
      $region32: #{codec_forward.1} parent=11 // pred_fallthru
        _
      // Predicated region
      $region33: #{codec_forward.1} parent=11 // pred_check
        %p320 = pneg %p170
      $region34: #{codec_forward.1} parent=11 // pred_check_branch
        %322 = sbr.rel (%p320) target = $region36
      $region35: #{codec_forward.1} parent=11 // pred_region
        _
      $region36: #{codec_forward.1} parent=11 // pred_fallthru
        _
      // Predicated region
      $region37: #{codec_forward.1} parent=11 // pred_check
        %p323 = pneg %p191
      $region38: #{codec_forward.1} parent=11 // pred_check_branch
        %325 = sbr.rel (%p323) target = $region40
      $region39: #{codec_forward.1} parent=11 // pred_region
        _
      $region40: #{codec_forward.1} parent=11 // pred_fallthru
        _
      // Predicated region
      $region41: #{codec_forward.1} parent=11 // pred_check
        %p326 = pneg %p212
      $region42: #{codec_forward.1} parent=11 // pred_check_branch
        %328 = sbr.rel (%p326) target = $region44
      $region43: #{codec_forward.1} parent=11 // pred_region
        _
      $region44: #{codec_forward.1} parent=11 // pred_fallthru
        _
    $region12: #{codec_forward.1} parent=5 // pred_fallthru
      _
    %p329 = scmp.lt.s32.totalorder %s18, 2
    // Predicated region
    $region45: #{codec_forward.1} parent=5 // pred_check
      %p330 = pneg %p329
    $region46: #{codec_forward.1} parent=5 // pred_check_branch
      %332 = sbr.rel (%p330) target = $region48
    $region47: #{codec_forward.1} parent=5 // pred_region
      // Predicated region
      $region49: #{codec_forward.1} parent=47 // pred_check
        %p333 = pneg %p38
      $region50: #{codec_forward.1} parent=47 // pred_check_branch
        %335 = sbr.rel (%p333) target = $region52
      $region51: #{codec_forward.1} parent=47 // pred_region
        %s336 = smul.u32 8, %s18
        %p337 = scmp.lt.s32.totalorder %s336, 15
        %s338 = scalar_select %p337, %s336, 15
        %s339 = smul.addr %s338, 6
        %s340 = smul.addr %s339, 4
        %s341 = scalar_lea.vmem %s0, %s340
        %s342 = smul.u32 8, %s18
      $region52: #{codec_forward.1} parent=47 // pred_fallthru
        _
    $region48: #{codec_forward.1} parent=5 // pred_fallthru
      _
    %p343 = scmp.le.s32.totalorder 1, %s18
    %p344 = scmp.lt.s32.totalorder %s18, 3
    %p345 = pnand %p343, %p344
    %p346 = pneg %p345
    // Predicated region
    $region53: #{codec_forward.1} parent=5 // pred_check
      _
    $region54: #{codec_forward.1} parent=5 // pred_check_branch
      %348 = sbr.rel (%p345) target = $region56
    $region55: #{codec_forward.1} parent=5 // pred_region
      %s349 = ssub.s32 %s18, 1
      %s350 = smul.u32 8, %s23
      %p351 = scmp.lt.s32.totalorder %s350, 15
      %s352 = scalar_select %p351, %s350, 15
      %s353 = smul.addr %s352, 6
      %s354 = smul.addr %s353, 4
      %s355 = scalar_lea.vmem %s0, %s354
      %p356 = pneg %p44
      %p357 = pneg %p41
      %p358 = pneg %p65
      %p359 = pneg %p62
      %p360 = pneg %p86
      %p361 = pneg %p83
      %p362 = pneg %p107
      %p363 = pneg %p104
      %p364 = pneg %p128
      %p365 = pneg %p125
      %p366 = pneg %p149
      %p367 = pneg %p146
      %p368 = pneg %p170
      %p369 = pneg %p167
      %p370 = pneg %p191
      %p371 = pneg %p188
      %p372 = pneg %p212
      %p373 = pneg %p209
      %p374 = pneg %p238
      %p375 = pneg %p235
      %s376 = smul.u32 8, %s23
      %p377 = scmp.lt.s32.totalorder %s376, 15
      %s378 = scalar_select %p377, %s376, 15
      %s379 = smul.addr %s378, 6
      %s380 = smul.addr %s379, 4
      %s381 = scalar_lea.vmem %s9, %s380
      %p382 = pneg %p264
      %p383 = pneg %p261
      %s384 = smul.u32 8, %s23
      %p385 = scmp.lt.s32.totalorder %s384, 15
      %s386 = scalar_select %p385, %s384, 15
      %s387 = smul.addr %s386, 3
      %s388 = smul.addr %s387, 4
      %s389 = scalar_lea.vmem %s10, %s388
      %p390 = pneg %p290
      %p391 = pneg %p287
      %p392 = scmp.lt.s32.totalorder %s23, 1
      %s393 = scalar_select %p392, %s23, 1
      %s394 = smul.addr %s393, 8
      %s395 = scalar_lea.vmem %s11, %s394
      %s396 = smul.u32 8, %s23
      %p397 = scmp.lt.s32.totalorder %s396, 15
      %s398 = scalar_select %p397, %s396, 15
      %s399 = smul.addr %s398, 6
      %s400 = smul.addr %s399, 4
      %s401 = scalar_lea.vmem %s0, %s400
      %s402 = smul.u32 8, %s23
      %s403 = smul.u32 8, %s23
      %p404 = scmp.lt.s32.totalorder %s403, 15
      %s405 = scalar_select %p404, %s403, 15
      %s406 = smul.addr %s405, 6
      %s407 = smul.addr %s406, 4
      %s408 = scalar_lea.vmem %s9, %s407
      %s409 = smul.u32 8, %s23
      %s410 = smul.u32 8, %s23
      %p411 = scmp.lt.s32.totalorder %s410, 15
      %s412 = scalar_select %p411, %s410, 15
      %s413 = smul.addr %s412, 3
      %s414 = smul.addr %s413, 4
      %s415 = scalar_lea.vmem %s10, %s414
      %s416 = smul.u32 8, %s23
      %p417 = scmp.lt.s32.totalorder %s23, 1
      %s418 = scalar_select %p417, %s23, 1
      %s419 = smul.addr %s418, 8
      %s420 = scalar_lea.vmem %s11, %s419
      %v422 = vld [vmem:[%s401] sm:$0xff]
      %v423 = vld [vmem:[%s401 + $0x8] sm:$0xff]
      %v424 = vld [vmem:[%s401 + $0x10] sm:$0xff]
      %v425 = vld [vmem:[%s401 + $0x18] sm:$0xff]
      %v426 = vld [vmem:[%s401 + $0x20] sm:$0xff]
      %v427 = vld [vmem:[%s401 + $0x28] sm:$0xff]
      %v428 = vld [vmem:[%s401 + $0x30] sm:$0xff]
      %v429 = vld [vmem:[%s401 + $0x38] sm:$0xff]
      %v430 = vld [vmem:[%s401 + $0x40] sm:$0xff]
      %v431 = vld [vmem:[%s401 + $0x48] sm:$0xff]
      %v432 = vld [vmem:[%s401 + $0x50] sm:$0xff]
      %v433 = vld [vmem:[%s401 + $0x58] sm:$0xff]
      %v434 = vld [vmem:[%s401 + $0x60] sm:$0xff]
      %v435 = vld [vmem:[%s401 + $0x68] sm:$0xff]
      %v436 = vld [vmem:[%s401 + $0x70] sm:$0xff]
      %v437 = vld [vmem:[%s401 + $0x78] sm:$0xff]
      %v438 = vld [vmem:[%s401 + $0x80] sm:$0xff]
      %v439 = vld [vmem:[%s401 + $0x88] sm:$0xff]
      %v440 = vld [vmem:[%s401 + $0x90] sm:$0xff]
      %v441 = vld [vmem:[%s401 + $0x98] sm:$0xff]
      %v442 = vld [vmem:[%s401 + $0xa0] sm:$0xff]
      %v443 = vld [vmem:[%s401 + $0xa8] sm:$0xff]
      %v444 = vld [vmem:[%s401 + $0xb0] sm:$0xff]
      %v445 = vld [vmem:[%s401 + $0xb8] sm:$0xff]
      %v446 = vld [vmem:[%s1] sm:$0xff]
      %v447 = vld [vmem:[%s1 + $0x8] sm:$0xf]
      %v448 = vld [vmem:[%s1 + $0xc] sm:$0xff]
      %v449 = vld [vmem:[%s1 + $0x14] sm:$0xf]
      %v450 = vld [vmem:[%s1 + $0x18] sm:$0xff]
      %v451 = vld [vmem:[%s1 + $0x20] sm:$0xf]
      %v452 = vld [vmem:[%s1 + $0x24] sm:$0xff]
      %v453 = vld [vmem:[%s1 + $0x2c] sm:$0xf]
      %v454 = vld [vmem:[%s1 + $0x30] sm:$0xff]
      %v455 = vld [vmem:[%s1 + $0x38] sm:$0xf]
      %v456 = vld [vmem:[%s1 + $0x3c] sm:$0xff]
      %v457 = vld [vmem:[%s1 + $0x44] sm:$0xf]
      %v458 = vld [vmem:[%s1 + $0x48] sm:$0xff]
      %v459 = vld [vmem:[%s1 + $0x50] sm:$0xf]
      %v460 = vld [vmem:[%s1 + $0x54] sm:$0xff]
      %v461 = vld [vmem:[%s1 + $0x5c] sm:$0xf]
      %v462 = vld [vmem:[%s1 + $0x60] sm:$0xff]
      %v463 = vld [vmem:[%s1 + $0x68] sm:$0xf]
      %v464 = vld [vmem:[%s1 + $0x6c] sm:$0xff]
      %v465 = vld [vmem:[%s1 + $0x74] sm:$0xf]
      %v466 = vld [vmem:[%s1 + $0x78] sm:$0xff]
      %v467 = vld [vmem:[%s1 + $0x80] sm:$0xf]
      %v468 = vld [vmem:[%s1 + $0x84] sm:$0xff]
      %v469 = vld [vmem:[%s1 + $0x8c] sm:$0xf]
      %v470 = vld [vmem:[%s1 + $0x90] sm:$0xff]
      %v471 = vld [vmem:[%s1 + $0x98] sm:$0xf]
      %v472 = vld [vmem:[%s1 + $0x9c] sm:$0xff]
      %v473 = vld [vmem:[%s1 + $0xa4] sm:$0xf]
      %v474 = vld [vmem:[%s1 + $0xa8] sm:$0xff]
      %v475 = vld [vmem:[%s1 + $0xb0] sm:$0xf]
      %v476 = vld [vmem:[%s1 + $0xb4] sm:$0xff]
      %v477 = vld [vmem:[%s1 + $0xbc] sm:$0xf]
      %v478 = vld [vmem:[%s1 + $0xc0] sm:$0xff]
      %v479 = vld [vmem:[%s1 + $0xc8] sm:$0xf]
      %v480 = vld [vmem:[%s1 + $0xcc] sm:$0xff]
      %v481 = vld [vmem:[%s1 + $0xd4] sm:$0xf]
      %v482 = vld [vmem:[%s1 + $0xd8] sm:$0xff]
      %v483 = vld [vmem:[%s1 + $0xe0] sm:$0xf]
      %v484 = vld [vmem:[%s1 + $0xe4] sm:$0xff]
      %v485 = vld [vmem:[%s1 + $0xec] sm:$0xf]
      %v486 = vld [vmem:[%s1 + $0xf0] sm:$0xff]
      %v487 = vld [vmem:[%s1 + $0xf8] sm:$0xf]
      %v488 = vld [vmem:[%s1 + $0xfc] sm:$0xff]
      %v489 = vld [vmem:[%s1 + $0x104] sm:$0xf]
      %v490 = vld [vmem:[%s1 + $0x108] sm:$0xff]
      %v491 = vld [vmem:[%s1 + $0x110] sm:$0xf]
      %v492 = vld [vmem:[%s1 + $0x114] sm:$0xff]
      %v493 = vld [vmem:[%s1 + $0x11c] sm:$0xf]
      %v494 = vld [vmem:[%s1 + $0x120] sm:$0xff]
      %v495 = vld [vmem:[%s1 + $0x128] sm:$0xf]
      %v496 = vld [vmem:[%s1 + $0x12c] sm:$0xff]
      %v497 = vld [vmem:[%s1 + $0x134] sm:$0xf]
      %v498 = vld [vmem:[%s1 + $0x138] sm:$0xff]
      %v499 = vld [vmem:[%s1 + $0x140] sm:$0xf]
      %v500 = vld [vmem:[%s1 + $0x144] sm:$0xff]
      %v501 = vld [vmem:[%s1 + $0x14c] sm:$0xf]
      %v502 = vld [vmem:[%s1 + $0x150] sm:$0xff]
      %v503 = vld [vmem:[%s1 + $0x158] sm:$0xf]
      %v504 = vld [vmem:[%s1 + $0x15c] sm:$0xff]
      %v505 = vld [vmem:[%s1 + $0x164] sm:$0xf]
      %v506 = vld [vmem:[%s1 + $0x168] sm:$0xff]
      %v507 = vld [vmem:[%s1 + $0x170] sm:$0xf]
      %v508 = vld [vmem:[%s1 + $0x174] sm:$0xff]
      %v509 = vld [vmem:[%s1 + $0x17c] sm:$0xf]
      %v510 = vld [vmem:[%s1 + $0x180] sm:$0xff]
      %v511 = vld [vmem:[%s1 + $0x188] sm:$0xf]
      %v512 = vld [vmem:[%s1 + $0x18c] sm:$0xff]
      %v513 = vld [vmem:[%s1 + $0x194] sm:$0xf]
      %v514 = vld [vmem:[%s1 + $0x198] sm:$0xff]
      %v515 = vld [vmem:[%s1 + $0x1a0] sm:$0xf]
      %v516 = vld [vmem:[%s1 + $0x1a4] sm:$0xff]
      %v517 = vld [vmem:[%s1 + $0x1ac] sm:$0xf]
      %v518 = vld [vmem:[%s1 + $0x1b0] sm:$0xff]
      %v519 = vld [vmem:[%s1 + $0x1b8] sm:$0xf]
      %v520 = vld [vmem:[%s1 + $0x1bc] sm:$0xff]
      %v521 = vld [vmem:[%s1 + $0x1c4] sm:$0xf]
      %v522 = vld [vmem:[%s1 + $0x1c8] sm:$0xff]
      %v523 = vld [vmem:[%s1 + $0x1d0] sm:$0xf]
      %v524 = vld [vmem:[%s1 + $0x1d4] sm:$0xff]
      %v525 = vld [vmem:[%s1 + $0x1dc] sm:$0xf]
      %v526 = vld [vmem:[%s1 + $0x1e0] sm:$0xff]
      %v527 = vld [vmem:[%s1 + $0x1e8] sm:$0xf]
      %v528 = vld [vmem:[%s1 + $0x1ec] sm:$0xff]
      %v529 = vld [vmem:[%s1 + $0x1f4] sm:$0xf]
      %v530 = vld [vmem:[%s1 + $0x1f8] sm:$0xff]
      %v531 = vld [vmem:[%s1 + $0x200] sm:$0xf]
      %v532 = vld [vmem:[%s1 + $0x204] sm:$0xff]
      %v533 = vld [vmem:[%s1 + $0x20c] sm:$0xf]
      %v534 = vld [vmem:[%s1 + $0x210] sm:$0xff]
      %v535 = vld [vmem:[%s1 + $0x218] sm:$0xf]
      %v536 = vld [vmem:[%s1 + $0x21c] sm:$0xff]
      %v537 = vld [vmem:[%s1 + $0x224] sm:$0xf]
      %v538 = vld [vmem:[%s1 + $0x228] sm:$0xff]
      %v539 = vld [vmem:[%s1 + $0x230] sm:$0xf]
      %v540 = vld [vmem:[%s1 + $0x234] sm:$0xff]
      %v541 = vld [vmem:[%s1 + $0x23c] sm:$0xf]
      %v542 = vld [vmem:[%s1 + $0x240] sm:$0xff]
      %v543 = vld [vmem:[%s1 + $0x248] sm:$0xf]
      %v544 = vld [vmem:[%s1 + $0x24c] sm:$0xff]
      %v545 = vld [vmem:[%s1 + $0x254] sm:$0xf]
      %v546 = vld [vmem:[%s1 + $0x258] sm:$0xff]
      %v547 = vld [vmem:[%s1 + $0x260] sm:$0xf]
      %v548 = vld [vmem:[%s1 + $0x264] sm:$0xff]
      %v549 = vld [vmem:[%s1 + $0x26c] sm:$0xf]
      %v550 = vld [vmem:[%s1 + $0x270] sm:$0xff]
      %v551 = vld [vmem:[%s1 + $0x278] sm:$0xf]
      %v552 = vld [vmem:[%s1 + $0x27c] sm:$0xff]
      %v553 = vld [vmem:[%s1 + $0x284] sm:$0xf]
      %v554 = vld [vmem:[%s1 + $0x288] sm:$0xff]
      %v555 = vld [vmem:[%s1 + $0x290] sm:$0xf]
      %v556 = vld [vmem:[%s1 + $0x294] sm:$0xff]
      %v557 = vld [vmem:[%s1 + $0x29c] sm:$0xf]
      %v558 = vld [vmem:[%s1 + $0x2a0] sm:$0xff]
      %v559 = vld [vmem:[%s1 + $0x2a8] sm:$0xf]
      %v560 = vld [vmem:[%s1 + $0x2ac] sm:$0xff]
      %v561 = vld [vmem:[%s1 + $0x2b4] sm:$0xf]
      %v562 = vld [vmem:[%s1 + $0x2b8] sm:$0xff]
      %v563 = vld [vmem:[%s1 + $0x2c0] sm:$0xf]
      %v564 = vld [vmem:[%s1 + $0x2c4] sm:$0xff]
      %v565 = vld [vmem:[%s1 + $0x2cc] sm:$0xf]
      %v566 = vld [vmem:[%s1 + $0x2d0] sm:$0xff]
      %v567 = vld [vmem:[%s1 + $0x2d8] sm:$0xf]
      %v568 = vld [vmem:[%s1 + $0x2dc] sm:$0xff]
      %v569 = vld [vmem:[%s1 + $0x2e4] sm:$0xf]
      %v570 = vld [vmem:[%s1 + $0x2e8] sm:$0xff]
      %v571 = vld [vmem:[%s1 + $0x2f0] sm:$0xf]
      %v572 = vld [vmem:[%s1 + $0x2f4] sm:$0xff]
      %v573 = vld [vmem:[%s1 + $0x2fc] sm:$0xf]
      %v574 = vld [vmem:[%s1 + $0x300] sm:$0xff]
      %v575 = vld [vmem:[%s1 + $0x308] sm:$0xf]
      %v576 = vld [vmem:[%s1 + $0x30c] sm:$0xff]
      %v577 = vld [vmem:[%s1 + $0x314] sm:$0xf]
      %v578 = vld [vmem:[%s1 + $0x318] sm:$0xff]
      %v579 = vld [vmem:[%s1 + $0x320] sm:$0xf]
      %v580 = vld [vmem:[%s1 + $0x324] sm:$0xff]
      %v581 = vld [vmem:[%s1 + $0x32c] sm:$0xf]
      %v582 = vld [vmem:[%s1 + $0x330] sm:$0xff]
      %v583 = vld [vmem:[%s1 + $0x338] sm:$0xf]
      %v584 = vld [vmem:[%s1 + $0x33c] sm:$0xff]
      %v585 = vld [vmem:[%s1 + $0x344] sm:$0xf]
      %v586 = vld [vmem:[%s1 + $0x348] sm:$0xff]
      %v587 = vld [vmem:[%s1 + $0x350] sm:$0xf]
      %v588 = vld [vmem:[%s1 + $0x354] sm:$0xff]
      %v589 = vld [vmem:[%s1 + $0x35c] sm:$0xf]
      %v590 = vld [vmem:[%s1 + $0x360] sm:$0xff]
      %v591 = vld [vmem:[%s1 + $0x368] sm:$0xf]
      %v592 = vld [vmem:[%s1 + $0x36c] sm:$0xff]
      %v593 = vld [vmem:[%s1 + $0x374] sm:$0xf]
      %v594 = vld [vmem:[%s1 + $0x378] sm:$0xff]
      %v595 = vld [vmem:[%s1 + $0x380] sm:$0xf]
      %v596 = vld [vmem:[%s1 + $0x384] sm:$0xff]
      %v597 = vld [vmem:[%s1 + $0x38c] sm:$0xf]
      %v598 = vld [vmem:[%s1 + $0x390] sm:$0xff]
      %v599 = vld [vmem:[%s1 + $0x398] sm:$0xf]
      %v600 = vld [vmem:[%s1 + $0x39c] sm:$0xff]
      %v601 = vld [vmem:[%s1 + $0x3a4] sm:$0xf]
      %v602 = vld [vmem:[%s1 + $0x3a8] sm:$0xff]
      %v603 = vld [vmem:[%s1 + $0x3b0] sm:$0xf]
      %v604 = vld [vmem:[%s1 + $0x3b4] sm:$0xff]
      %v605 = vld [vmem:[%s1 + $0x3bc] sm:$0xf]
      %v606 = vld [vmem:[%s1 + $0x3c0] sm:$0xff]
      %v607 = vld [vmem:[%s1 + $0x3c8] sm:$0xf]
      %v608 = vld [vmem:[%s1 + $0x3cc] sm:$0xff]
      %v609 = vld [vmem:[%s1 + $0x3d4] sm:$0xf]
      %v610 = vld [vmem:[%s1 + $0x3d8] sm:$0xff]
      %v611 = vld [vmem:[%s1 + $0x3e0] sm:$0xf]
      %v612 = vld [vmem:[%s1 + $0x3e4] sm:$0xff]
      %v613 = vld [vmem:[%s1 + $0x3ec] sm:$0xf]
      %v614 = vld [vmem:[%s1 + $0x3f0] sm:$0xff]
      %v615 = vld [vmem:[%s1 + $0x3f8] sm:$0xf]
      %v616 = vld [vmem:[%s1 + $0x3fc] sm:$0xff]
      %v617 = vld [vmem:[%s1 + $0x404] sm:$0xf]
      %v618 = vld [vmem:[%s1 + $0x408] sm:$0xff]
      %v619 = vld [vmem:[%s1 + $0x410] sm:$0xf]
      %v620 = vld [vmem:[%s1 + $0x414] sm:$0xff]
      %v621 = vld [vmem:[%s1 + $0x41c] sm:$0xf]
      %v622 = vld [vmem:[%s1 + $0x420] sm:$0xff]
      %v623 = vld [vmem:[%s1 + $0x428] sm:$0xf]
      %v624 = vld [vmem:[%s1 + $0x42c] sm:$0xff]
      %v625 = vld [vmem:[%s1 + $0x434] sm:$0xf]
      %v626 = vld [vmem:[%s1 + $0x438] sm:$0xff]
      %v627 = vld [vmem:[%s1 + $0x440] sm:$0xf]
      %v628 = vld [vmem:[%s1 + $0x444] sm:$0xff]
      %v629 = vld [vmem:[%s1 + $0x44c] sm:$0xf]
      %v630 = vld [vmem:[%s1 + $0x450] sm:$0xff]
      %v631 = vld [vmem:[%s1 + $0x458] sm:$0xf]
      %v632 = vld [vmem:[%s1 + $0x45c] sm:$0xff]
      %v633 = vld [vmem:[%s1 + $0x464] sm:$0xf]
      %v634 = vld [vmem:[%s1 + $0x468] sm:$0xff]
      %v635 = vld [vmem:[%s1 + $0x470] sm:$0xf]
      %v636 = vld [vmem:[%s1 + $0x474] sm:$0xff]
      %v637 = vld [vmem:[%s1 + $0x47c] sm:$0xf]
      %v638 = vld [vmem:[%s2] sm:$0x7]
      %v640 = vlaneseq
      %v641 = vshrl.u32 %v640, 7
      %v642 = vsub.s32 0, %v641
      %v643 = vrot.slane %v638, %v642
      %v644 = vlaneseq
      %v645 = vshrl.u32 %v644, 7
      %v646 = vsub.s32 1, %v645
      %v647 = vrot.slane %v638, %v646
      %v648 = vlaneseq
      %v649 = vshrl.u32 %v648, 7
      %v650 = vsub.s32 2, %v649
      %v651 = vrot.slane %v638, %v650
      %v679 = vunpack.c.l.b16 %v422
      %v680 = vunpack.c.h.b16 %v422
      %v681 = vunpack.c.l.b16 %v423
      %v682 = vunpack.c.h.b16 %v423
      %v683 = vunpack.c.l.b16 %v424
      %v684 = vunpack.c.h.b16 %v424
      %v685 = vunpack.c.l.b16 %v425
      %v686 = vunpack.c.h.b16 %v425
      %v687 = vunpack.c.l.b16 %v426
      %v688 = vunpack.c.h.b16 %v426
      %v689 = vunpack.c.l.b16 %v427
      %v690 = vunpack.c.h.b16 %v427
      %v691 = vunpack.c.l.b16 %v428
      %v692 = vunpack.c.h.b16 %v428
      %v693 = vunpack.c.l.b16 %v429
      %v694 = vunpack.c.h.b16 %v429
      %v695 = vunpack.c.l.b16 %v430
      %v696 = vunpack.c.h.b16 %v430
      %v697 = vunpack.c.l.b16 %v431
      %v698 = vunpack.c.h.b16 %v431
      %v699 = vunpack.c.l.b16 %v432
      %v700 = vunpack.c.h.b16 %v432
      %v701 = vunpack.c.l.b16 %v433
      %v702 = vunpack.c.h.b16 %v433
      %v703 = vunpack.c.l.b16 %v434
      %v704 = vunpack.c.h.b16 %v434
      %v705 = vunpack.c.l.b16 %v435
      %v706 = vunpack.c.h.b16 %v435
      %v707 = vunpack.c.l.b16 %v436
      %v708 = vunpack.c.h.b16 %v436
      %v709 = vunpack.c.l.b16 %v437
      %v710 = vunpack.c.h.b16 %v437
      %v711 = vunpack.c.l.b16 %v438
      %v712 = vunpack.c.h.b16 %v438
      %v713 = vunpack.c.l.b16 %v439
      %v714 = vunpack.c.h.b16 %v439
      %v715 = vunpack.c.l.b16 %v440
      %v716 = vunpack.c.h.b16 %v440
      %v717 = vunpack.c.l.b16 %v441
      %v718 = vunpack.c.h.b16 %v441
      %v719 = vunpack.c.l.b16 %v442
      %v720 = vunpack.c.h.b16 %v442
      %v721 = vunpack.c.l.b16 %v443
      %v722 = vunpack.c.h.b16 %v443
      %v723 = vunpack.c.l.b16 %v444
      %v724 = vunpack.c.h.b16 %v444
      %v725 = vunpack.c.l.b16 %v445
      %v726 = vunpack.c.h.b16 %v445
      %v727 = vpack.c.b16 %v685, %v679
      %v728 = vpack.c.b16 %v686, %v680
      %v729 = vpack.c.b16 %v687, %v681
      %v730 = vpack.c.b16 %v688, %v682
      %v731 = vpack.c.b16 %v689, %v683
      %v732 = vpack.c.b16 %v690, %v684
      %v733 = vpack.c.b16 %v697, %v691
      %v734 = vpack.c.b16 %v698, %v692
      %v735 = vpack.c.b16 %v699, %v693
      %v736 = vpack.c.b16 %v700, %v694
      %v737 = vpack.c.b16 %v701, %v695
      %v738 = vpack.c.b16 %v702, %v696
      %v739 = vpack.c.b16 %v709, %v703
      %v740 = vpack.c.b16 %v710, %v704
      %v741 = vpack.c.b16 %v711, %v705
      %v742 = vpack.c.b16 %v712, %v706
      %v743 = vpack.c.b16 %v713, %v707
      %v744 = vpack.c.b16 %v714, %v708
      %v745 = vpack.c.b16 %v721, %v715
      %v746 = vpack.c.b16 %v722, %v716
      %v747 = vpack.c.b16 %v723, %v717
      %v748 = vpack.c.b16 %v724, %v718
      %v749 = vpack.c.b16 %v725, %v719
      %v750 = vpack.c.b16 %v726, %v720
      %v967 = vunpack.c.l.b16 %v446
      %v968 = vunpack.c.h.b16 %v446
      %v969 = vunpack.c.l.b16 %v447
      %v970 = vunpack.c.l.b16 %v448
      %v971 = vunpack.c.h.b16 %v448
      %v972 = vunpack.c.l.b16 %v449
      %v973 = vunpack.c.l.b16 %v450
      %v974 = vunpack.c.h.b16 %v450
      %v975 = vunpack.c.l.b16 %v451
      %v976 = vunpack.c.l.b16 %v452
      %v977 = vunpack.c.h.b16 %v452
      %v978 = vunpack.c.l.b16 %v453
      %v979 = vunpack.c.l.b16 %v454
      %v980 = vunpack.c.h.b16 %v454
      %v981 = vunpack.c.l.b16 %v455
      %v982 = vunpack.c.l.b16 %v456
      %v983 = vunpack.c.h.b16 %v456
      %v984 = vunpack.c.l.b16 %v457
      %v985 = vunpack.c.l.b16 %v458
      %v986 = vunpack.c.h.b16 %v458
      %v987 = vunpack.c.l.b16 %v459
      %v988 = vunpack.c.l.b16 %v460
      %v989 = vunpack.c.h.b16 %v460
      %v990 = vunpack.c.l.b16 %v461
      %v991 = vunpack.c.l.b16 %v462
      %v992 = vunpack.c.h.b16 %v462
      %v993 = vunpack.c.l.b16 %v463
      %v994 = vunpack.c.l.b16 %v464
      %v995 = vunpack.c.h.b16 %v464
      %v996 = vunpack.c.l.b16 %v465
      %v997 = vunpack.c.l.b16 %v466
      %v998 = vunpack.c.h.b16 %v466
      %v999 = vunpack.c.l.b16 %v467
      %v1000 = vunpack.c.l.b16 %v468
      %v1001 = vunpack.c.h.b16 %v468
      %v1002 = vunpack.c.l.b16 %v469
      %v1003 = vunpack.c.l.b16 %v470
      %v1004 = vunpack.c.h.b16 %v470
      %v1005 = vunpack.c.l.b16 %v471
      %v1006 = vunpack.c.l.b16 %v472
      %v1007 = vunpack.c.h.b16 %v472
      %v1008 = vunpack.c.l.b16 %v473
      %v1009 = vunpack.c.l.b16 %v474
      %v1010 = vunpack.c.h.b16 %v474
      %v1011 = vunpack.c.l.b16 %v475
      %v1012 = vunpack.c.l.b16 %v476
      %v1013 = vunpack.c.h.b16 %v476
      %v1014 = vunpack.c.l.b16 %v477
      %v1015 = vunpack.c.l.b16 %v478
      %v1016 = vunpack.c.h.b16 %v478
      %v1017 = vunpack.c.l.b16 %v479
      %v1018 = vunpack.c.l.b16 %v480
      %v1019 = vunpack.c.h.b16 %v480
      %v1020 = vunpack.c.l.b16 %v481
      %v1021 = vunpack.c.l.b16 %v482
      %v1022 = vunpack.c.h.b16 %v482
      %v1023 = vunpack.c.l.b16 %v483
      %v1024 = vunpack.c.l.b16 %v484
      %v1025 = vunpack.c.h.b16 %v484
      %v1026 = vunpack.c.l.b16 %v485
      %v1027 = vunpack.c.l.b16 %v486
      %v1028 = vunpack.c.h.b16 %v486
      %v1029 = vunpack.c.l.b16 %v487
      %v1030 = vunpack.c.l.b16 %v488
      %v1031 = vunpack.c.h.b16 %v488
      %v1032 = vunpack.c.l.b16 %v489
      %v1033 = vunpack.c.l.b16 %v490
      %v1034 = vunpack.c.h.b16 %v490
      %v1035 = vunpack.c.l.b16 %v491
      %v1036 = vunpack.c.l.b16 %v492
      %v1037 = vunpack.c.h.b16 %v492
      %v1038 = vunpack.c.l.b16 %v493
      %v1039 = vunpack.c.l.b16 %v494
      %v1040 = vunpack.c.h.b16 %v494
      %v1041 = vunpack.c.l.b16 %v495
      %v1042 = vunpack.c.l.b16 %v496
      %v1043 = vunpack.c.h.b16 %v496
      %v1044 = vunpack.c.l.b16 %v497
      %v1045 = vunpack.c.l.b16 %v498
      %v1046 = vunpack.c.h.b16 %v498
      %v1047 = vunpack.c.l.b16 %v499
      %v1048 = vunpack.c.l.b16 %v500
      %v1049 = vunpack.c.h.b16 %v500
      %v1050 = vunpack.c.l.b16 %v501
      %v1051 = vunpack.c.l.b16 %v502
      %v1052 = vunpack.c.h.b16 %v502
      %v1053 = vunpack.c.l.b16 %v503
      %v1054 = vunpack.c.l.b16 %v504
      %v1055 = vunpack.c.h.b16 %v504
      %v1056 = vunpack.c.l.b16 %v505
      %v1057 = vunpack.c.l.b16 %v506
      %v1058 = vunpack.c.h.b16 %v506
      %v1059 = vunpack.c.l.b16 %v507
      %v1060 = vunpack.c.l.b16 %v508
      %v1061 = vunpack.c.h.b16 %v508
      %v1062 = vunpack.c.l.b16 %v509
      %v1063 = vunpack.c.l.b16 %v510
      %v1064 = vunpack.c.h.b16 %v510
      %v1065 = vunpack.c.l.b16 %v511
      %v1066 = vunpack.c.l.b16 %v512
      %v1067 = vunpack.c.h.b16 %v512
      %v1068 = vunpack.c.l.b16 %v513
      %v1069 = vunpack.c.l.b16 %v514
      %v1070 = vunpack.c.h.b16 %v514
      %v1071 = vunpack.c.l.b16 %v515
      %v1072 = vunpack.c.l.b16 %v516
      %v1073 = vunpack.c.h.b16 %v516
      %v1074 = vunpack.c.l.b16 %v517
      %v1075 = vunpack.c.l.b16 %v518
      %v1076 = vunpack.c.h.b16 %v518
      %v1077 = vunpack.c.l.b16 %v519
      %v1078 = vunpack.c.l.b16 %v520
      %v1079 = vunpack.c.h.b16 %v520
      %v1080 = vunpack.c.l.b16 %v521
      %v1081 = vunpack.c.l.b16 %v522
      %v1082 = vunpack.c.h.b16 %v522
      %v1083 = vunpack.c.l.b16 %v523
      %v1084 = vunpack.c.l.b16 %v524
      %v1085 = vunpack.c.h.b16 %v524
      %v1086 = vunpack.c.l.b16 %v525
      %v1087 = vunpack.c.l.b16 %v526
      %v1088 = vunpack.c.h.b16 %v526
      %v1089 = vunpack.c.l.b16 %v527
      %v1090 = vunpack.c.l.b16 %v528
      %v1091 = vunpack.c.h.b16 %v528
      %v1092 = vunpack.c.l.b16 %v529
      %v1093 = vunpack.c.l.b16 %v530
      %v1094 = vunpack.c.h.b16 %v530
      %v1095 = vunpack.c.l.b16 %v531
      %v1096 = vunpack.c.l.b16 %v532
      %v1097 = vunpack.c.h.b16 %v532
      %v1098 = vunpack.c.l.b16 %v533
      %v1099 = vunpack.c.l.b16 %v534
      %v1100 = vunpack.c.h.b16 %v534
      %v1101 = vunpack.c.l.b16 %v535
      %v1102 = vunpack.c.l.b16 %v536
      %v1103 = vunpack.c.h.b16 %v536
      %v1104 = vunpack.c.l.b16 %v537
      %v1105 = vunpack.c.l.b16 %v538
      %v1106 = vunpack.c.h.b16 %v538
      %v1107 = vunpack.c.l.b16 %v539
      %v1108 = vunpack.c.l.b16 %v540
      %v1109 = vunpack.c.h.b16 %v540
      %v1110 = vunpack.c.l.b16 %v541
      %v1111 = vunpack.c.l.b16 %v542
      %v1112 = vunpack.c.h.b16 %v542
      %v1113 = vunpack.c.l.b16 %v543
      %v1114 = vunpack.c.l.b16 %v544
      %v1115 = vunpack.c.h.b16 %v544
      %v1116 = vunpack.c.l.b16 %v545
      %v1117 = vunpack.c.l.b16 %v546
      %v1118 = vunpack.c.h.b16 %v546
      %v1119 = vunpack.c.l.b16 %v547
      %v1120 = vunpack.c.l.b16 %v548
      %v1121 = vunpack.c.h.b16 %v548
      %v1122 = vunpack.c.l.b16 %v549
      %v1123 = vunpack.c.l.b16 %v550
      %v1124 = vunpack.c.h.b16 %v550
      %v1125 = vunpack.c.l.b16 %v551
      %v1126 = vunpack.c.l.b16 %v552
      %v1127 = vunpack.c.h.b16 %v552
      %v1128 = vunpack.c.l.b16 %v553
      %v1129 = vunpack.c.l.b16 %v554
      %v1130 = vunpack.c.h.b16 %v554
      %v1131 = vunpack.c.l.b16 %v555
      %v1132 = vunpack.c.l.b16 %v556
      %v1133 = vunpack.c.h.b16 %v556
      %v1134 = vunpack.c.l.b16 %v557
      %v1135 = vunpack.c.l.b16 %v558
      %v1136 = vunpack.c.h.b16 %v558
      %v1137 = vunpack.c.l.b16 %v559
      %v1138 = vunpack.c.l.b16 %v560
      %v1139 = vunpack.c.h.b16 %v560
      %v1140 = vunpack.c.l.b16 %v561
      %v1141 = vunpack.c.l.b16 %v562
      %v1142 = vunpack.c.h.b16 %v562
      %v1143 = vunpack.c.l.b16 %v563
      %v1144 = vunpack.c.l.b16 %v564
      %v1145 = vunpack.c.h.b16 %v564
      %v1146 = vunpack.c.l.b16 %v565
      %v1147 = vunpack.c.l.b16 %v566
      %v1148 = vunpack.c.h.b16 %v566
      %v1149 = vunpack.c.l.b16 %v567
      %v1150 = vunpack.c.l.b16 %v568
      %v1151 = vunpack.c.h.b16 %v568
      %v1152 = vunpack.c.l.b16 %v569
      %v1153 = vunpack.c.l.b16 %v570
      %v1154 = vunpack.c.h.b16 %v570
      %v1155 = vunpack.c.l.b16 %v571
      %v1156 = vunpack.c.l.b16 %v572
      %v1157 = vunpack.c.h.b16 %v572
      %v1158 = vunpack.c.l.b16 %v573
      %v1159 = vunpack.c.l.b16 %v574
      %v1160 = vunpack.c.h.b16 %v574
      %v1161 = vunpack.c.l.b16 %v575
      %v1162 = vunpack.c.l.b16 %v576
      %v1163 = vunpack.c.h.b16 %v576
      %v1164 = vunpack.c.l.b16 %v577
      %v1165 = vunpack.c.l.b16 %v578
      %v1166 = vunpack.c.h.b16 %v578
      %v1167 = vunpack.c.l.b16 %v579
      %v1168 = vunpack.c.l.b16 %v580
      %v1169 = vunpack.c.h.b16 %v580
      %v1170 = vunpack.c.l.b16 %v581
      %v1171 = vunpack.c.l.b16 %v582
      %v1172 = vunpack.c.h.b16 %v582
      %v1173 = vunpack.c.l.b16 %v583
      %v1174 = vunpack.c.l.b16 %v584
      %v1175 = vunpack.c.h.b16 %v584
      %v1176 = vunpack.c.l.b16 %v585
      %v1177 = vunpack.c.l.b16 %v586
      %v1178 = vunpack.c.h.b16 %v586
      %v1179 = vunpack.c.l.b16 %v587
      %v1180 = vunpack.c.l.b16 %v588
      %v1181 = vunpack.c.h.b16 %v588
      %v1182 = vunpack.c.l.b16 %v589
      %v1183 = vunpack.c.l.b16 %v590
      %v1184 = vunpack.c.h.b16 %v590
      %v1185 = vunpack.c.l.b16 %v591
      %v1186 = vunpack.c.l.b16 %v592
      %v1187 = vunpack.c.h.b16 %v592
      %v1188 = vunpack.c.l.b16 %v593
      %v1189 = vunpack.c.l.b16 %v594
      %v1190 = vunpack.c.h.b16 %v594
      %v1191 = vunpack.c.l.b16 %v595
      %v1192 = vunpack.c.l.b16 %v596
      %v1193 = vunpack.c.h.b16 %v596
      %v1194 = vunpack.c.l.b16 %v597
      %v1195 = vunpack.c.l.b16 %v598
      %v1196 = vunpack.c.h.b16 %v598
      %v1197 = vunpack.c.l.b16 %v599
      %v1198 = vunpack.c.l.b16 %v600
      %v1199 = vunpack.c.h.b16 %v600
      %v1200 = vunpack.c.l.b16 %v601
      %v1201 = vunpack.c.l.b16 %v602
      %v1202 = vunpack.c.h.b16 %v602
      %v1203 = vunpack.c.l.b16 %v603
      %v1204 = vunpack.c.l.b16 %v604
      %v1205 = vunpack.c.h.b16 %v604
      %v1206 = vunpack.c.l.b16 %v605
      %v1207 = vunpack.c.l.b16 %v606
      %v1208 = vunpack.c.h.b16 %v606
      %v1209 = vunpack.c.l.b16 %v607
      %v1210 = vunpack.c.l.b16 %v608
      %v1211 = vunpack.c.h.b16 %v608
      %v1212 = vunpack.c.l.b16 %v609
      %v1213 = vunpack.c.l.b16 %v610
      %v1214 = vunpack.c.h.b16 %v610
      %v1215 = vunpack.c.l.b16 %v611
      %v1216 = vunpack.c.l.b16 %v612
      %v1217 = vunpack.c.h.b16 %v612
      %v1218 = vunpack.c.l.b16 %v613
      %v1219 = vunpack.c.l.b16 %v614
      %v1220 = vunpack.c.h.b16 %v614
      %v1221 = vunpack.c.l.b16 %v615
      %v1222 = vunpack.c.l.b16 %v616
      %v1223 = vunpack.c.h.b16 %v616
      %v1224 = vunpack.c.l.b16 %v617
      %v1225 = vunpack.c.l.b16 %v618
      %v1226 = vunpack.c.h.b16 %v618
      %v1227 = vunpack.c.l.b16 %v619
      %v1228 = vunpack.c.l.b16 %v620
      %v1229 = vunpack.c.h.b16 %v620
      %v1230 = vunpack.c.l.b16 %v621
      %v1231 = vunpack.c.l.b16 %v622
      %v1232 = vunpack.c.h.b16 %v622
      %v1233 = vunpack.c.l.b16 %v623
      %v1234 = vunpack.c.l.b16 %v624
      %v1235 = vunpack.c.h.b16 %v624
      %v1236 = vunpack.c.l.b16 %v625
      %v1237 = vunpack.c.l.b16 %v626
      %v1238 = vunpack.c.h.b16 %v626
      %v1239 = vunpack.c.l.b16 %v627
      %v1240 = vunpack.c.l.b16 %v628
      %v1241 = vunpack.c.h.b16 %v628
      %v1242 = vunpack.c.l.b16 %v629
      %v1243 = vunpack.c.l.b16 %v630
      %v1244 = vunpack.c.h.b16 %v630
      %v1245 = vunpack.c.l.b16 %v631
      %v1246 = vunpack.c.l.b16 %v632
      %v1247 = vunpack.c.h.b16 %v632
      %v1248 = vunpack.c.l.b16 %v633
      %v1249 = vunpack.c.l.b16 %v634
      %v1250 = vunpack.c.h.b16 %v634
      %v1251 = vunpack.c.l.b16 %v635
      %v1252 = vunpack.c.l.b16 %v636
      %v1253 = vunpack.c.h.b16 %v636
      %v1254 = vunpack.c.l.b16 %v637
      %v1255 = vpack.c.b16 %v970, %v967
      %v1256 = vpack.c.b16 %v971, %v968
      %v1257 = vpack.c.b16 %v972, %v969
      %v1258 = vpack.c.b16 %v976, %v973
      %v1259 = vpack.c.b16 %v977, %v974
      %v1260 = vpack.c.b16 %v978, %v975
      %v1261 = vpack.c.b16 %v982, %v979
      %v1262 = vpack.c.b16 %v983, %v980
      %v1263 = vpack.c.b16 %v984, %v981
      %v1264 = vpack.c.b16 %v988, %v985
      %v1265 = vpack.c.b16 %v989, %v986
      %v1266 = vpack.c.b16 %v990, %v987
      %v1267 = vpack.c.b16 %v994, %v991
      %v1268 = vpack.c.b16 %v995, %v992
      %v1269 = vpack.c.b16 %v996, %v993
      %v1270 = vpack.c.b16 %v1000, %v997
      %v1271 = vpack.c.b16 %v1001, %v998
      %v1272 = vpack.c.b16 %v1002, %v999
      %v1273 = vpack.c.b16 %v1006, %v1003
      %v1274 = vpack.c.b16 %v1007, %v1004
      %v1275 = vpack.c.b16 %v1008, %v1005
      %v1276 = vpack.c.b16 %v1012, %v1009
      %v1277 = vpack.c.b16 %v1013, %v1010
      %v1278 = vpack.c.b16 %v1014, %v1011
      %v1279 = vpack.c.b16 %v1018, %v1015
      %v1280 = vpack.c.b16 %v1019, %v1016
      %v1281 = vpack.c.b16 %v1020, %v1017
      %v1282 = vpack.c.b16 %v1024, %v1021
      %v1283 = vpack.c.b16 %v1025, %v1022
      %v1284 = vpack.c.b16 %v1026, %v1023
      %v1285 = vpack.c.b16 %v1030, %v1027
      %v1286 = vpack.c.b16 %v1031, %v1028
      %v1287 = vpack.c.b16 %v1032, %v1029
      %v1288 = vpack.c.b16 %v1036, %v1033
      %v1289 = vpack.c.b16 %v1037, %v1034
      %v1290 = vpack.c.b16 %v1038, %v1035
      %v1291 = vpack.c.b16 %v1042, %v1039
      %v1292 = vpack.c.b16 %v1043, %v1040
      %v1293 = vpack.c.b16 %v1044, %v1041
      %v1294 = vpack.c.b16 %v1048, %v1045
      %v1295 = vpack.c.b16 %v1049, %v1046
      %v1296 = vpack.c.b16 %v1050, %v1047
      %v1297 = vpack.c.b16 %v1054, %v1051
      %v1298 = vpack.c.b16 %v1055, %v1052
      %v1299 = vpack.c.b16 %v1056, %v1053
      %v1300 = vpack.c.b16 %v1060, %v1057
      %v1301 = vpack.c.b16 %v1061, %v1058
      %v1302 = vpack.c.b16 %v1062, %v1059
      %v1303 = vpack.c.b16 %v1066, %v1063
      %v1304 = vpack.c.b16 %v1067, %v1064
      %v1305 = vpack.c.b16 %v1068, %v1065
      %v1306 = vpack.c.b16 %v1072, %v1069
      %v1307 = vpack.c.b16 %v1073, %v1070
      %v1308 = vpack.c.b16 %v1074, %v1071
      %v1309 = vpack.c.b16 %v1078, %v1075
      %v1310 = vpack.c.b16 %v1079, %v1076
      %v1311 = vpack.c.b16 %v1080, %v1077
      %v1312 = vpack.c.b16 %v1084, %v1081
      %v1313 = vpack.c.b16 %v1085, %v1082
      %v1314 = vpack.c.b16 %v1086, %v1083
      %v1315 = vpack.c.b16 %v1090, %v1087
      %v1316 = vpack.c.b16 %v1091, %v1088
      %v1317 = vpack.c.b16 %v1092, %v1089
      %v1318 = vpack.c.b16 %v1096, %v1093
      %v1319 = vpack.c.b16 %v1097, %v1094
      %v1320 = vpack.c.b16 %v1098, %v1095
      %v1321 = vpack.c.b16 %v1102, %v1099
      %v1322 = vpack.c.b16 %v1103, %v1100
      %v1323 = vpack.c.b16 %v1104, %v1101
      %v1324 = vpack.c.b16 %v1108, %v1105
      %v1325 = vpack.c.b16 %v1109, %v1106
      %v1326 = vpack.c.b16 %v1110, %v1107
      %v1327 = vpack.c.b16 %v1114, %v1111
      %v1328 = vpack.c.b16 %v1115, %v1112
      %v1329 = vpack.c.b16 %v1116, %v1113
      %v1330 = vpack.c.b16 %v1120, %v1117
      %v1331 = vpack.c.b16 %v1121, %v1118
      %v1332 = vpack.c.b16 %v1122, %v1119
      %v1333 = vpack.c.b16 %v1126, %v1123
      %v1334 = vpack.c.b16 %v1127, %v1124
      %v1335 = vpack.c.b16 %v1128, %v1125
      %v1336 = vpack.c.b16 %v1132, %v1129
      %v1337 = vpack.c.b16 %v1133, %v1130
      %v1338 = vpack.c.b16 %v1134, %v1131
      %v1339 = vpack.c.b16 %v1138, %v1135
      %v1340 = vpack.c.b16 %v1139, %v1136
      %v1341 = vpack.c.b16 %v1140, %v1137
      %v1342 = vpack.c.b16 %v1144, %v1141
      %v1343 = vpack.c.b16 %v1145, %v1142
      %v1344 = vpack.c.b16 %v1146, %v1143
      %v1345 = vpack.c.b16 %v1150, %v1147
      %v1346 = vpack.c.b16 %v1151, %v1148
      %v1347 = vpack.c.b16 %v1152, %v1149
      %v1348 = vpack.c.b16 %v1156, %v1153
      %v1349 = vpack.c.b16 %v1157, %v1154
      %v1350 = vpack.c.b16 %v1158, %v1155
      %v1351 = vpack.c.b16 %v1162, %v1159
      %v1352 = vpack.c.b16 %v1163, %v1160
      %v1353 = vpack.c.b16 %v1164, %v1161
      %v1354 = vpack.c.b16 %v1168, %v1165
      %v1355 = vpack.c.b16 %v1169, %v1166
      %v1356 = vpack.c.b16 %v1170, %v1167
      %v1357 = vpack.c.b16 %v1174, %v1171
      %v1358 = vpack.c.b16 %v1175, %v1172
      %v1359 = vpack.c.b16 %v1176, %v1173
      %v1360 = vpack.c.b16 %v1180, %v1177
      %v1361 = vpack.c.b16 %v1181, %v1178
      %v1362 = vpack.c.b16 %v1182, %v1179
      %v1363 = vpack.c.b16 %v1186, %v1183
      %v1364 = vpack.c.b16 %v1187, %v1184
      %v1365 = vpack.c.b16 %v1188, %v1185
      %v1366 = vpack.c.b16 %v1192, %v1189
      %v1367 = vpack.c.b16 %v1193, %v1190
      %v1368 = vpack.c.b16 %v1194, %v1191
      %v1369 = vpack.c.b16 %v1198, %v1195
      %v1370 = vpack.c.b16 %v1199, %v1196
      %v1371 = vpack.c.b16 %v1200, %v1197
      %v1372 = vpack.c.b16 %v1204, %v1201
      %v1373 = vpack.c.b16 %v1205, %v1202
      %v1374 = vpack.c.b16 %v1206, %v1203
      %v1375 = vpack.c.b16 %v1210, %v1207
      %v1376 = vpack.c.b16 %v1211, %v1208
      %v1377 = vpack.c.b16 %v1212, %v1209
      %v1378 = vpack.c.b16 %v1216, %v1213
      %v1379 = vpack.c.b16 %v1217, %v1214
      %v1380 = vpack.c.b16 %v1218, %v1215
      %v1381 = vpack.c.b16 %v1222, %v1219
      %v1382 = vpack.c.b16 %v1223, %v1220
      %v1383 = vpack.c.b16 %v1224, %v1221
      %v1384 = vpack.c.b16 %v1228, %v1225
      %v1385 = vpack.c.b16 %v1229, %v1226
      %v1386 = vpack.c.b16 %v1230, %v1227
      %v1387 = vpack.c.b16 %v1234, %v1231
      %v1388 = vpack.c.b16 %v1235, %v1232
      %v1389 = vpack.c.b16 %v1236, %v1233
      %v1390 = vpack.c.b16 %v1240, %v1237
      %v1391 = vpack.c.b16 %v1241, %v1238
      %v1392 = vpack.c.b16 %v1242, %v1239
      %v1393 = vpack.c.b16 %v1246, %v1243
      %v1394 = vpack.c.b16 %v1247, %v1244
      %v1395 = vpack.c.b16 %v1248, %v1245
      %v1396 = vpack.c.b16 %v1252, %v1249
      %v1397 = vpack.c.b16 %v1253, %v1250
      %v1398 = vpack.c.b16 %v1254, %v1251
      %1543 = vmatprep.subr.bf16.mxu0 %v1256
      %1544 = vmatpush1.bf16.msra.mxu0 %v1255
      %1545 = vmatprep.subr.bf16.mxu0 %v1259
      %1546 = vmatpush1.bf16.msra.mxu0 %v1258
      %1547 = vmatprep.subr.bf16.mxu0 %v1262
      %1548 = vmatpush1.bf16.msra.mxu0 %v1261
      %1549 = vmatprep.subr.bf16.mxu0 %v1265
      %1550 = vmatpush1.bf16.msra.mxu0 %v1264
      %1551 = vmatprep.subr.bf16.mxu0 %v1268
      %1552 = vmatpush1.bf16.msra.mxu0 %v1267
      %1553 = vmatprep.subr.bf16.mxu0 %v1271
      %1554 = vmatpush1.bf16.msra.mxu0 %v1270
      %1555 = vmatprep.subr.bf16.mxu0 %v1274
      %1556 = vmatpush1.bf16.msra.mxu0 %v1273
      %1557 = vmatprep.subr.bf16.mxu0 %v1277
      %1558 = vmatpush1.bf16.msra.mxu0 %v1276
      %1559 = vmatprep.subr.bf16.mxu0 %v1280
      %1560 = vmatpush1.bf16.msra.mxu0 %v1279
      %1561 = vmatprep.subr.bf16.mxu0 %v1283
      %1562 = vmatpush1.bf16.msra.mxu0 %v1282
      %1563 = vmatprep.subr.bf16.mxu0 %v1286
      %1564 = vmatpush1.bf16.msra.mxu0 %v1285
      %1565 = vmatprep.subr.bf16.mxu0 %v1289
      %1566 = vmatpush1.bf16.msra.mxu0 %v1288
      %1567 = vmatprep.subr.bf16.mxu0 %v1292
      %1568 = vmatpush1.bf16.msra.mxu0 %v1291
      %1569 = vmatprep.subr.bf16.mxu0 %v1295
      %1570 = vmatpush1.bf16.msra.mxu0 %v1294
      %1571 = vmatprep.subr.bf16.mxu0 %v1298
      %1572 = vmatpush1.bf16.msra.mxu0 %v1297
      %1573 = vmatprep.subr.bf16.mxu0 %v1301
      %1574 = vmatpush1.bf16.msra.mxu0 %v1300
      %1575 = vmatprep.mubr.bf16.mxu0 %v728
      %1576 = vmatmul.mubr.bf16.gmra.mrb[0].mxu0 %v727
      %v1577 = vpop.f32.mrb[0].mxu0
      %v1578 = vadd.f32 %v643, %v1577
      %v1579 = vpop.f32.mrb[0].mxu0
      %v1580 = vadd.f32 %v647, %v1579
      %v1581 = vpop.f32.mrb[0].mxu0
      %v1582 = vadd.f32 %v643, %v1581
      %v1583 = vpop.f32.mrb[0].mxu0
      %v1584 = vadd.f32 %v647, %v1583
      %1585 = vmatprep.mubr.bf16.mxu0 %v734
      %1586 = vmatmul.mubr.bf16.gmra.mrb[0].mxu0 %v733
      %v1587 = vpop.f32.mrb[0].mxu0
      %v1588 = vadd.f32 %v643, %v1587
      %v1589 = vpop.f32.mrb[0].mxu0
      %v1590 = vadd.f32 %v647, %v1589
      %v1591 = vpop.f32.mrb[0].mxu0
      %v1592 = vadd.f32 %v643, %v1591
      %v1593 = vpop.f32.mrb[0].mxu0
      %v1594 = vadd.f32 %v647, %v1593
      %1595 = vmatprep.mubr.bf16.mxu0 %v740
      %1596 = vmatmul.mubr.bf16.gmra.mrb[0].mxu0 %v739
      %v1597 = vpop.f32.mrb[0].mxu0
      %v1598 = vadd.f32 %v643, %v1597
      %v1599 = vpop.f32.mrb[0].mxu0
      %v1600 = vadd.f32 %v647, %v1599
      %v1601 = vpop.f32.mrb[0].mxu0
      %v1602 = vadd.f32 %v643, %v1601
      %v1603 = vpop.f32.mrb[0].mxu0
      %v1604 = vadd.f32 %v647, %v1603
      %1605 = vmatprep.mubr.bf16.mxu0 %v746
      %1606 = vmatmul.mubr.bf16.gmra.mrb[0].mxu0 %v745
      %v1607 = vpop.f32.mrb[0].mxu0
      %v1608 = vadd.f32 %v643, %v1607
      %v1609 = vpop.f32.mrb[0].mxu0
      %v1610 = vadd.f32 %v647, %v1609
      %v1611 = vpop.f32.mrb[0].mxu0
      %v1612 = vadd.f32 %v643, %v1611
      %v1613 = vpop.f32.mrb[0].mxu0
      %v1614 = vadd.f32 %v647, %v1613
      %1615 = vdwg.mxu0
      %1616 = vmatprep.subr.bf16.mxu0 %v1304
      %1617 = vmatpush1.bf16.msra.mxu0 %v1303
      %1618 = vmatprep.subr.bf16.mxu0 %v1307
      %1619 = vmatpush1.bf16.msra.mxu0 %v1306
      %1620 = vmatprep.subr.bf16.mxu0 %v1310
      %1621 = vmatpush1.bf16.msra.mxu0 %v1309
      %1622 = vmatprep.subr.bf16.mxu0 %v1313
      %1623 = vmatpush1.bf16.msra.mxu0 %v1312
      %1624 = vmatprep.subr.bf16.mxu0 %v1316
      %1625 = vmatpush1.bf16.msra.mxu0 %v1315
      %1626 = vmatprep.subr.bf16.mxu0 %v1319
      %1627 = vmatpush1.bf16.msra.mxu0 %v1318
      %1628 = vmatprep.subr.bf16.mxu0 %v1322
      %1629 = vmatpush1.bf16.msra.mxu0 %v1321
      %1630 = vmatprep.subr.bf16.mxu0 %v1325
      %1631 = vmatpush1.bf16.msra.mxu0 %v1324
      %1632 = vmatprep.subr.bf16.mxu0 %v1328
      %1633 = vmatpush1.bf16.msra.mxu0 %v1327
      %1634 = vmatprep.subr.bf16.mxu0 %v1331
      %1635 = vmatpush1.bf16.msra.mxu0 %v1330
      %1636 = vmatprep.subr.bf16.mxu0 %v1334
      %1637 = vmatpush1.bf16.msra.mxu0 %v1333
      %1638 = vmatprep.subr.bf16.mxu0 %v1337
      %1639 = vmatpush1.bf16.msra.mxu0 %v1336
      %1640 = vmatprep.subr.bf16.mxu0 %v1340
      %1641 = vmatpush1.bf16.msra.mxu0 %v1339
      %1642 = vmatprep.subr.bf16.mxu0 %v1343
      %1643 = vmatpush1.bf16.msra.mxu0 %v1342
      %1644 = vmatprep.subr.bf16.mxu0 %v1346
      %1645 = vmatpush1.bf16.msra.mxu0 %v1345
      %1646 = vmatprep.subr.bf16.mxu0 %v1349
      %1647 = vmatpush1.bf16.msra.mxu0 %v1348
      %1648 = vmatprep.mubr.bf16.mxu0 %v730
      %1649 = vmatmul.mubr.bf16.gmra.mrb[0].mxu0 %v729
      %v1650 = vpop.f32.mrb[0].mxu0
      %v1651 = vadd.f32 %v1578, %v1650
      %v1652 = vpop.f32.mrb[0].mxu0
      %v1653 = vadd.f32 %v1580, %v1652
      %v1654 = vpop.f32.mrb[0].mxu0
      %v1655 = vadd.f32 %v1582, %v1654
      %v1656 = vpop.f32.mrb[0].mxu0
      %v1657 = vadd.f32 %v1584, %v1656
      %1658 = vmatprep.mubr.bf16.mxu0 %v736
      %1659 = vmatmul.mubr.bf16.gmra.mrb[0].mxu0 %v735
      %v1660 = vpop.f32.mrb[0].mxu0
      %v1661 = vadd.f32 %v1588, %v1660
      %v1662 = vpop.f32.mrb[0].mxu0
      %v1663 = vadd.f32 %v1590, %v1662
      %v1664 = vpop.f32.mrb[0].mxu0
      %v1665 = vadd.f32 %v1592, %v1664
      %v1666 = vpop.f32.mrb[0].mxu0
      %v1667 = vadd.f32 %v1594, %v1666
      %1668 = vmatprep.mubr.bf16.mxu0 %v742
      %1669 = vmatmul.mubr.bf16.gmra.mrb[0].mxu0 %v741
      %v1670 = vpop.f32.mrb[0].mxu0
      %v1671 = vadd.f32 %v1598, %v1670
      %v1672 = vpop.f32.mrb[0].mxu0
      %v1673 = vadd.f32 %v1600, %v1672
      %v1674 = vpop.f32.mrb[0].mxu0
      %v1675 = vadd.f32 %v1602, %v1674
      %v1676 = vpop.f32.mrb[0].mxu0
      %v1677 = vadd.f32 %v1604, %v1676
      %1678 = vmatprep.mubr.bf16.mxu0 %v748
      %1679 = vmatmul.mubr.bf16.gmra.mrb[0].mxu0 %v747
      %v1680 = vpop.f32.mrb[0].mxu0
      %v1681 = vadd.f32 %v1608, %v1680
      %v1682 = vpop.f32.mrb[0].mxu0
      %v1683 = vadd.f32 %v1610, %v1682
      %v1684 = vpop.f32.mrb[0].mxu0
      %v1685 = vadd.f32 %v1612, %v1684
      %v1686 = vpop.f32.mrb[0].mxu0
      %v1687 = vadd.f32 %v1614, %v1686
      %1688 = vdwg.mxu0
      %1689 = vmatprep.subr.bf16.mxu0 %v1352
      %1690 = vmatpush1.bf16.msra.mxu0 %v1351
      %1691 = vmatprep.subr.bf16.mxu0 %v1355
      %1692 = vmatpush1.bf16.msra.mxu0 %v1354
      %1693 = vmatprep.subr.bf16.mxu0 %v1358
      %1694 = vmatpush1.bf16.msra.mxu0 %v1357
      %1695 = vmatprep.subr.bf16.mxu0 %v1361
      %1696 = vmatpush1.bf16.msra.mxu0 %v1360
      %1697 = vmatprep.subr.bf16.mxu0 %v1364
      %1698 = vmatpush1.bf16.msra.mxu0 %v1363
      %1699 = vmatprep.subr.bf16.mxu0 %v1367
      %1700 = vmatpush1.bf16.msra.mxu0 %v1366
      %1701 = vmatprep.subr.bf16.mxu0 %v1370
      %1702 = vmatpush1.bf16.msra.mxu0 %v1369
      %1703 = vmatprep.subr.bf16.mxu0 %v1373
      %1704 = vmatpush1.bf16.msra.mxu0 %v1372
      %1705 = vmatprep.subr.bf16.mxu0 %v1376
      %1706 = vmatpush1.bf16.msra.mxu0 %v1375
      %1707 = vmatprep.subr.bf16.mxu0 %v1379
      %1708 = vmatpush1.bf16.msra.mxu0 %v1378
      %1709 = vmatprep.subr.bf16.mxu0 %v1382
      %1710 = vmatpush1.bf16.msra.mxu0 %v1381
      %1711 = vmatprep.subr.bf16.mxu0 %v1385
      %1712 = vmatpush1.bf16.msra.mxu0 %v1384
      %1713 = vmatprep.subr.bf16.mxu0 %v1388
      %1714 = vmatpush1.bf16.msra.mxu0 %v1387
      %1715 = vmatprep.subr.bf16.mxu0 %v1391
      %1716 = vmatpush1.bf16.msra.mxu0 %v1390
      %1717 = vmatprep.subr.bf16.mxu0 %v1394
      %1718 = vmatpush1.bf16.msra.mxu0 %v1393
      %1719 = vmatprep.subr.bf16.mxu0 %v1397
      %1720 = vmatpush1.bf16.msra.mxu0 %v1396
      %1721 = vmatprep.mubr.bf16.mxu0 %v732
      %1722 = vmatmul.mubr.bf16.gmra.mrb[0].mxu0 %v731
      %v1723 = vpop.f32.mrb[0].mxu0
      %v1724 = vadd.f32 %v1651, %v1723
      %v1725 = vpop.f32.mrb[0].mxu0
      %v1726 = vadd.f32 %v1653, %v1725
      %v1727 = vpop.f32.mrb[0].mxu0
      %v1728 = vadd.f32 %v1655, %v1727
      %v1729 = vpop.f32.mrb[0].mxu0
      %v1730 = vadd.f32 %v1657, %v1729
      %1731 = vmatprep.mubr.bf16.mxu0 %v738
      %1732 = vmatmul.mubr.bf16.gmra.mrb[0].mxu0 %v737
      %v1733 = vpop.f32.mrb[0].mxu0
      %v1734 = vadd.f32 %v1661, %v1733
      %v1735 = vpop.f32.mrb[0].mxu0
      %v1736 = vadd.f32 %v1663, %v1735
      %v1737 = vpop.f32.mrb[0].mxu0
      %v1738 = vadd.f32 %v1665, %v1737
      %v1739 = vpop.f32.mrb[0].mxu0
      %v1740 = vadd.f32 %v1667, %v1739
      %1741 = vmatprep.mubr.bf16.mxu0 %v744
      %1742 = vmatmul.mubr.bf16.gmra.mrb[0].mxu0 %v743
      %v1743 = vpop.f32.mrb[0].mxu0
      %v1744 = vadd.f32 %v1671, %v1743
      %v1745 = vpop.f32.mrb[0].mxu0
      %v1746 = vadd.f32 %v1673, %v1745
      %v1747 = vpop.f32.mrb[0].mxu0
      %v1748 = vadd.f32 %v1675, %v1747
      %v1749 = vpop.f32.mrb[0].mxu0
      %v1750 = vadd.f32 %v1677, %v1749
      %1751 = vmatprep.mubr.bf16.mxu0 %v750
      %1752 = vmatmul.mubr.bf16.gmra.mrb[0].mxu0 %v749
      %v1753 = vpop.f32.mrb[0].mxu0
      %v1754 = vadd.f32 %v1681, %v1753
      %v1755 = vpop.f32.mrb[0].mxu0
      %v1756 = vadd.f32 %v1683, %v1755
      %v1757 = vpop.f32.mrb[0].mxu0
      %v1758 = vadd.f32 %v1685, %v1757
      %v1759 = vpop.f32.mrb[0].mxu0
      %v1760 = vadd.f32 %v1687, %v1759
      %1761 = vdwg.mxu0
      %1762 = vmatprep.subr.bf16.mxu0 0
      %1763 = vmatpush1.bf16.msra.mxu0 %v1257
      %1764 = vmatprep.subr.bf16.mxu0 0
      %1765 = vmatpush1.bf16.msra.mxu0 %v1260
      %1766 = vmatprep.subr.bf16.mxu0 0
      %1767 = vmatpush1.bf16.msra.mxu0 %v1263
      %1768 = vmatprep.subr.bf16.mxu0 0
      %1769 = vmatpush1.bf16.msra.mxu0 %v1266
      %1770 = vmatprep.subr.bf16.mxu0 0
      %1771 = vmatpush1.bf16.msra.mxu0 %v1269
      %1772 = vmatprep.subr.bf16.mxu0 0
      %1773 = vmatpush1.bf16.msra.mxu0 %v1272
      %1774 = vmatprep.subr.bf16.mxu0 0
      %1775 = vmatpush1.bf16.msra.mxu0 %v1275
      %1776 = vmatprep.subr.bf16.mxu0 0
      %1777 = vmatpush1.bf16.msra.mxu0 %v1278
      %1778 = vmatprep.subr.bf16.mxu0 0
      %1779 = vmatpush1.bf16.msra.mxu0 %v1281
      %1780 = vmatprep.subr.bf16.mxu0 0
      %1781 = vmatpush1.bf16.msra.mxu0 %v1284
      %1782 = vmatprep.subr.bf16.mxu0 0
      %1783 = vmatpush1.bf16.msra.mxu0 %v1287
      %1784 = vmatprep.subr.bf16.mxu0 0
      %1785 = vmatpush1.bf16.msra.mxu0 %v1290
      %1786 = vmatprep.subr.bf16.mxu0 0
      %1787 = vmatpush1.bf16.msra.mxu0 %v1293
      %1788 = vmatprep.subr.bf16.mxu0 0
      %1789 = vmatpush1.bf16.msra.mxu0 %v1296
      %1790 = vmatprep.subr.bf16.mxu0 0
      %1791 = vmatpush1.bf16.msra.mxu0 %v1299
      %1792 = vmatprep.subr.bf16.mxu0 0
      %1793 = vmatpush1.bf16.msra.mxu0 %v1302
      %1794 = vmatprep.mubr.bf16.mxu0 %v728
      %1795 = vmatmul.mubr.bf16.gmra.mrb[0].mxu0 %v727
      %v1796 = vpop.f32.mrb[0].mxu0
      %v1797 = vadd.f32 %v651, %v1796
      %v1798 = vpop.f32.mrb[0].mxu0
      %v1799 = vpop.f32.mrb[0].mxu0
      %v1800 = vadd.f32 %v651, %v1799
      %v1801 = vpop.f32.mrb[0].mxu0
      %1802 = vmatprep.mubr.bf16.mxu0 %v734
      %1803 = vmatmul.mubr.bf16.gmra.mrb[0].mxu0 %v733
      %v1804 = vpop.f32.mrb[0].mxu0
      %v1805 = vadd.f32 %v651, %v1804
      %v1806 = vpop.f32.mrb[0].mxu0
      %v1807 = vpop.f32.mrb[0].mxu0
      %v1808 = vadd.f32 %v651, %v1807
      %v1809 = vpop.f32.mrb[0].mxu0
      %1810 = vmatprep.mubr.bf16.mxu0 %v740
      %1811 = vmatmul.mubr.bf16.gmra.mrb[0].mxu0 %v739
      %v1812 = vpop.f32.mrb[0].mxu0
      %v1813 = vadd.f32 %v651, %v1812
      %v1814 = vpop.f32.mrb[0].mxu0
      %v1815 = vpop.f32.mrb[0].mxu0
      %v1816 = vadd.f32 %v651, %v1815
      %v1817 = vpop.f32.mrb[0].mxu0
      %1818 = vmatprep.mubr.bf16.mxu0 %v746
      %1819 = vmatmul.mubr.bf16.gmra.mrb[0].mxu0 %v745
      %v1820 = vpop.f32.mrb[0].mxu0
      %v1821 = vadd.f32 %v651, %v1820
      %v1822 = vpop.f32.mrb[0].mxu0
      %v1823 = vpop.f32.mrb[0].mxu0
      %v1824 = vadd.f32 %v651, %v1823
      %v1825 = vpop.f32.mrb[0].mxu0
      %1826 = vdwg.mxu0
      %1827 = vmatprep.subr.bf16.mxu0 0
      %1828 = vmatpush1.bf16.msra.mxu0 %v1305
      %1829 = vmatprep.subr.bf16.mxu0 0
      %1830 = vmatpush1.bf16.msra.mxu0 %v1308
      %1831 = vmatprep.subr.bf16.mxu0 0
      %1832 = vmatpush1.bf16.msra.mxu0 %v1311
      %1833 = vmatprep.subr.bf16.mxu0 0
      %1834 = vmatpush1.bf16.msra.mxu0 %v1314
      %1835 = vmatprep.subr.bf16.mxu0 0
      %1836 = vmatpush1.bf16.msra.mxu0 %v1317
      %1837 = vmatprep.subr.bf16.mxu0 0
      %1838 = vmatpush1.bf16.msra.mxu0 %v1320
      %1839 = vmatprep.subr.bf16.mxu0 0
      %1840 = vmatpush1.bf16.msra.mxu0 %v1323
      %1841 = vmatprep.subr.bf16.mxu0 0
      %1842 = vmatpush1.bf16.msra.mxu0 %v1326
      %1843 = vmatprep.subr.bf16.mxu0 0
      %1844 = vmatpush1.bf16.msra.mxu0 %v1329
      %1845 = vmatprep.subr.bf16.mxu0 0
      %1846 = vmatpush1.bf16.msra.mxu0 %v1332
      %1847 = vmatprep.subr.bf16.mxu0 0
      %1848 = vmatpush1.bf16.msra.mxu0 %v1335
      %1849 = vmatprep.subr.bf16.mxu0 0
      %1850 = vmatpush1.bf16.msra.mxu0 %v1338
      %1851 = vmatprep.subr.bf16.mxu0 0
      %1852 = vmatpush1.bf16.msra.mxu0 %v1341
      %1853 = vmatprep.subr.bf16.mxu0 0
      %1854 = vmatpush1.bf16.msra.mxu0 %v1344
      %1855 = vmatprep.subr.bf16.mxu0 0
      %1856 = vmatpush1.bf16.msra.mxu0 %v1347
      %1857 = vmatprep.subr.bf16.mxu0 0
      %1858 = vmatpush1.bf16.msra.mxu0 %v1350
      %1859 = vmatprep.mubr.bf16.mxu0 %v730
      %1860 = vmatmul.mubr.bf16.gmra.mrb[0].mxu0 %v729
      %v1861 = vpop.f32.mrb[0].mxu0
      %v1862 = vadd.f32 %v1797, %v1861
      %v1863 = vpop.f32.mrb[0].mxu0
      %v1864 = vpop.f32.mrb[0].mxu0
      %v1865 = vadd.f32 %v1800, %v1864
      %v1866 = vpop.f32.mrb[0].mxu0
      %1867 = vmatprep.mubr.bf16.mxu0 %v736
      %1868 = vmatmul.mubr.bf16.gmra.mrb[0].mxu0 %v735
      %v1869 = vpop.f32.mrb[0].mxu0
      %v1870 = vadd.f32 %v1805, %v1869
      %v1871 = vpop.f32.mrb[0].mxu0
      %v1872 = vpop.f32.mrb[0].mxu0
      %v1873 = vadd.f32 %v1808, %v1872
      %v1874 = vpop.f32.mrb[0].mxu0
      %1875 = vmatprep.mubr.bf16.mxu0 %v742
      %1876 = vmatmul.mubr.bf16.gmra.mrb[0].mxu0 %v741
      %v1877 = vpop.f32.mrb[0].mxu0
      %v1878 = vadd.f32 %v1813, %v1877
      %v1879 = vpop.f32.mrb[0].mxu0
      %v1880 = vpop.f32.mrb[0].mxu0
      %v1881 = vadd.f32 %v1816, %v1880
      %v1882 = vpop.f32.mrb[0].mxu0
      %1883 = vmatprep.mubr.bf16.mxu0 %v748
      %1884 = vmatmul.mubr.bf16.gmra.mrb[0].mxu0 %v747
      %v1885 = vpop.f32.mrb[0].mxu0
      %v1886 = vadd.f32 %v1821, %v1885
      %v1887 = vpop.f32.mrb[0].mxu0
      %v1888 = vpop.f32.mrb[0].mxu0
      %v1889 = vadd.f32 %v1824, %v1888
      %v1890 = vpop.f32.mrb[0].mxu0
      %1891 = vdwg.mxu0
      %1892 = vmatprep.subr.bf16.mxu0 0
      %1893 = vmatpush1.bf16.msra.mxu0 %v1353
      %1894 = vmatprep.subr.bf16.mxu0 0
      %1895 = vmatpush1.bf16.msra.mxu0 %v1356
      %1896 = vmatprep.subr.bf16.mxu0 0
      %1897 = vmatpush1.bf16.msra.mxu0 %v1359
      %1898 = vmatprep.subr.bf16.mxu0 0
      %1899 = vmatpush1.bf16.msra.mxu0 %v1362
      %1900 = vmatprep.subr.bf16.mxu0 0
      %1901 = vmatpush1.bf16.msra.mxu0 %v1365
      %1902 = vmatprep.subr.bf16.mxu0 0
      %1903 = vmatpush1.bf16.msra.mxu0 %v1368
      %1904 = vmatprep.subr.bf16.mxu0 0
      %1905 = vmatpush1.bf16.msra.mxu0 %v1371
      %1906 = vmatprep.subr.bf16.mxu0 0
      %1907 = vmatpush1.bf16.msra.mxu0 %v1374
      %1908 = vmatprep.subr.bf16.mxu0 0
      %1909 = vmatpush1.bf16.msra.mxu0 %v1377
      %1910 = vmatprep.subr.bf16.mxu0 0
      %1911 = vmatpush1.bf16.msra.mxu0 %v1380
      %1912 = vmatprep.subr.bf16.mxu0 0
      %1913 = vmatpush1.bf16.msra.mxu0 %v1383
      %1914 = vmatprep.subr.bf16.mxu0 0
      %1915 = vmatpush1.bf16.msra.mxu0 %v1386
      %1916 = vmatprep.subr.bf16.mxu0 0
      %1917 = vmatpush1.bf16.msra.mxu0 %v1389
      %1918 = vmatprep.subr.bf16.mxu0 0
      %1919 = vmatpush1.bf16.msra.mxu0 %v1392
      %1920 = vmatprep.subr.bf16.mxu0 0
      %1921 = vmatpush1.bf16.msra.mxu0 %v1395
      %1922 = vmatprep.subr.bf16.mxu0 0
      %1923 = vmatpush1.bf16.msra.mxu0 %v1398
      %1924 = vmatprep.mubr.bf16.mxu0 %v732
      %1925 = vmatmul.mubr.bf16.gmra.mrb[0].mxu0 %v731
      %v1926 = vpop.f32.mrb[0].mxu0
      %v1927 = vadd.f32 %v1862, %v1926
      %v1928 = vpop.f32.mrb[0].mxu0
      %v1929 = vpop.f32.mrb[0].mxu0
      %v1930 = vadd.f32 %v1865, %v1929
      %v1931 = vpop.f32.mrb[0].mxu0
      %1932 = vmatprep.mubr.bf16.mxu0 %v738
      %1933 = vmatmul.mubr.bf16.gmra.mrb[0].mxu0 %v737
      %v1934 = vpop.f32.mrb[0].mxu0
      %v1935 = vadd.f32 %v1870, %v1934
      %v1936 = vpop.f32.mrb[0].mxu0
      %v1937 = vpop.f32.mrb[0].mxu0
      %v1938 = vadd.f32 %v1873, %v1937
      %v1939 = vpop.f32.mrb[0].mxu0
      %1940 = vmatprep.mubr.bf16.mxu0 %v744
      %1941 = vmatmul.mubr.bf16.gmra.mrb[0].mxu0 %v743
      %v1942 = vpop.f32.mrb[0].mxu0
      %v1943 = vadd.f32 %v1878, %v1942
      %v1944 = vpop.f32.mrb[0].mxu0
      %v1945 = vpop.f32.mrb[0].mxu0
      %v1946 = vadd.f32 %v1881, %v1945
      %v1947 = vpop.f32.mrb[0].mxu0
      %1948 = vmatprep.mubr.bf16.mxu0 %v750
      %1949 = vmatmul.mubr.bf16.gmra.mrb[0].mxu0 %v749
      %v1950 = vpop.f32.mrb[0].mxu0
      %v1951 = vadd.f32 %v1886, %v1950
      %v1952 = vpop.f32.mrb[0].mxu0
      %v1953 = vpop.f32.mrb[0].mxu0
      %v1954 = vadd.f32 %v1889, %v1953
      %v1955 = vpop.f32.mrb[0].mxu0
      %1956 = vdwg.mxu0
      %v1957 = vadd.f32 %v1724, 0.5
      %v1958 = vadd.f32 %v1726, 0.5
      %v1959 = vadd.f32 %v1927, 0.5
      %v1960 = vadd.f32 %v1728, 0.5
      %v1961 = vadd.f32 %v1730, 0.5
      %v1962 = vadd.f32 %v1930, 0.5
      %v1963 = vadd.f32 %v1734, 0.5
      %v1964 = vadd.f32 %v1736, 0.5
      %v1965 = vadd.f32 %v1935, 0.5
      %v1966 = vadd.f32 %v1738, 0.5
      %v1967 = vadd.f32 %v1740, 0.5
      %v1968 = vadd.f32 %v1938, 0.5
      %v1969 = vadd.f32 %v1744, 0.5
      %v1970 = vadd.f32 %v1746, 0.5
      %v1971 = vadd.f32 %v1943, 0.5
      %v1972 = vadd.f32 %v1748, 0.5
      %v1973 = vadd.f32 %v1750, 0.5
      %v1974 = vadd.f32 %v1946, 0.5
      %v1975 = vadd.f32 %v1754, 0.5
      %v1976 = vadd.f32 %v1756, 0.5
      %v1977 = vadd.f32 %v1951, 0.5
      %v1978 = vadd.f32 %v1758, 0.5
      %v1979 = vadd.f32 %v1760, 0.5
      %v1980 = vadd.f32 %v1954, 0.5
      %v1981 = vfloor.f32 %v1957
      %v1982 = vfloor.f32 %v1958
      %v1983 = vfloor.f32 %v1959
      %v1984 = vfloor.f32 %v1960
      %v1985 = vfloor.f32 %v1961
      %v1986 = vfloor.f32 %v1962
      %v1987 = vfloor.f32 %v1963
      %v1988 = vfloor.f32 %v1964
      %v1989 = vfloor.f32 %v1965
      %v1990 = vfloor.f32 %v1966
      %v1991 = vfloor.f32 %v1967
      %v1992 = vfloor.f32 %v1968
      %v1993 = vfloor.f32 %v1969
      %v1994 = vfloor.f32 %v1970
      %v1995 = vfloor.f32 %v1971
      %v1996 = vfloor.f32 %v1972
      %v1997 = vfloor.f32 %v1973
      %v1998 = vfloor.f32 %v1974
      %v1999 = vfloor.f32 %v1975
      %v2000 = vfloor.f32 %v1976
      %v2001 = vfloor.f32 %v1977
      %v2002 = vfloor.f32 %v1978
      %v2003 = vfloor.f32 %v1979
      %v2004 = vfloor.f32 %v1980
      %v2005 = vld [vmem:[%s5] sm:$0x7]
      %v2006 = vld [vmem:[%s6] sm:$0x7]
      %v2007 = vsub.f32 %v1981, 0.5
      %v2008 = vsub.f32 %v1982, 0.5
      %v2009 = vsub.f32 %v1983, 0.5
      %v2010 = vsub.f32 %v1984, 0.5
      %v2011 = vsub.f32 %v1985, 0.5
      %v2012 = vsub.f32 %v1986, 0.5
      %v2013 = vsub.f32 %v1987, 0.5
      %v2014 = vsub.f32 %v1988, 0.5
      %v2015 = vsub.f32 %v1989, 0.5
      %v2016 = vsub.f32 %v1990, 0.5
      %v2017 = vsub.f32 %v1991, 0.5
      %v2018 = vsub.f32 %v1992, 0.5
      %v2019 = vsub.f32 %v1993, 0.5
      %v2020 = vsub.f32 %v1994, 0.5
      %v2021 = vsub.f32 %v1995, 0.5
      %v2022 = vsub.f32 %v1996, 0.5
      %v2023 = vsub.f32 %v1997, 0.5
      %v2024 = vsub.f32 %v1998, 0.5
      %v2025 = vsub.f32 %v1999, 0.5
      %v2026 = vsub.f32 %v2000, 0.5
      %v2027 = vsub.f32 %v2001, 0.5
      %v2028 = vsub.f32 %v2002, 0.5
      %v2029 = vsub.f32 %v2003, 0.5
      %v2030 = vsub.f32 %v2004, 0.5
      %v2031 = vsub.f32 0.0, %v2007
      %v2032 = vsub.f32 0.0, %v2008
      %v2033 = vsub.f32 0.0, %v2009
      %v2034 = vsub.f32 0.0, %v2010
      %v2035 = vsub.f32 0.0, %v2011
      %v2036 = vsub.f32 0.0, %v2012
      %v2037 = vsub.f32 0.0, %v2013
      %v2038 = vsub.f32 0.0, %v2014
      %v2039 = vsub.f32 0.0, %v2015
      %v2040 = vsub.f32 0.0, %v2016
      %v2041 = vsub.f32 0.0, %v2017
      %v2042 = vsub.f32 0.0, %v2018
      %v2043 = vsub.f32 0.0, %v2019
      %v2044 = vsub.f32 0.0, %v2020
      %v2045 = vsub.f32 0.0, %v2021
      %v2046 = vsub.f32 0.0, %v2022
      %v2047 = vsub.f32 0.0, %v2023
      %v2048 = vsub.f32 0.0, %v2024
      %v2049 = vsub.f32 0.0, %v2025
      %v2050 = vsub.f32 0.0, %v2026
      %v2051 = vsub.f32 0.0, %v2027
      %v2052 = vsub.f32 0.0, %v2028
      %v2053 = vsub.f32 0.0, %v2029
      %v2054 = vsub.f32 0.0, %v2030
      %v2056 = vlaneseq
      %v2057 = vshrl.u32 %v2056, 7
      %v2058 = vsub.s32 0, %v2057
      %v2059 = vrot.slane %v2005, %v2058
      %v2060 = vlaneseq
      %v2061 = vshrl.u32 %v2060, 7
      %v2062 = vsub.s32 1, %v2061
      %v2063 = vrot.slane %v2005, %v2062
      %v2064 = vlaneseq
      %v2065 = vshrl.u32 %v2064, 7
      %v2066 = vsub.s32 2, %v2065
      %v2067 = vrot.slane %v2005, %v2066
      %v2071 = vmul.f32 %v2031, %v2059
      %v2072 = vmul.f32 %v2032, %v2063
      %v2073 = vmul.f32 %v2033, %v2067
      %v2074 = vmul.f32 %v2034, %v2059
      %v2075 = vmul.f32 %v2035, %v2063
      %v2076 = vmul.f32 %v2036, %v2067
      %v2077 = vmul.f32 %v2037, %v2059
      %v2078 = vmul.f32 %v2038, %v2063
      %v2079 = vmul.f32 %v2039, %v2067
      %v2080 = vmul.f32 %v2040, %v2059
      %v2081 = vmul.f32 %v2041, %v2063
      %v2082 = vmul.f32 %v2042, %v2067
      %v2083 = vmul.f32 %v2043, %v2059
      %v2084 = vmul.f32 %v2044, %v2063
      %v2085 = vmul.f32 %v2045, %v2067
      %v2086 = vmul.f32 %v2046, %v2059
      %v2087 = vmul.f32 %v2047, %v2063
      %v2088 = vmul.f32 %v2048, %v2067
      %v2089 = vmul.f32 %v2049, %v2059
      %v2090 = vmul.f32 %v2050, %v2063
      %v2091 = vmul.f32 %v2051, %v2067
      %v2092 = vmul.f32 %v2052, %v2059
      %v2093 = vmul.f32 %v2053, %v2063
      %v2094 = vmul.f32 %v2054, %v2067
      %v2095 = vmax.f32 %v2071, -30.0
      %v2096 = vmax.f32 %v2072, -30.0
      %v2097 = vmax.f32 %v2073, -30.0
      %v2098 = vmax.f32 %v2074, -30.0
      %v2099 = vmax.f32 %v2075, -30.0
      %v2100 = vmax.f32 %v2076, -30.0
      %v2101 = vmax.f32 %v2077, -30.0
      %v2102 = vmax.f32 %v2078, -30.0
      %v2103 = vmax.f32 %v2079, -30.0
      %v2104 = vmax.f32 %v2080, -30.0
      %v2105 = vmax.f32 %v2081, -30.0
      %v2106 = vmax.f32 %v2082, -30.0
      %v2107 = vmax.f32 %v2083, -30.0
      %v2108 = vmax.f32 %v2084, -30.0
      %v2109 = vmax.f32 %v2085, -30.0
      %v2110 = vmax.f32 %v2086, -30.0
      %v2111 = vmax.f32 %v2087, -30.0
      %v2112 = vmax.f32 %v2088, -30.0
      %v2113 = vmax.f32 %v2089, -30.0
      %v2114 = vmax.f32 %v2090, -30.0
      %v2115 = vmax.f32 %v2091, -30.0
      %v2116 = vmax.f32 %v2092, -30.0
      %v2117 = vmax.f32 %v2093, -30.0
      %v2118 = vmax.f32 %v2094, -30.0
      %v2119 = vmin.f32 %v2095, 30.0
      %v2120 = vmin.f32 %v2096, 30.0
      %v2121 = vmin.f32 %v2097, 30.0
      %v2122 = vmin.f32 %v2098, 30.0
      %v2123 = vmin.f32 %v2099, 30.0
      %v2124 = vmin.f32 %v2100, 30.0
      %v2125 = vmin.f32 %v2101, 30.0
      %v2126 = vmin.f32 %v2102, 30.0
      %v2127 = vmin.f32 %v2103, 30.0
      %v2128 = vmin.f32 %v2104, 30.0
      %v2129 = vmin.f32 %v2105, 30.0
      %v2130 = vmin.f32 %v2106, 30.0
      %v2131 = vmin.f32 %v2107, 30.0
      %v2132 = vmin.f32 %v2108, 30.0
      %v2133 = vmin.f32 %v2109, 30.0
      %v2134 = vmin.f32 %v2110, 30.0
      %v2135 = vmin.f32 %v2111, 30.0
      %v2136 = vmin.f32 %v2112, 30.0
      %v2137 = vmin.f32 %v2113, 30.0
      %v2138 = vmin.f32 %v2114, 30.0
      %v2139 = vmin.f32 %v2115, 30.0
      %v2140 = vmin.f32 %v2116, 30.0
      %v2141 = vmin.f32 %v2117, 30.0
      %v2142 = vmin.f32 %v2118, 30.0
      %v2143 = vmul.f32 %v2119, 1.442695
      %v2144 = vpow.pop %v2143
      %v2145 = vmul.f32 %v2120, 1.442695
      %v2146 = vpow.pop %v2145
      %v2147 = vmul.f32 %v2121, 1.442695
      %v2148 = vpow.pop %v2147
      %v2149 = vmul.f32 %v2122, 1.442695
      %v2150 = vpow.pop %v2149
      %v2151 = vmul.f32 %v2123, 1.442695
      %v2152 = vpow.pop %v2151
      %v2153 = vmul.f32 %v2124, 1.442695
      %v2154 = vpow.pop %v2153
      %v2155 = vmul.f32 %v2125, 1.442695
      %v2156 = vpow.pop %v2155
      %v2157 = vmul.f32 %v2126, 1.442695
      %v2158 = vpow.pop %v2157
      %v2159 = vmul.f32 %v2127, 1.442695
      %v2160 = vpow.pop %v2159
      %v2161 = vmul.f32 %v2128, 1.442695
      %v2162 = vpow.pop %v2161
      %v2163 = vmul.f32 %v2129, 1.442695
      %v2164 = vpow.pop %v2163
      %v2165 = vmul.f32 %v2130, 1.442695
      %v2166 = vpow.pop %v2165
      %v2167 = vmul.f32 %v2131, 1.442695
      %v2168 = vpow.pop %v2167
      %v2169 = vmul.f32 %v2132, 1.442695
      %v2170 = vpow.pop %v2169
      %v2171 = vmul.f32 %v2133, 1.442695
      %v2172 = vpow.pop %v2171
      %v2173 = vmul.f32 %v2134, 1.442695
      %v2174 = vpow.pop %v2173
      %v2175 = vmul.f32 %v2135, 1.442695
      %v2176 = vpow.pop %v2175
      %v2177 = vmul.f32 %v2136, 1.442695
      %v2178 = vpow.pop %v2177
      %v2179 = vmul.f32 %v2137, 1.442695
      %v2180 = vpow.pop %v2179
      %v2181 = vmul.f32 %v2138, 1.442695
      %v2182 = vpow.pop %v2181
      %v2183 = vmul.f32 %v2139, 1.442695
      %v2184 = vpow.pop %v2183
      %v2185 = vmul.f32 %v2140, 1.442695
      %v2186 = vpow.pop %v2185
      %v2187 = vmul.f32 %v2141, 1.442695
      %v2188 = vpow.pop %v2187
      %v2189 = vmul.f32 %v2142, 1.442695
      %v2190 = vpow.pop %v2189
      %v2191 = vadd.f32 %v2144, 1.0
      %v2192 = vadd.f32 %v2146, 1.0
      %v2193 = vadd.f32 %v2148, 1.0
      %v2194 = vadd.f32 %v2150, 1.0
      %v2195 = vadd.f32 %v2152, 1.0
      %v2196 = vadd.f32 %v2154, 1.0
      %v2197 = vadd.f32 %v2156, 1.0
      %v2198 = vadd.f32 %v2158, 1.0
      %v2199 = vadd.f32 %v2160, 1.0
      %v2200 = vadd.f32 %v2162, 1.0
      %v2201 = vadd.f32 %v2164, 1.0
      %v2202 = vadd.f32 %v2166, 1.0
      %v2203 = vadd.f32 %v2168, 1.0
      %v2204 = vadd.f32 %v2170, 1.0
      %v2205 = vadd.f32 %v2172, 1.0
      %v2206 = vadd.f32 %v2174, 1.0
      %v2207 = vadd.f32 %v2176, 1.0
      %v2208 = vadd.f32 %v2178, 1.0
      %v2209 = vadd.f32 %v2180, 1.0
      %v2210 = vadd.f32 %v2182, 1.0
      %v2211 = vadd.f32 %v2184, 1.0
      %v2212 = vadd.f32 %v2186, 1.0
      %v2213 = vadd.f32 %v2188, 1.0
      %v2214 = vadd.f32 %v2190, 1.0
      %v2216 = vlaneseq
      %v2217 = vshrl.u32 %v2216, 7
      %v2218 = vsub.s32 0, %v2217
      %v2219 = vrot.slane %v2006, %v2218
      %v2220 = vlaneseq
      %v2221 = vshrl.u32 %v2220, 7
      %v2222 = vsub.s32 1, %v2221
      %v2223 = vrot.slane %v2006, %v2222
      %v2224 = vlaneseq
      %v2225 = vshrl.u32 %v2224, 7
      %v2226 = vsub.s32 2, %v2225
      %v2227 = vrot.slane %v2006, %v2226
      %v2231 = vmul.f32 %v2144, %v2219
      %v2232 = vmul.f32 %v2146, %v2223
      %v2233 = vmul.f32 %v2148, %v2227
      %v2234 = vmul.f32 %v2150, %v2219
      %v2235 = vmul.f32 %v2152, %v2223
      %v2236 = vmul.f32 %v2154, %v2227
      %v2237 = vmul.f32 %v2156, %v2219
      %v2238 = vmul.f32 %v2158, %v2223
      %v2239 = vmul.f32 %v2160, %v2227
      %v2240 = vmul.f32 %v2162, %v2219
      %v2241 = vmul.f32 %v2164, %v2223
      %v2242 = vmul.f32 %v2166, %v2227
      %v2243 = vmul.f32 %v2168, %v2219
      %v2244 = vmul.f32 %v2170, %v2223
      %v2245 = vmul.f32 %v2172, %v2227
      %v2246 = vmul.f32 %v2174, %v2219
      %v2247 = vmul.f32 %v2176, %v2223
      %v2248 = vmul.f32 %v2178, %v2227
      %v2249 = vmul.f32 %v2180, %v2219
      %v2250 = vmul.f32 %v2182, %v2223
      %v2251 = vmul.f32 %v2184, %v2227
      %v2252 = vmul.f32 %v2186, %v2219
      %v2253 = vmul.f32 %v2188, %v2223
      %v2254 = vmul.f32 %v2190, %v2227
      %v2255 = vadd.f32 %v2231, 1.0
      %v2256 = vadd.f32 %v2232, 1.0
      %v2257 = vadd.f32 %v2233, 1.0
      %v2258 = vadd.f32 %v2234, 1.0
      %v2259 = vadd.f32 %v2235, 1.0
      %v2260 = vadd.f32 %v2236, 1.0
      %v2261 = vadd.f32 %v2237, 1.0
      %v2262 = vadd.f32 %v2238, 1.0
      %v2263 = vadd.f32 %v2239, 1.0
      %v2264 = vadd.f32 %v2240, 1.0
      %v2265 = vadd.f32 %v2241, 1.0
      %v2266 = vadd.f32 %v2242, 1.0
      %v2267 = vadd.f32 %v2243, 1.0
      %v2268 = vadd.f32 %v2244, 1.0
      %v2269 = vadd.f32 %v2245, 1.0
      %v2270 = vadd.f32 %v2246, 1.0
      %v2271 = vadd.f32 %v2247, 1.0
      %v2272 = vadd.f32 %v2248, 1.0
      %v2273 = vadd.f32 %v2249, 1.0
      %v2274 = vadd.f32 %v2250, 1.0
      %v2275 = vadd.f32 %v2251, 1.0
      %v2276 = vadd.f32 %v2252, 1.0
      %v2277 = vadd.f32 %v2253, 1.0
      %v2278 = vadd.f32 %v2254, 1.0
      %v2279 = vmul.f32 %v2191, %v2255
      %v2280 = vmul.f32 %v2192, %v2256
      %v2281 = vmul.f32 %v2193, %v2257
      %v2282 = vmul.f32 %v2194, %v2258
      %v2283 = vmul.f32 %v2195, %v2259
      %v2284 = vmul.f32 %v2196, %v2260
      %v2285 = vmul.f32 %v2197, %v2261
      %v2286 = vmul.f32 %v2198, %v2262
      %v2287 = vmul.f32 %v2199, %v2263
      %v2288 = vmul.f32 %v2200, %v2264
      %v2289 = vmul.f32 %v2201, %v2265
      %v2290 = vmul.f32 %v2202, %v2266
      %v2291 = vmul.f32 %v2203, %v2267
      %v2292 = vmul.f32 %v2204, %v2268
      %v2293 = vmul.f32 %v2205, %v2269
      %v2294 = vmul.f32 %v2206, %v2270
      %v2295 = vmul.f32 %v2207, %v2271
      %v2296 = vmul.f32 %v2208, %v2272
      %v2297 = vmul.f32 %v2209, %v2273
      %v2298 = vmul.f32 %v2210, %v2274
      %v2299 = vmul.f32 %v2211, %v2275
      %v2300 = vmul.f32 %v2212, %v2276
      %v2301 = vmul.f32 %v2213, %v2277
      %v2302 = vmul.f32 %v2214, %v2278
      %v2303 = vsub.f32 1.0, %v2006
      %v2305 = vlaneseq
      %v2306 = vshrl.u32 %v2305, 7
      %v2307 = vsub.s32 0, %v2306
      %v2308 = vrot.slane %v2303, %v2307
      %v2309 = vlaneseq
      %v2310 = vshrl.u32 %v2309, 7
      %v2311 = vsub.s32 1, %v2310
      %v2312 = vrot.slane %v2303, %v2311
      %v2313 = vlaneseq
      %v2314 = vshrl.u32 %v2313, 7
      %v2315 = vsub.s32 2, %v2314
      %v2316 = vrot.slane %v2303, %v2315
      %v2320 = vmul.f32 %v2144, %v2308
      %v2321 = vmul.f32 %v2146, %v2312
      %v2322 = vmul.f32 %v2148, %v2316
      %v2323 = vmul.f32 %v2150, %v2308
      %v2324 = vmul.f32 %v2152, %v2312
      %v2325 = vmul.f32 %v2154, %v2316
      %v2326 = vmul.f32 %v2156, %v2308
      %v2327 = vmul.f32 %v2158, %v2312
      %v2328 = vmul.f32 %v2160, %v2316
      %v2329 = vmul.f32 %v2162, %v2308
      %v2330 = vmul.f32 %v2164, %v2312
      %v2331 = vmul.f32 %v2166, %v2316
      %v2332 = vmul.f32 %v2168, %v2308
      %v2333 = vmul.f32 %v2170, %v2312
      %v2334 = vmul.f32 %v2172, %v2316
      %v2335 = vmul.f32 %v2174, %v2308
      %v2336 = vmul.f32 %v2176, %v2312
      %v2337 = vmul.f32 %v2178, %v2316
      %v2338 = vmul.f32 %v2180, %v2308
      %v2339 = vmul.f32 %v2182, %v2312
      %v2340 = vmul.f32 %v2184, %v2316
      %v2341 = vmul.f32 %v2186, %v2308
      %v2342 = vmul.f32 %v2188, %v2312
      %v2343 = vmul.f32 %v2190, %v2316
      %v2344 = vrcp.pop %v2279
      %v2345 = vrcp.pop %v2280
      %v2346 = vrcp.pop %v2281
      %v2347 = vrcp.pop %v2282
      %v2348 = vrcp.pop %v2283
      %v2349 = vrcp.pop %v2284
      %v2350 = vrcp.pop %v2285
      %v2351 = vrcp.pop %v2286
      %v2352 = vrcp.pop %v2287
      %v2353 = vrcp.pop %v2288
      %v2354 = vrcp.pop %v2289
      %v2355 = vrcp.pop %v2290
      %v2356 = vrcp.pop %v2291
      %v2357 = vrcp.pop %v2292
      %v2358 = vrcp.pop %v2293
      %v2359 = vrcp.pop %v2294
      %v2360 = vrcp.pop %v2295
      %v2361 = vrcp.pop %v2296
      %v2362 = vrcp.pop %v2297
      %v2363 = vrcp.pop %v2298
      %v2364 = vrcp.pop %v2299
      %v2365 = vrcp.pop %v2300
      %v2366 = vrcp.pop %v2301
      %v2367 = vrcp.pop %v2302
      %v2368 = vmul.f32 %v2320, %v2344
      %v2369 = vmul.f32 %v2321, %v2345
      %v2370 = vmul.f32 %v2322, %v2346
      %v2371 = vmul.f32 %v2323, %v2347
      %v2372 = vmul.f32 %v2324, %v2348
      %v2373 = vmul.f32 %v2325, %v2349
      %v2374 = vmul.f32 %v2326, %v2350
      %v2375 = vmul.f32 %v2327, %v2351
      %v2376 = vmul.f32 %v2328, %v2352
      %v2377 = vmul.f32 %v2329, %v2353
      %v2378 = vmul.f32 %v2330, %v2354
      %v2379 = vmul.f32 %v2331, %v2355
      %v2380 = vmul.f32 %v2332, %v2356
      %v2381 = vmul.f32 %v2333, %v2357
      %v2382 = vmul.f32 %v2334, %v2358
      %v2383 = vmul.f32 %v2335, %v2359
      %v2384 = vmul.f32 %v2336, %v2360
      %v2385 = vmul.f32 %v2337, %v2361
      %v2386 = vmul.f32 %v2338, %v2362
      %v2387 = vmul.f32 %v2339, %v2363
      %v2388 = vmul.f32 %v2340, %v2364
      %v2389 = vmul.f32 %v2341, %v2365
      %v2390 = vmul.f32 %v2342, %v2366
      %v2391 = vmul.f32 %v2343, %v2367
      %v2392 = vmax.f32 %v2368, 1e-09
      %v2393 = vmax.f32 %v2369, 1e-09
      %v2394 = vmax.f32 %v2370, 1e-09
      %v2395 = vmax.f32 %v2371, 1e-09
      %v2396 = vmax.f32 %v2372, 1e-09
      %v2397 = vmax.f32 %v2373, 1e-09
      %v2398 = vmax.f32 %v2374, 1e-09
      %v2399 = vmax.f32 %v2375, 1e-09
      %v2400 = vmax.f32 %v2376, 1e-09
      %v2401 = vmax.f32 %v2377, 1e-09
      %v2402 = vmax.f32 %v2378, 1e-09
      %v2403 = vmax.f32 %v2379, 1e-09
      %v2404 = vmax.f32 %v2380, 1e-09
      %v2405 = vmax.f32 %v2381, 1e-09
      %v2406 = vmax.f32 %v2382, 1e-09
      %v2407 = vmax.f32 %v2383, 1e-09
      %v2408 = vmax.f32 %v2384, 1e-09
      %v2409 = vmax.f32 %v2385, 1e-09
      %v2410 = vmax.f32 %v2386, 1e-09
      %v2411 = vmax.f32 %v2387, 1e-09
      %v2412 = vmax.f32 %v2388, 1e-09
      %v2413 = vmax.f32 %v2389, 1e-09
      %v2414 = vmax.f32 %v2390, 1e-09
      %v2415 = vmax.f32 %v2391, 1e-09
      %v2416 = vpack.c.bf16 %v2395, %v2392
      %v2417 = vpack.c.bf16 %v2396, %v2393
      %v2418 = vpack.c.bf16 %v2397, %v2394
      %v2419 = vpack.c.bf16 %v2401, %v2398
      %v2420 = vpack.c.bf16 %v2402, %v2399
      %v2421 = vpack.c.bf16 %v2403, %v2400
      %v2422 = vpack.c.bf16 %v2407, %v2404
      %v2423 = vpack.c.bf16 %v2408, %v2405
      %v2424 = vpack.c.bf16 %v2409, %v2406
      %v2425 = vpack.c.bf16 %v2413, %v2410
      %v2426 = vpack.c.bf16 %v2414, %v2411
      %v2427 = vpack.c.bf16 %v2415, %v2412
      %v2440 = vunpack.c.l.b16 %v2416
      %v2441 = vunpack.c.l.b16 %v2417
      %v2442 = vunpack.c.l.b16 %v2418
      %v2443 = vunpack.c.h.b16 %v2416
      %v2444 = vunpack.c.h.b16 %v2417
      %v2445 = vunpack.c.h.b16 %v2418
      %v2446 = vunpack.c.l.b16 %v2419
      %v2447 = vunpack.c.l.b16 %v2420
      %v2448 = vunpack.c.l.b16 %v2421
      %v2449 = vunpack.c.h.b16 %v2419
      %v2450 = vunpack.c.h.b16 %v2420
      %v2451 = vunpack.c.h.b16 %v2421
      %v2452 = vunpack.c.l.b16 %v2422
      %v2453 = vunpack.c.l.b16 %v2423
      %v2454 = vunpack.c.l.b16 %v2424
      %v2455 = vunpack.c.h.b16 %v2422
      %v2456 = vunpack.c.h.b16 %v2423
      %v2457 = vunpack.c.h.b16 %v2424
      %v2458 = vunpack.c.l.b16 %v2425
      %v2459 = vunpack.c.l.b16 %v2426
      %v2460 = vunpack.c.l.b16 %v2427
      %v2461 = vunpack.c.h.b16 %v2425
      %v2462 = vunpack.c.h.b16 %v2426
      %v2463 = vunpack.c.h.b16 %v2427
      %v2464 = vpack.c.b16 %v2441, %v2440
      %v2465 = vpack.c.b16 %v2442, %v2442
      %v2466 = vpack.c.b16 %v2444, %v2443
      %v2467 = vpack.c.b16 %v2445, %v2445
      %v2468 = vpack.c.b16 %v2447, %v2446
      %v2469 = vpack.c.b16 %v2448, %v2448
      %v2470 = vpack.c.b16 %v2450, %v2449
      %v2471 = vpack.c.b16 %v2451, %v2451
      %v2472 = vpack.c.b16 %v2453, %v2452
      %v2473 = vpack.c.b16 %v2454, %v2454
      %v2474 = vpack.c.b16 %v2456, %v2455
      %v2475 = vpack.c.b16 %v2457, %v2457
      %v2476 = vpack.c.b16 %v2459, %v2458
      %v2477 = vpack.c.b16 %v2460, %v2460
      %v2478 = vpack.c.b16 %v2462, %v2461
      %v2479 = vpack.c.b16 %v2463, %v2463
      %2496 = vst [vmem:[%s415] sm:$0xff] %v2464
      %2497 = vst [vmem:[%s415 + $0x8] sm:$0xf] %v2465
      %2498 = vst [vmem:[%s415 + $0xc] sm:$0xff] %v2466
      %2499 = vst [vmem:[%s415 + $0x14] sm:$0xf] %v2467
      %2500 = vst [vmem:[%s415 + $0x18] sm:$0xff] %v2468
      %2501 = vst [vmem:[%s415 + $0x20] sm:$0xf] %v2469
      %2502 = vst [vmem:[%s415 + $0x24] sm:$0xff] %v2470
      %2503 = vst [vmem:[%s415 + $0x2c] sm:$0xf] %v2471
      %2504 = vst [vmem:[%s415 + $0x30] sm:$0xff] %v2472
      %2505 = vst [vmem:[%s415 + $0x38] sm:$0xf] %v2473
      %2506 = vst [vmem:[%s415 + $0x3c] sm:$0xff] %v2474
      %2507 = vst [vmem:[%s415 + $0x44] sm:$0xf] %v2475
      %2508 = vst [vmem:[%s415 + $0x48] sm:$0xff] %v2476
      %2509 = vst [vmem:[%s415 + $0x50] sm:$0xf] %v2477
      %2510 = vst [vmem:[%s415 + $0x54] sm:$0xff] %v2478
      %2511 = vst [vmem:[%s415 + $0x5c] sm:$0xf] %v2479
      %v2512 = vlog2.pop %v2279
      %v2513 = vmul.f32 %v2512, 0.6931472
      %v2514 = vlog2.pop %v2280
      %v2515 = vmul.f32 %v2514, 0.6931472
      %v2516 = vlog2.pop %v2281
      %v2517 = vmul.f32 %v2516, 0.6931472
      %v2518 = vlog2.pop %v2282
      %v2519 = vmul.f32 %v2518, 0.6931472
      %v2520 = vlog2.pop %v2283
      %v2521 = vmul.f32 %v2520, 0.6931472
      %v2522 = vlog2.pop %v2284
      %v2523 = vmul.f32 %v2522, 0.6931472
      %v2524 = vlog2.pop %v2285
      %v2525 = vmul.f32 %v2524, 0.6931472
      %v2526 = vlog2.pop %v2286
      %v2527 = vmul.f32 %v2526, 0.6931472
      %v2528 = vlog2.pop %v2287
      %v2529 = vmul.f32 %v2528, 0.6931472
      %v2530 = vlog2.pop %v2288
      %v2531 = vmul.f32 %v2530, 0.6931472
      %v2532 = vlog2.pop %v2289
      %v2533 = vmul.f32 %v2532, 0.6931472
      %v2534 = vlog2.pop %v2290
      %v2535 = vmul.f32 %v2534, 0.6931472
      %v2536 = vlog2.pop %v2291
      %v2537 = vmul.f32 %v2536, 0.6931472
      %v2538 = vlog2.pop %v2292
      %v2539 = vmul.f32 %v2538, 0.6931472
      %v2540 = vlog2.pop %v2293
      %v2541 = vmul.f32 %v2540, 0.6931472
      %v2542 = vlog2.pop %v2294
      %v2543 = vmul.f32 %v2542, 0.6931472
      %v2544 = vlog2.pop %v2295
      %v2545 = vmul.f32 %v2544, 0.6931472
      %v2546 = vlog2.pop %v2296
      %v2547 = vmul.f32 %v2546, 0.6931472
      %v2548 = vlog2.pop %v2297
      %v2549 = vmul.f32 %v2548, 0.6931472
      %v2550 = vlog2.pop %v2298
      %v2551 = vmul.f32 %v2550, 0.6931472
      %v2552 = vlog2.pop %v2299
      %v2553 = vmul.f32 %v2552, 0.6931472
      %v2554 = vlog2.pop %v2300
      %v2555 = vmul.f32 %v2554, 0.6931472
      %v2556 = vlog2.pop %v2301
      %v2557 = vmul.f32 %v2556, 0.6931472
      %v2558 = vlog2.pop %v2302
      %v2559 = vmul.f32 %v2558, 0.6931472
      %v2560 = vsub.f32 %v2513, %v2119
      %v2561 = vsub.f32 %v2515, %v2120
      %v2562 = vsub.f32 %v2517, %v2121
      %v2563 = vsub.f32 %v2519, %v2122
      %v2564 = vsub.f32 %v2521, %v2123
      %v2565 = vsub.f32 %v2523, %v2124
      %v2566 = vsub.f32 %v2525, %v2125
      %v2567 = vsub.f32 %v2527, %v2126
      %v2568 = vsub.f32 %v2529, %v2127
      %v2569 = vsub.f32 %v2531, %v2128
      %v2570 = vsub.f32 %v2533, %v2129
      %v2571 = vsub.f32 %v2535, %v2130
      %v2572 = vsub.f32 %v2537, %v2131
      %v2573 = vsub.f32 %v2539, %v2132
      %v2574 = vsub.f32 %v2541, %v2133
      %v2575 = vsub.f32 %v2543, %v2134
      %v2576 = vsub.f32 %v2545, %v2135
      %v2577 = vsub.f32 %v2547, %v2136
      %v2578 = vsub.f32 %v2549, %v2137
      %v2579 = vsub.f32 %v2551, %v2138
      %v2580 = vsub.f32 %v2553, %v2139
      %v2581 = vsub.f32 %v2555, %v2140
      %v2582 = vsub.f32 %v2557, %v2141
      %v2583 = vsub.f32 %v2559, %v2142
      %v2584 = vld [vmem:[%s7] sm:$0x7]
      %v2586 = vlaneseq
      %v2587 = vshrl.u32 %v2586, 7
      %v2588 = vsub.s32 0, %v2587
      %v2589 = vrot.slane %v2584, %v2588
      %v2590 = vlaneseq
      %v2591 = vshrl.u32 %v2590, 7
      %v2592 = vsub.s32 1, %v2591
      %v2593 = vrot.slane %v2584, %v2592
      %v2594 = vlaneseq
      %v2595 = vshrl.u32 %v2594, 7
      %v2596 = vsub.s32 2, %v2595
      %v2597 = vrot.slane %v2584, %v2596
      %v2601 = vsub.f32 %v2560, %v2589
      %v2602 = vsub.f32 %v2561, %v2593
      %v2603 = vsub.f32 %v2562, %v2597
      %v2604 = vsub.f32 %v2563, %v2589
      %v2605 = vsub.f32 %v2564, %v2593
      %v2606 = vsub.f32 %v2565, %v2597
      %v2607 = vsub.f32 %v2566, %v2589
      %v2608 = vsub.f32 %v2567, %v2593
      %v2609 = vsub.f32 %v2568, %v2597
      %v2610 = vsub.f32 %v2569, %v2589
      %v2611 = vsub.f32 %v2570, %v2593
      %v2612 = vsub.f32 %v2571, %v2597
      %v2613 = vsub.f32 %v2572, %v2589
      %v2614 = vsub.f32 %v2573, %v2593
      %v2615 = vsub.f32 %v2574, %v2597
      %v2616 = vsub.f32 %v2575, %v2589
      %v2617 = vsub.f32 %v2576, %v2593
      %v2618 = vsub.f32 %v2577, %v2597
      %v2619 = vsub.f32 %v2578, %v2589
      %v2620 = vsub.f32 %v2579, %v2593
      %v2621 = vsub.f32 %v2580, %v2597
      %v2622 = vsub.f32 %v2581, %v2589
      %v2623 = vsub.f32 %v2582, %v2593
      %v2624 = vsub.f32 %v2583, %v2597
      %v2625 = vld [vmem:[%s8] sm:$0x7]
      %v2627 = vlaneseq
      %v2628 = vshrl.u32 %v2627, 7
      %v2629 = vsub.s32 0, %v2628
      %v2630 = vrot.slane %v2625, %v2629
      %v2631 = vlaneseq
      %v2632 = vshrl.u32 %v2631, 7
      %v2633 = vsub.s32 1, %v2632
      %v2634 = vrot.slane %v2625, %v2633
      %v2635 = vlaneseq
      %v2636 = vshrl.u32 %v2635, 7
      %v2637 = vsub.s32 2, %v2636
      %v2638 = vrot.slane %v2625, %v2637
      %v2642 = vmul.f32 %v2601, %v2630
      %v2643 = vmul.f32 %v2602, %v2634
      %v2644 = vmul.f32 %v2603, %v2638
      %v2645 = vmul.f32 %v2604, %v2630
      %v2646 = vmul.f32 %v2605, %v2634
      %v2647 = vmul.f32 %v2606, %v2638
      %v2648 = vmul.f32 %v2607, %v2630
      %v2649 = vmul.f32 %v2608, %v2634
      %v2650 = vmul.f32 %v2609, %v2638
      %v2651 = vmul.f32 %v2610, %v2630
      %v2652 = vmul.f32 %v2611, %v2634
      %v2653 = vmul.f32 %v2612, %v2638
      %v2654 = vmul.f32 %v2613, %v2630
      %v2655 = vmul.f32 %v2614, %v2634
      %v2656 = vmul.f32 %v2615, %v2638
      %v2657 = vmul.f32 %v2616, %v2630
      %v2658 = vmul.f32 %v2617, %v2634
      %v2659 = vmul.f32 %v2618, %v2638
      %v2660 = vmul.f32 %v2619, %v2630
      %v2661 = vmul.f32 %v2620, %v2634
      %v2662 = vmul.f32 %v2621, %v2638
      %v2663 = vmul.f32 %v2622, %v2630
      %v2664 = vmul.f32 %v2623, %v2634
      %v2665 = vmul.f32 %v2624, %v2638
      %v2666 = vadd.f32 %v2642, %v2643
      %v2667 = vadd.f32 %v2666, %v2644
      %v2668 = vadd.f32 %v2667, %v2645
      %v2669 = vadd.f32 %v2668, %v2646
      %v2670 = vadd.f32 %v2669, %v2647
      %v2671 = vadd.f32 %v2670, %v2648
      %v2672 = vadd.f32 %v2671, %v2649
      %v2673 = vadd.f32 %v2672, %v2650
      %v2674 = vadd.f32 %v2673, %v2651
      %v2675 = vadd.f32 %v2674, %v2652
      %v2676 = vadd.f32 %v2675, %v2653
      %v2677 = vadd.f32 %v2676, %v2654
      %v2678 = vadd.f32 %v2677, %v2655
      %v2679 = vadd.f32 %v2678, %v2656
      %v2680 = vadd.f32 %v2679, %v2657
      %v2681 = vadd.f32 %v2680, %v2658
      %v2682 = vadd.f32 %v2681, %v2659
      %v2683 = vadd.f32 %v2682, %v2660
      %v2684 = vadd.f32 %v2683, %v2661
      %v2685 = vadd.f32 %v2684, %v2662
      %v2686 = vadd.f32 %v2685, %v2663
      %v2687 = vadd.f32 %v2686, %v2664
      %v2688 = vadd.f32 %v2687, %v2665
      %2689 = vadd.xlane.f32.xlu0 %v2688
      %v2690 = vpop.xlane.xlu0 %2689
      %v2691 = vrot.slane %v2690, 4
      %v2692 = vadd.f32 %v2690, %v2691
      %v2693 = vrot.slane %v2692, 2
      %v2694 = vadd.f32 %v2692, %v2693
      %v2695 = vrot.slane %v2694, 1
      %v2696 = vadd.f32 %v2694, %v2695
      %s2697 = vtos %v2696
      %v2698 = vstv %s2697
      %2699 = vst [vmem:[%s420] sm:$0xff] %v2698
      %v2700 = vpack.c.bf16 %v1984, %v1981
      %v2701 = vpack.c.bf16 %v1985, %v1982
      %v2702 = vpack.c.bf16 %v1986, %v1983
      %v2703 = vpack.c.bf16 %v1990, %v1987
      %v2704 = vpack.c.bf16 %v1991, %v1988
      %v2705 = vpack.c.bf16 %v1992, %v1989
      %v2706 = vpack.c.bf16 %v1996, %v1993
      %v2707 = vpack.c.bf16 %v1997, %v1994
      %v2708 = vpack.c.bf16 %v1998, %v1995
      %v2709 = vpack.c.bf16 %v2002, %v1999
      %v2710 = vpack.c.bf16 %v2003, %v2000
      %v2711 = vpack.c.bf16 %v2004, %v2001
      %v2712 = vld [vmem:[%s3] sm:$0xff]
      %v2713 = vld [vmem:[%s3 + $0x8] sm:$0xff]
      %v2714 = vld [vmem:[%s3 + $0x10] sm:$0xff]
      %v2715 = vld [vmem:[%s3 + $0x18] sm:$0xff]
      %v2716 = vld [vmem:[%s3 + $0x20] sm:$0xff]
      %v2717 = vld [vmem:[%s3 + $0x28] sm:$0xff]
      %v2718 = vld [vmem:[%s3 + $0x30] sm:$0xff]
      %v2719 = vld [vmem:[%s3 + $0x38] sm:$0xff]
      %v2720 = vld [vmem:[%s3 + $0x40] sm:$0xff]
      %v2721 = vld [vmem:[%s3 + $0x48] sm:$0xff]
      %v2722 = vld [vmem:[%s3 + $0x50] sm:$0xff]
      %v2723 = vld [vmem:[%s3 + $0x58] sm:$0xff]
      %v2724 = vld [vmem:[%s3 + $0x60] sm:$0xff]
      %v2725 = vld [vmem:[%s3 + $0x68] sm:$0xff]
      %v2726 = vld [vmem:[%s3 + $0x70] sm:$0xff]
      %v2727 = vld [vmem:[%s3 + $0x78] sm:$0xff]
      %v2728 = vld [vmem:[%s3 + $0x80] sm:$0xff]
      %v2729 = vld [vmem:[%s3 + $0x88] sm:$0xff]
      %v2730 = vld [vmem:[%s3 + $0x90] sm:$0xff]
      %v2731 = vld [vmem:[%s3 + $0x98] sm:$0xff]
      %v2732 = vld [vmem:[%s3 + $0xa0] sm:$0xff]
      %v2733 = vld [vmem:[%s3 + $0xa8] sm:$0xff]
      %v2734 = vld [vmem:[%s3 + $0xb0] sm:$0xff]
      %v2735 = vld [vmem:[%s3 + $0xb8] sm:$0xff]
      %v2736 = vld [vmem:[%s3 + $0xc0] sm:$0xff]
      %v2737 = vld [vmem:[%s3 + $0xc8] sm:$0xff]
      %v2738 = vld [vmem:[%s3 + $0xd0] sm:$0xff]
      %v2739 = vld [vmem:[%s3 + $0xd8] sm:$0xff]
      %v2740 = vld [vmem:[%s3 + $0xe0] sm:$0xff]
      %v2741 = vld [vmem:[%s3 + $0xe8] sm:$0xff]
      %v2742 = vld [vmem:[%s3 + $0xf0] sm:$0xff]
      %v2743 = vld [vmem:[%s3 + $0xf8] sm:$0xff]
      %v2744 = vld [vmem:[%s3 + $0x100] sm:$0xff]
      %v2745 = vld [vmem:[%s3 + $0x108] sm:$0xff]
      %v2746 = vld [vmem:[%s3 + $0x110] sm:$0xff]
      %v2747 = vld [vmem:[%s3 + $0x118] sm:$0xff]
      %v2748 = vld [vmem:[%s3 + $0x120] sm:$0xff]
      %v2749 = vld [vmem:[%s3 + $0x128] sm:$0xff]
      %v2750 = vld [vmem:[%s3 + $0x130] sm:$0xff]
      %v2751 = vld [vmem:[%s3 + $0x138] sm:$0xff]
      %v2752 = vld [vmem:[%s3 + $0x140] sm:$0xff]
      %v2753 = vld [vmem:[%s3 + $0x148] sm:$0xff]
      %v2754 = vld [vmem:[%s3 + $0x150] sm:$0xff]
      %v2755 = vld [vmem:[%s3 + $0x158] sm:$0xff]
      %v2756 = vld [vmem:[%s3 + $0x160] sm:$0xff]
      %v2757 = vld [vmem:[%s3 + $0x168] sm:$0xff]
      %v2758 = vld [vmem:[%s3 + $0x170] sm:$0xff]
      %v2759 = vld [vmem:[%s3 + $0x178] sm:$0xff]
      %v2760 = vld [vmem:[%s3 + $0x180] sm:$0xff]
      %v2761 = vld [vmem:[%s3 + $0x188] sm:$0xff]
      %v2762 = vld [vmem:[%s3 + $0x190] sm:$0xff]
      %v2763 = vld [vmem:[%s3 + $0x198] sm:$0xff]
      %v2764 = vld [vmem:[%s3 + $0x1a0] sm:$0xff]
      %v2765 = vld [vmem:[%s3 + $0x1a8] sm:$0xff]
      %v2766 = vld [vmem:[%s3 + $0x1b0] sm:$0xff]
      %v2767 = vld [vmem:[%s3 + $0x1b8] sm:$0xff]
      %v2768 = vld [vmem:[%s3 + $0x1c0] sm:$0xff]
      %v2769 = vld [vmem:[%s3 + $0x1c8] sm:$0xff]
      %v2770 = vld [vmem:[%s3 + $0x1d0] sm:$0xff]
      %v2771 = vld [vmem:[%s3 + $0x1d8] sm:$0xff]
      %v2772 = vld [vmem:[%s3 + $0x1e0] sm:$0xff]
      %v2773 = vld [vmem:[%s3 + $0x1e8] sm:$0xff]
      %v2774 = vld [vmem:[%s3 + $0x1f0] sm:$0xff]
      %v2775 = vld [vmem:[%s3 + $0x1f8] sm:$0xff]
      %v2776 = vld [vmem:[%s3 + $0x200] sm:$0xff]
      %v2777 = vld [vmem:[%s3 + $0x208] sm:$0xff]
      %v2778 = vld [vmem:[%s3 + $0x210] sm:$0xff]
      %v2779 = vld [vmem:[%s3 + $0x218] sm:$0xff]
      %v2780 = vld [vmem:[%s3 + $0x220] sm:$0xff]
      %v2781 = vld [vmem:[%s3 + $0x228] sm:$0xff]
      %v2782 = vld [vmem:[%s3 + $0x230] sm:$0xff]
      %v2783 = vld [vmem:[%s3 + $0x238] sm:$0xff]
      %v2784 = vld [vmem:[%s3 + $0x240] sm:$0xff]
      %v2785 = vld [vmem:[%s3 + $0x248] sm:$0xff]
      %v2786 = vld [vmem:[%s3 + $0x250] sm:$0xff]
      %v2787 = vld [vmem:[%s3 + $0x258] sm:$0xff]
      %v2788 = vld [vmem:[%s3 + $0x260] sm:$0xff]
      %v2789 = vld [vmem:[%s3 + $0x268] sm:$0xff]
      %v2790 = vld [vmem:[%s3 + $0x270] sm:$0xff]
      %v2791 = vld [vmem:[%s3 + $0x278] sm:$0xff]
      %v2792 = vld [vmem:[%s3 + $0x280] sm:$0xff]
      %v2793 = vld [vmem:[%s3 + $0x288] sm:$0xff]
      %v2794 = vld [vmem:[%s3 + $0x290] sm:$0xff]
      %v2795 = vld [vmem:[%s3 + $0x298] sm:$0xff]
      %v2796 = vld [vmem:[%s3 + $0x2a0] sm:$0xff]
      %v2797 = vld [vmem:[%s3 + $0x2a8] sm:$0xff]
      %v2798 = vld [vmem:[%s3 + $0x2b0] sm:$0xff]
      %v2799 = vld [vmem:[%s3 + $0x2b8] sm:$0xff]
      %v2800 = vld [vmem:[%s3 + $0x2c0] sm:$0xff]
      %v2801 = vld [vmem:[%s3 + $0x2c8] sm:$0xff]
      %v2802 = vld [vmem:[%s3 + $0x2d0] sm:$0xff]
      %v2803 = vld [vmem:[%s3 + $0x2d8] sm:$0xff]
      %v2804 = vld [vmem:[%s3 + $0x2e0] sm:$0xff]
      %v2805 = vld [vmem:[%s3 + $0x2e8] sm:$0xff]
      %v2806 = vld [vmem:[%s3 + $0x2f0] sm:$0xff]
      %v2807 = vld [vmem:[%s3 + $0x2f8] sm:$0xff]
      %v2808 = vld [vmem:[%s3 + $0x300] sm:$0xff]
      %v2809 = vld [vmem:[%s3 + $0x308] sm:$0xff]
      %v2810 = vld [vmem:[%s3 + $0x310] sm:$0xff]
      %v2811 = vld [vmem:[%s3 + $0x318] sm:$0xff]
      %v2812 = vld [vmem:[%s3 + $0x320] sm:$0xff]
      %v2813 = vld [vmem:[%s3 + $0x328] sm:$0xff]
      %v2814 = vld [vmem:[%s3 + $0x330] sm:$0xff]
      %v2815 = vld [vmem:[%s3 + $0x338] sm:$0xff]
      %v2816 = vld [vmem:[%s3 + $0x340] sm:$0xff]
      %v2817 = vld [vmem:[%s3 + $0x348] sm:$0xff]
      %v2818 = vld [vmem:[%s3 + $0x350] sm:$0xff]
      %v2819 = vld [vmem:[%s3 + $0x358] sm:$0xff]
      %v2820 = vld [vmem:[%s3 + $0x360] sm:$0xff]
      %v2821 = vld [vmem:[%s3 + $0x368] sm:$0xff]
      %v2822 = vld [vmem:[%s3 + $0x370] sm:$0xff]
      %v2823 = vld [vmem:[%s3 + $0x378] sm:$0xff]
      %v2824 = vld [vmem:[%s3 + $0x380] sm:$0xff]
      %v2825 = vld [vmem:[%s3 + $0x388] sm:$0xff]
      %v2826 = vld [vmem:[%s3 + $0x390] sm:$0xff]
      %v2827 = vld [vmem:[%s3 + $0x398] sm:$0xff]
      %v2828 = vld [vmem:[%s3 + $0x3a0] sm:$0xff]
      %v2829 = vld [vmem:[%s3 + $0x3a8] sm:$0xff]
      %v2830 = vld [vmem:[%s3 + $0x3b0] sm:$0xff]
      %v2831 = vld [vmem:[%s3 + $0x3b8] sm:$0xff]
      %v2832 = vld [vmem:[%s3 + $0x3c0] sm:$0xff]
      %v2833 = vld [vmem:[%s3 + $0x3c8] sm:$0xff]
      %v2834 = vld [vmem:[%s3 + $0x3d0] sm:$0xff]
      %v2835 = vld [vmem:[%s3 + $0x3d8] sm:$0xff]
      %v2836 = vld [vmem:[%s3 + $0x3e0] sm:$0xff]
      %v2837 = vld [vmem:[%s3 + $0x3e8] sm:$0xff]
      %v2838 = vld [vmem:[%s3 + $0x3f0] sm:$0xff]
      %v2839 = vld [vmem:[%s3 + $0x3f8] sm:$0xff]
      %v2840 = vld [vmem:[%s3 + $0x400] sm:$0xff]
      %v2841 = vld [vmem:[%s3 + $0x408] sm:$0xff]
      %v2842 = vld [vmem:[%s3 + $0x410] sm:$0xff]
      %v2843 = vld [vmem:[%s3 + $0x418] sm:$0xff]
      %v2844 = vld [vmem:[%s3 + $0x420] sm:$0xff]
      %v2845 = vld [vmem:[%s3 + $0x428] sm:$0xff]
      %v2846 = vld [vmem:[%s3 + $0x430] sm:$0xff]
      %v2847 = vld [vmem:[%s3 + $0x438] sm:$0xff]
      %v2848 = vld [vmem:[%s3 + $0x440] sm:$0xff]
      %v2849 = vld [vmem:[%s3 + $0x448] sm:$0xff]
      %v2850 = vld [vmem:[%s3 + $0x450] sm:$0xff]
      %v2851 = vld [vmem:[%s3 + $0x458] sm:$0xff]
      %v2852 = vld [vmem:[%s3 + $0x460] sm:$0xff]
      %v2853 = vld [vmem:[%s3 + $0x468] sm:$0xff]
      %v2854 = vld [vmem:[%s3 + $0x470] sm:$0xff]
      %v2855 = vld [vmem:[%s3 + $0x478] sm:$0xff]
      %v2856 = vld [vmem:[%s4] sm:$0x3f]
      %v2858 = vlaneseq
      %v2859 = vshrl.u32 %v2858, 7
      %v2860 = vsub.s32 0, %v2859
      %v2861 = vrot.slane %v2856, %v2860
      %v2862 = vlaneseq
      %v2863 = vshrl.u32 %v2862, 7
      %v2864 = vsub.s32 1, %v2863
      %v2865 = vrot.slane %v2856, %v2864
      %v2866 = vlaneseq
      %v2867 = vshrl.u32 %v2866, 7
      %v2868 = vsub.s32 2, %v2867
      %v2869 = vrot.slane %v2856, %v2868
      %v2870 = vlaneseq
      %v2871 = vshrl.u32 %v2870, 7
      %v2872 = vsub.s32 3, %v2871
      %v2873 = vrot.slane %v2856, %v2872
      %v2874 = vlaneseq
      %v2875 = vshrl.u32 %v2874, 7
      %v2876 = vsub.s32 4, %v2875
      %v2877 = vrot.slane %v2856, %v2876
      %v2878 = vlaneseq
      %v2879 = vshrl.u32 %v2878, 7
      %v2880 = vsub.s32 5, %v2879
      %v2881 = vrot.slane %v2856, %v2880
      %v3032 = vunpack.c.l.b16 %v2712
      %v3033 = vunpack.c.h.b16 %v2712
      %v3034 = vunpack.c.l.b16 %v2713
      %v3035 = vunpack.c.h.b16 %v2713
      %v3036 = vunpack.c.l.b16 %v2714
      %v3037 = vunpack.c.h.b16 %v2714
      %v3038 = vunpack.c.l.b16 %v2715
      %v3039 = vunpack.c.h.b16 %v2715
      %v3040 = vunpack.c.l.b16 %v2716
      %v3041 = vunpack.c.h.b16 %v2716
      %v3042 = vunpack.c.l.b16 %v2717
      %v3043 = vunpack.c.h.b16 %v2717
      %v3044 = vunpack.c.l.b16 %v2718
      %v3045 = vunpack.c.h.b16 %v2718
      %v3046 = vunpack.c.l.b16 %v2719
      %v3047 = vunpack.c.h.b16 %v2719
      %v3048 = vunpack.c.l.b16 %v2720
      %v3049 = vunpack.c.h.b16 %v2720
      %v3050 = vunpack.c.l.b16 %v2721
      %v3051 = vunpack.c.h.b16 %v2721
      %v3052 = vunpack.c.l.b16 %v2722
      %v3053 = vunpack.c.h.b16 %v2722
      %v3054 = vunpack.c.l.b16 %v2723
      %v3055 = vunpack.c.h.b16 %v2723
      %v3056 = vunpack.c.l.b16 %v2724
      %v3057 = vunpack.c.h.b16 %v2724
      %v3058 = vunpack.c.l.b16 %v2725
      %v3059 = vunpack.c.h.b16 %v2725
      %v3060 = vunpack.c.l.b16 %v2726
      %v3061 = vunpack.c.h.b16 %v2726
      %v3062 = vunpack.c.l.b16 %v2727
      %v3063 = vunpack.c.h.b16 %v2727
      %v3064 = vunpack.c.l.b16 %v2728
      %v3065 = vunpack.c.h.b16 %v2728
      %v3066 = vunpack.c.l.b16 %v2729
      %v3067 = vunpack.c.h.b16 %v2729
      %v3068 = vunpack.c.l.b16 %v2730
      %v3069 = vunpack.c.h.b16 %v2730
      %v3070 = vunpack.c.l.b16 %v2731
      %v3071 = vunpack.c.h.b16 %v2731
      %v3072 = vunpack.c.l.b16 %v2732
      %v3073 = vunpack.c.h.b16 %v2732
      %v3074 = vunpack.c.l.b16 %v2733
      %v3075 = vunpack.c.h.b16 %v2733
      %v3076 = vunpack.c.l.b16 %v2734
      %v3077 = vunpack.c.h.b16 %v2734
      %v3078 = vunpack.c.l.b16 %v2735
      %v3079 = vunpack.c.h.b16 %v2735
      %v3080 = vunpack.c.l.b16 %v2736
      %v3081 = vunpack.c.h.b16 %v2736
      %v3082 = vunpack.c.l.b16 %v2737
      %v3083 = vunpack.c.h.b16 %v2737
      %v3084 = vunpack.c.l.b16 %v2738
      %v3085 = vunpack.c.h.b16 %v2738
      %v3086 = vunpack.c.l.b16 %v2739
      %v3087 = vunpack.c.h.b16 %v2739
      %v3088 = vunpack.c.l.b16 %v2740
      %v3089 = vunpack.c.h.b16 %v2740
      %v3090 = vunpack.c.l.b16 %v2741
      %v3091 = vunpack.c.h.b16 %v2741
      %v3092 = vunpack.c.l.b16 %v2742
      %v3093 = vunpack.c.h.b16 %v2742
      %v3094 = vunpack.c.l.b16 %v2743
      %v3095 = vunpack.c.h.b16 %v2743
      %v3096 = vunpack.c.l.b16 %v2744
      %v3097 = vunpack.c.h.b16 %v2744
      %v3098 = vunpack.c.l.b16 %v2745
      %v3099 = vunpack.c.h.b16 %v2745
      %v3100 = vunpack.c.l.b16 %v2746
      %v3101 = vunpack.c.h.b16 %v2746
      %v3102 = vunpack.c.l.b16 %v2747
      %v3103 = vunpack.c.h.b16 %v2747
      %v3104 = vunpack.c.l.b16 %v2748
      %v3105 = vunpack.c.h.b16 %v2748
      %v3106 = vunpack.c.l.b16 %v2749
      %v3107 = vunpack.c.h.b16 %v2749
      %v3108 = vunpack.c.l.b16 %v2750
      %v3109 = vunpack.c.h.b16 %v2750
      %v3110 = vunpack.c.l.b16 %v2751
      %v3111 = vunpack.c.h.b16 %v2751
      %v3112 = vunpack.c.l.b16 %v2752
      %v3113 = vunpack.c.h.b16 %v2752
      %v3114 = vunpack.c.l.b16 %v2753
      %v3115 = vunpack.c.h.b16 %v2753
      %v3116 = vunpack.c.l.b16 %v2754
      %v3117 = vunpack.c.h.b16 %v2754
      %v3118 = vunpack.c.l.b16 %v2755
      %v3119 = vunpack.c.h.b16 %v2755
      %v3120 = vunpack.c.l.b16 %v2756
      %v3121 = vunpack.c.h.b16 %v2756
      %v3122 = vunpack.c.l.b16 %v2757
      %v3123 = vunpack.c.h.b16 %v2757
      %v3124 = vunpack.c.l.b16 %v2758
      %v3125 = vunpack.c.h.b16 %v2758
      %v3126 = vunpack.c.l.b16 %v2759
      %v3127 = vunpack.c.h.b16 %v2759
      %v3128 = vunpack.c.l.b16 %v2760
      %v3129 = vunpack.c.h.b16 %v2760
      %v3130 = vunpack.c.l.b16 %v2761
      %v3131 = vunpack.c.h.b16 %v2761
      %v3132 = vunpack.c.l.b16 %v2762
      %v3133 = vunpack.c.h.b16 %v2762
      %v3134 = vunpack.c.l.b16 %v2763
      %v3135 = vunpack.c.h.b16 %v2763
      %v3136 = vunpack.c.l.b16 %v2764
      %v3137 = vunpack.c.h.b16 %v2764
      %v3138 = vunpack.c.l.b16 %v2765
      %v3139 = vunpack.c.h.b16 %v2765
      %v3140 = vunpack.c.l.b16 %v2766
      %v3141 = vunpack.c.h.b16 %v2766
      %v3142 = vunpack.c.l.b16 %v2767
      %v3143 = vunpack.c.h.b16 %v2767
      %v3144 = vunpack.c.l.b16 %v2768
      %v3145 = vunpack.c.h.b16 %v2768
      %v3146 = vunpack.c.l.b16 %v2769
      %v3147 = vunpack.c.h.b16 %v2769
      %v3148 = vunpack.c.l.b16 %v2770
      %v3149 = vunpack.c.h.b16 %v2770
      %v3150 = vunpack.c.l.b16 %v2771
      %v3151 = vunpack.c.h.b16 %v2771
      %v3152 = vunpack.c.l.b16 %v2772
      %v3153 = vunpack.c.h.b16 %v2772
      %v3154 = vunpack.c.l.b16 %v2773
      %v3155 = vunpack.c.h.b16 %v2773
      %v3156 = vunpack.c.l.b16 %v2774
      %v3157 = vunpack.c.h.b16 %v2774
      %v3158 = vunpack.c.l.b16 %v2775
      %v3159 = vunpack.c.h.b16 %v2775
      %v3160 = vunpack.c.l.b16 %v2776
      %v3161 = vunpack.c.h.b16 %v2776
      %v3162 = vunpack.c.l.b16 %v2777
      %v3163 = vunpack.c.h.b16 %v2777
      %v3164 = vunpack.c.l.b16 %v2778
      %v3165 = vunpack.c.h.b16 %v2778
      %v3166 = vunpack.c.l.b16 %v2779
      %v3167 = vunpack.c.h.b16 %v2779
      %v3168 = vunpack.c.l.b16 %v2780
      %v3169 = vunpack.c.h.b16 %v2780
      %v3170 = vunpack.c.l.b16 %v2781
      %v3171 = vunpack.c.h.b16 %v2781
      %v3172 = vunpack.c.l.b16 %v2782
      %v3173 = vunpack.c.h.b16 %v2782
      %v3174 = vunpack.c.l.b16 %v2783
      %v3175 = vunpack.c.h.b16 %v2783
      %v3176 = vunpack.c.l.b16 %v2784
      %v3177 = vunpack.c.h.b16 %v2784
      %v3178 = vunpack.c.l.b16 %v2785
      %v3179 = vunpack.c.h.b16 %v2785
      %v3180 = vunpack.c.l.b16 %v2786
      %v3181 = vunpack.c.h.b16 %v2786
      %v3182 = vunpack.c.l.b16 %v2787
      %v3183 = vunpack.c.h.b16 %v2787
      %v3184 = vunpack.c.l.b16 %v2788
      %v3185 = vunpack.c.h.b16 %v2788
      %v3186 = vunpack.c.l.b16 %v2789
      %v3187 = vunpack.c.h.b16 %v2789
      %v3188 = vunpack.c.l.b16 %v2790
      %v3189 = vunpack.c.h.b16 %v2790
      %v3190 = vunpack.c.l.b16 %v2791
      %v3191 = vunpack.c.h.b16 %v2791
      %v3192 = vunpack.c.l.b16 %v2792
      %v3193 = vunpack.c.h.b16 %v2792
      %v3194 = vunpack.c.l.b16 %v2793
      %v3195 = vunpack.c.h.b16 %v2793
      %v3196 = vunpack.c.l.b16 %v2794
      %v3197 = vunpack.c.h.b16 %v2794
      %v3198 = vunpack.c.l.b16 %v2795
      %v3199 = vunpack.c.h.b16 %v2795
      %v3200 = vunpack.c.l.b16 %v2796
      %v3201 = vunpack.c.h.b16 %v2796
      %v3202 = vunpack.c.l.b16 %v2797
      %v3203 = vunpack.c.h.b16 %v2797
      %v3204 = vunpack.c.l.b16 %v2798
      %v3205 = vunpack.c.h.b16 %v2798
      %v3206 = vunpack.c.l.b16 %v2799
      %v3207 = vunpack.c.h.b16 %v2799
      %v3208 = vunpack.c.l.b16 %v2800
      %v3209 = vunpack.c.h.b16 %v2800
      %v3210 = vunpack.c.l.b16 %v2801
      %v3211 = vunpack.c.h.b16 %v2801
      %v3212 = vunpack.c.l.b16 %v2802
      %v3213 = vunpack.c.h.b16 %v2802
      %v3214 = vunpack.c.l.b16 %v2803
      %v3215 = vunpack.c.h.b16 %v2803
      %v3216 = vunpack.c.l.b16 %v2804
      %v3217 = vunpack.c.h.b16 %v2804
      %v3218 = vunpack.c.l.b16 %v2805
      %v3219 = vunpack.c.h.b16 %v2805
      %v3220 = vunpack.c.l.b16 %v2806
      %v3221 = vunpack.c.h.b16 %v2806
      %v3222 = vunpack.c.l.b16 %v2807
      %v3223 = vunpack.c.h.b16 %v2807
      %v3224 = vunpack.c.l.b16 %v2808
      %v3225 = vunpack.c.h.b16 %v2808
      %v3226 = vunpack.c.l.b16 %v2809
      %v3227 = vunpack.c.h.b16 %v2809
      %v3228 = vunpack.c.l.b16 %v2810
      %v3229 = vunpack.c.h.b16 %v2810
      %v3230 = vunpack.c.l.b16 %v2811
      %v3231 = vunpack.c.h.b16 %v2811
      %v3232 = vunpack.c.l.b16 %v2812
      %v3233 = vunpack.c.h.b16 %v2812
      %v3234 = vunpack.c.l.b16 %v2813
      %v3235 = vunpack.c.h.b16 %v2813
      %v3236 = vunpack.c.l.b16 %v2814
      %v3237 = vunpack.c.h.b16 %v2814
      %v3238 = vunpack.c.l.b16 %v2815
      %v3239 = vunpack.c.h.b16 %v2815
      %v3240 = vunpack.c.l.b16 %v2816
      %v3241 = vunpack.c.h.b16 %v2816
      %v3242 = vunpack.c.l.b16 %v2817
      %v3243 = vunpack.c.h.b16 %v2817
      %v3244 = vunpack.c.l.b16 %v2818
      %v3245 = vunpack.c.h.b16 %v2818
      %v3246 = vunpack.c.l.b16 %v2819
      %v3247 = vunpack.c.h.b16 %v2819
      %v3248 = vunpack.c.l.b16 %v2820
      %v3249 = vunpack.c.h.b16 %v2820
      %v3250 = vunpack.c.l.b16 %v2821
      %v3251 = vunpack.c.h.b16 %v2821
      %v3252 = vunpack.c.l.b16 %v2822
      %v3253 = vunpack.c.h.b16 %v2822
      %v3254 = vunpack.c.l.b16 %v2823
      %v3255 = vunpack.c.h.b16 %v2823
      %v3256 = vunpack.c.l.b16 %v2824
      %v3257 = vunpack.c.h.b16 %v2824
      %v3258 = vunpack.c.l.b16 %v2825
      %v3259 = vunpack.c.h.b16 %v2825
      %v3260 = vunpack.c.l.b16 %v2826
      %v3261 = vunpack.c.h.b16 %v2826
      %v3262 = vunpack.c.l.b16 %v2827
      %v3263 = vunpack.c.h.b16 %v2827
      %v3264 = vunpack.c.l.b16 %v2828
      %v3265 = vunpack.c.h.b16 %v2828
      %v3266 = vunpack.c.l.b16 %v2829
      %v3267 = vunpack.c.h.b16 %v2829
      %v3268 = vunpack.c.l.b16 %v2830
      %v3269 = vunpack.c.h.b16 %v2830
      %v3270 = vunpack.c.l.b16 %v2831
      %v3271 = vunpack.c.h.b16 %v2831
      %v3272 = vunpack.c.l.b16 %v2832
      %v3273 = vunpack.c.h.b16 %v2832
      %v3274 = vunpack.c.l.b16 %v2833
      %v3275 = vunpack.c.h.b16 %v2833
      %v3276 = vunpack.c.l.b16 %v2834
      %v3277 = vunpack.c.h.b16 %v2834
      %v3278 = vunpack.c.l.b16 %v2835
      %v3279 = vunpack.c.h.b16 %v2835
      %v3280 = vunpack.c.l.b16 %v2836
      %v3281 = vunpack.c.h.b16 %v2836
      %v3282 = vunpack.c.l.b16 %v2837
      %v3283 = vunpack.c.h.b16 %v2837
      %v3284 = vunpack.c.l.b16 %v2838
      %v3285 = vunpack.c.h.b16 %v2838
      %v3286 = vunpack.c.l.b16 %v2839
      %v3287 = vunpack.c.h.b16 %v2839
      %v3288 = vunpack.c.l.b16 %v2840
      %v3289 = vunpack.c.h.b16 %v2840
      %v3290 = vunpack.c.l.b16 %v2841
      %v3291 = vunpack.c.h.b16 %v2841
      %v3292 = vunpack.c.l.b16 %v2842
      %v3293 = vunpack.c.h.b16 %v2842
      %v3294 = vunpack.c.l.b16 %v2843
      %v3295 = vunpack.c.h.b16 %v2843
      %v3296 = vunpack.c.l.b16 %v2844
      %v3297 = vunpack.c.h.b16 %v2844
      %v3298 = vunpack.c.l.b16 %v2845
      %v3299 = vunpack.c.h.b16 %v2845
      %v3300 = vunpack.c.l.b16 %v2846
      %v3301 = vunpack.c.h.b16 %v2846
      %v3302 = vunpack.c.l.b16 %v2847
      %v3303 = vunpack.c.h.b16 %v2847
      %v3304 = vunpack.c.l.b16 %v2848
      %v3305 = vunpack.c.h.b16 %v2848
      %v3306 = vunpack.c.l.b16 %v2849
      %v3307 = vunpack.c.h.b16 %v2849
      %v3308 = vunpack.c.l.b16 %v2850
      %v3309 = vunpack.c.h.b16 %v2850
      %v3310 = vunpack.c.l.b16 %v2851
      %v3311 = vunpack.c.h.b16 %v2851
      %v3312 = vunpack.c.l.b16 %v2852
      %v3313 = vunpack.c.h.b16 %v2852
      %v3314 = vunpack.c.l.b16 %v2853
      %v3315 = vunpack.c.h.b16 %v2853
      %v3316 = vunpack.c.l.b16 %v2854
      %v3317 = vunpack.c.h.b16 %v2854
      %v3318 = vunpack.c.l.b16 %v2855
      %v3319 = vunpack.c.h.b16 %v2855
      %v3320 = vpack.c.b16 %v3038, %v3032
      %v3321 = vpack.c.b16 %v3039, %v3033
      %v3322 = vpack.c.b16 %v3040, %v3034
      %v3323 = vpack.c.b16 %v3041, %v3035
      %v3324 = vpack.c.b16 %v3042, %v3036
      %v3325 = vpack.c.b16 %v3043, %v3037
      %v3326 = vpack.c.b16 %v3050, %v3044
      %v3327 = vpack.c.b16 %v3051, %v3045
      %v3328 = vpack.c.b16 %v3052, %v3046
      %v3329 = vpack.c.b16 %v3053, %v3047
      %v3330 = vpack.c.b16 %v3054, %v3048
      %v3331 = vpack.c.b16 %v3055, %v3049
      %v3332 = vpack.c.b16 %v3062, %v3056
      %v3333 = vpack.c.b16 %v3063, %v3057
      %v3334 = vpack.c.b16 %v3064, %v3058
      %v3335 = vpack.c.b16 %v3065, %v3059
      %v3336 = vpack.c.b16 %v3066, %v3060
      %v3337 = vpack.c.b16 %v3067, %v3061
      %v3338 = vpack.c.b16 %v3074, %v3068
      %v3339 = vpack.c.b16 %v3075, %v3069
      %v3340 = vpack.c.b16 %v3076, %v3070
      %v3341 = vpack.c.b16 %v3077, %v3071
      %v3342 = vpack.c.b16 %v3078, %v3072
      %v3343 = vpack.c.b16 %v3079, %v3073
      %v3344 = vpack.c.b16 %v3086, %v3080
      %v3345 = vpack.c.b16 %v3087, %v3081
      %v3346 = vpack.c.b16 %v3088, %v3082
      %v3347 = vpack.c.b16 %v3089, %v3083
      %v3348 = vpack.c.b16 %v3090, %v3084
      %v3349 = vpack.c.b16 %v3091, %v3085
      %v3350 = vpack.c.b16 %v3098, %v3092
      %v3351 = vpack.c.b16 %v3099, %v3093
      %v3352 = vpack.c.b16 %v3100, %v3094
      %v3353 = vpack.c.b16 %v3101, %v3095
      %v3354 = vpack.c.b16 %v3102, %v3096
      %v3355 = vpack.c.b16 %v3103, %v3097
      %v3356 = vpack.c.b16 %v3110, %v3104
      %v3357 = vpack.c.b16 %v3111, %v3105
      %v3358 = vpack.c.b16 %v3112, %v3106
      %v3359 = vpack.c.b16 %v3113, %v3107
      %v3360 = vpack.c.b16 %v3114, %v3108
      %v3361 = vpack.c.b16 %v3115, %v3109
      %v3362 = vpack.c.b16 %v3122, %v3116
      %v3363 = vpack.c.b16 %v3123, %v3117
      %v3364 = vpack.c.b16 %v3124, %v3118
      %v3365 = vpack.c.b16 %v3125, %v3119
      %v3366 = vpack.c.b16 %v3126, %v3120
      %v3367 = vpack.c.b16 %v3127, %v3121
      %v3368 = vpack.c.b16 %v3134, %v3128
      %v3369 = vpack.c.b16 %v3135, %v3129
      %v3370 = vpack.c.b16 %v3136, %v3130
      %v3371 = vpack.c.b16 %v3137, %v3131
      %v3372 = vpack.c.b16 %v3138, %v3132
      %v3373 = vpack.c.b16 %v3139, %v3133
      %v3374 = vpack.c.b16 %v3146, %v3140
      %v3375 = vpack.c.b16 %v3147, %v3141
      %v3376 = vpack.c.b16 %v3148, %v3142
      %v3377 = vpack.c.b16 %v3149, %v3143
      %v3378 = vpack.c.b16 %v3150, %v3144
      %v3379 = vpack.c.b16 %v3151, %v3145
      %v3380 = vpack.c.b16 %v3158, %v3152
      %v3381 = vpack.c.b16 %v3159, %v3153
      %v3382 = vpack.c.b16 %v3160, %v3154
      %v3383 = vpack.c.b16 %v3161, %v3155
      %v3384 = vpack.c.b16 %v3162, %v3156
      %v3385 = vpack.c.b16 %v3163, %v3157
      %v3386 = vpack.c.b16 %v3170, %v3164
      %v3387 = vpack.c.b16 %v3171, %v3165
      %v3388 = vpack.c.b16 %v3172, %v3166
      %v3389 = vpack.c.b16 %v3173, %v3167
      %v3390 = vpack.c.b16 %v3174, %v3168
      %v3391 = vpack.c.b16 %v3175, %v3169
      %v3392 = vpack.c.b16 %v3182, %v3176
      %v3393 = vpack.c.b16 %v3183, %v3177
      %v3394 = vpack.c.b16 %v3184, %v3178
      %v3395 = vpack.c.b16 %v3185, %v3179
      %v3396 = vpack.c.b16 %v3186, %v3180
      %v3397 = vpack.c.b16 %v3187, %v3181
      %v3398 = vpack.c.b16 %v3194, %v3188
      %v3399 = vpack.c.b16 %v3195, %v3189
      %v3400 = vpack.c.b16 %v3196, %v3190
      %v3401 = vpack.c.b16 %v3197, %v3191
      %v3402 = vpack.c.b16 %v3198, %v3192
      %v3403 = vpack.c.b16 %v3199, %v3193
      %v3404 = vpack.c.b16 %v3206, %v3200
      %v3405 = vpack.c.b16 %v3207, %v3201
      %v3406 = vpack.c.b16 %v3208, %v3202
      %v3407 = vpack.c.b16 %v3209, %v3203
      %v3408 = vpack.c.b16 %v3210, %v3204
      %v3409 = vpack.c.b16 %v3211, %v3205
      %v3410 = vpack.c.b16 %v3218, %v3212
      %v3411 = vpack.c.b16 %v3219, %v3213
      %v3412 = vpack.c.b16 %v3220, %v3214
      %v3413 = vpack.c.b16 %v3221, %v3215
      %v3414 = vpack.c.b16 %v3222, %v3216
      %v3415 = vpack.c.b16 %v3223, %v3217
      %v3416 = vpack.c.b16 %v3230, %v3224
      %v3417 = vpack.c.b16 %v3231, %v3225
      %v3418 = vpack.c.b16 %v3232, %v3226
      %v3419 = vpack.c.b16 %v3233, %v3227
      %v3420 = vpack.c.b16 %v3234, %v3228
      %v3421 = vpack.c.b16 %v3235, %v3229
      %v3422 = vpack.c.b16 %v3242, %v3236
      %v3423 = vpack.c.b16 %v3243, %v3237
      %v3424 = vpack.c.b16 %v3244, %v3238
      %v3425 = vpack.c.b16 %v3245, %v3239
      %v3426 = vpack.c.b16 %v3246, %v3240
      %v3427 = vpack.c.b16 %v3247, %v3241
      %v3428 = vpack.c.b16 %v3254, %v3248
      %v3429 = vpack.c.b16 %v3255, %v3249
      %v3430 = vpack.c.b16 %v3256, %v3250
      %v3431 = vpack.c.b16 %v3257, %v3251
      %v3432 = vpack.c.b16 %v3258, %v3252
      %v3433 = vpack.c.b16 %v3259, %v3253
      %v3434 = vpack.c.b16 %v3266, %v3260
      %v3435 = vpack.c.b16 %v3267, %v3261
      %v3436 = vpack.c.b16 %v3268, %v3262
      %v3437 = vpack.c.b16 %v3269, %v3263
      %v3438 = vpack.c.b16 %v3270, %v3264
      %v3439 = vpack.c.b16 %v3271, %v3265
      %v3440 = vpack.c.b16 %v3278, %v3272
      %v3441 = vpack.c.b16 %v3279, %v3273
      %v3442 = vpack.c.b16 %v3280, %v3274
      %v3443 = vpack.c.b16 %v3281, %v3275
      %v3444 = vpack.c.b16 %v3282, %v3276
      %v3445 = vpack.c.b16 %v3283, %v3277
      %v3446 = vpack.c.b16 %v3290, %v3284
      %v3447 = vpack.c.b16 %v3291, %v3285
      %v3448 = vpack.c.b16 %v3292, %v3286
      %v3449 = vpack.c.b16 %v3293, %v3287
      %v3450 = vpack.c.b16 %v3294, %v3288
      %v3451 = vpack.c.b16 %v3295, %v3289
      %v3452 = vpack.c.b16 %v3302, %v3296
      %v3453 = vpack.c.b16 %v3303, %v3297
      %v3454 = vpack.c.b16 %v3304, %v3298
      %v3455 = vpack.c.b16 %v3305, %v3299
      %v3456 = vpack.c.b16 %v3306, %v3300
      %v3457 = vpack.c.b16 %v3307, %v3301
      %v3458 = vpack.c.b16 %v3314, %v3308
      %v3459 = vpack.c.b16 %v3315, %v3309
      %v3460 = vpack.c.b16 %v3316, %v3310
      %v3461 = vpack.c.b16 %v3317, %v3311
      %v3462 = vpack.c.b16 %v3318, %v3312
      %v3463 = vpack.c.b16 %v3319, %v3313
      %3608 = vmatprep.subr.bf16.mxu0 %v3321
      %3609 = vmatpush1.bf16.msra.mxu0 %v3320
      %3610 = vmatprep.subr.bf16.mxu0 %v3327
      %3611 = vmatpush1.bf16.msra.mxu0 %v3326
      %3612 = vmatprep.subr.bf16.mxu0 %v3333
      %3613 = vmatpush1.bf16.msra.mxu0 %v3332
      %3614 = vmatprep.subr.bf16.mxu0 %v3339
      %3615 = vmatpush1.bf16.msra.mxu0 %v3338
      %3616 = vmatprep.subr.bf16.mxu0 %v3345
      %3617 = vmatpush1.bf16.msra.mxu0 %v3344
      %3618 = vmatprep.subr.bf16.mxu0 %v3351
      %3619 = vmatpush1.bf16.msra.mxu0 %v3350
      %3620 = vmatprep.subr.bf16.mxu0 %v3357
      %3621 = vmatpush1.bf16.msra.mxu0 %v3356
      %3622 = vmatprep.subr.bf16.mxu0 %v3363
      %3623 = vmatpush1.bf16.msra.mxu0 %v3362
      %3624 = vmatprep.subr.bf16.mxu0 %v3369
      %3625 = vmatpush1.bf16.msra.mxu0 %v3368
      %3626 = vmatprep.subr.bf16.mxu0 %v3375
      %3627 = vmatpush1.bf16.msra.mxu0 %v3374
      %3628 = vmatprep.subr.bf16.mxu0 %v3381
      %3629 = vmatpush1.bf16.msra.mxu0 %v3380
      %3630 = vmatprep.subr.bf16.mxu0 %v3387
      %3631 = vmatpush1.bf16.msra.mxu0 %v3386
      %3632 = vmatprep.subr.bf16.mxu0 %v3393
      %3633 = vmatpush1.bf16.msra.mxu0 %v3392
      %3634 = vmatprep.subr.bf16.mxu0 %v3399
      %3635 = vmatpush1.bf16.msra.mxu0 %v3398
      %3636 = vmatprep.subr.bf16.mxu0 %v3405
      %3637 = vmatpush1.bf16.msra.mxu0 %v3404
      %3638 = vmatprep.subr.bf16.mxu0 %v3411
      %3639 = vmatpush1.bf16.msra.mxu0 %v3410
      %3640 = vmatprep.mubr.bf16.mxu0 %v2701
      %3641 = vmatmul.mubr.bf16.gmra.mrb[0].mxu0 %v2700
      %v3642 = vpop.f32.mrb[0].mxu0
      %v3643 = vadd.f32 %v2861, %v3642
      %v3644 = vpop.f32.mrb[0].mxu0
      %v3645 = vadd.f32 %v2865, %v3644
      %v3646 = vpop.f32.mrb[0].mxu0
      %v3647 = vadd.f32 %v2861, %v3646
      %v3648 = vpop.f32.mrb[0].mxu0
      %v3649 = vadd.f32 %v2865, %v3648
      %3650 = vmatprep.mubr.bf16.mxu0 %v2704
      %3651 = vmatmul.mubr.bf16.gmra.mrb[0].mxu0 %v2703
      %v3652 = vpop.f32.mrb[0].mxu0
      %v3653 = vadd.f32 %v2861, %v3652
      %v3654 = vpop.f32.mrb[0].mxu0
      %v3655 = vadd.f32 %v2865, %v3654
      %v3656 = vpop.f32.mrb[0].mxu0
      %v3657 = vadd.f32 %v2861, %v3656
      %v3658 = vpop.f32.mrb[0].mxu0
      %v3659 = vadd.f32 %v2865, %v3658
      %3660 = vmatprep.mubr.bf16.mxu0 %v2707
      %3661 = vmatmul.mubr.bf16.gmra.mrb[0].mxu0 %v2706
      %v3662 = vpop.f32.mrb[0].mxu0
      %v3663 = vadd.f32 %v2861, %v3662
      %v3664 = vpop.f32.mrb[0].mxu0
      %v3665 = vadd.f32 %v2865, %v3664
      %v3666 = vpop.f32.mrb[0].mxu0
      %v3667 = vadd.f32 %v2861, %v3666
      %v3668 = vpop.f32.mrb[0].mxu0
      %v3669 = vadd.f32 %v2865, %v3668
      %3670 = vmatprep.mubr.bf16.mxu0 %v2710
      %3671 = vmatmul.mubr.bf16.gmra.mrb[0].mxu0 %v2709
      %v3672 = vpop.f32.mrb[0].mxu0
      %v3673 = vadd.f32 %v2861, %v3672
      %v3674 = vpop.f32.mrb[0].mxu0
      %v3675 = vadd.f32 %v2865, %v3674
      %v3676 = vpop.f32.mrb[0].mxu0
      %v3677 = vadd.f32 %v2861, %v3676
      %v3678 = vpop.f32.mrb[0].mxu0
      %v3679 = vadd.f32 %v2865, %v3678
      %3680 = vdwg.mxu0
      %3681 = vmatprep.subr.bf16.mxu0 %v3417
      %3682 = vmatpush1.bf16.msra.mxu0 %v3416
      %3683 = vmatprep.subr.bf16.mxu0 %v3423
      %3684 = vmatpush1.bf16.msra.mxu0 %v3422
      %3685 = vmatprep.subr.bf16.mxu0 %v3429
      %3686 = vmatpush1.bf16.msra.mxu0 %v3428
      %3687 = vmatprep.subr.bf16.mxu0 %v3435
      %3688 = vmatpush1.bf16.msra.mxu0 %v3434
      %3689 = vmatprep.subr.bf16.mxu0 %v3441
      %3690 = vmatpush1.bf16.msra.mxu0 %v3440
      %3691 = vmatprep.subr.bf16.mxu0 %v3447
      %3692 = vmatpush1.bf16.msra.mxu0 %v3446
      %3693 = vmatprep.subr.bf16.mxu0 %v3453
      %3694 = vmatpush1.bf16.msra.mxu0 %v3452
      %3695 = vmatprep.subr.bf16.mxu0 %v3459
      %3696 = vmatpush1.bf16.msra.mxu0 %v3458
      %3697 = vmatprep.subr.bf16.mxu0 0
      %3698 = vmatpush1.bf16.msra.mxu0 0
      %3699 = vmatprep.subr.bf16.mxu0 0
      %3700 = vmatpush1.bf16.msra.mxu0 0
      %3701 = vmatprep.subr.bf16.mxu0 0
      %3702 = vmatpush1.bf16.msra.mxu0 0
      %3703 = vmatprep.subr.bf16.mxu0 0
      %3704 = vmatpush1.bf16.msra.mxu0 0
      %3705 = vmatprep.subr.bf16.mxu0 0
      %3706 = vmatpush1.bf16.msra.mxu0 0
      %3707 = vmatprep.subr.bf16.mxu0 0
      %3708 = vmatpush1.bf16.msra.mxu0 0
      %3709 = vmatprep.subr.bf16.mxu0 0
      %3710 = vmatpush1.bf16.msra.mxu0 0
      %3711 = vmatprep.subr.bf16.mxu0 0
      %3712 = vmatpush1.bf16.msra.mxu0 0
      %3713 = vmatprep.mubr.bf16.mxu0 0
      %3714 = vmatmul.mubr.bf16.gmra.mrb[0].mxu0 %v2702
      %v3715 = vpop.f32.mrb[0].mxu0
      %v3716 = vadd.f32 %v3643, %v3715
      %v3717 = vpop.f32.mrb[0].mxu0
      %v3718 = vadd.f32 %v3645, %v3717
      %v3719 = vpop.f32.mrb[0].mxu0
      %v3720 = vadd.f32 %v3647, %v3719
      %v3721 = vpop.f32.mrb[0].mxu0
      %v3722 = vadd.f32 %v3649, %v3721
      %3723 = vmatprep.mubr.bf16.mxu0 0
      %3724 = vmatmul.mubr.bf16.gmra.mrb[0].mxu0 %v2705
      %v3725 = vpop.f32.mrb[0].mxu0
      %v3726 = vadd.f32 %v3653, %v3725
      %v3727 = vpop.f32.mrb[0].mxu0
      %v3728 = vadd.f32 %v3655, %v3727
      %v3729 = vpop.f32.mrb[0].mxu0
      %v3730 = vadd.f32 %v3657, %v3729
      %v3731 = vpop.f32.mrb[0].mxu0
      %v3732 = vadd.f32 %v3659, %v3731
      %3733 = vmatprep.mubr.bf16.mxu0 0
      %3734 = vmatmul.mubr.bf16.gmra.mrb[0].mxu0 %v2708
      %v3735 = vpop.f32.mrb[0].mxu0
      %v3736 = vadd.f32 %v3663, %v3735
      %v3737 = vpop.f32.mrb[0].mxu0
      %v3738 = vadd.f32 %v3665, %v3737
      %v3739 = vpop.f32.mrb[0].mxu0
      %v3740 = vadd.f32 %v3667, %v3739
      %v3741 = vpop.f32.mrb[0].mxu0
      %v3742 = vadd.f32 %v3669, %v3741
      %3743 = vmatprep.mubr.bf16.mxu0 0
      %3744 = vmatmul.mubr.bf16.gmra.mrb[0].mxu0 %v2711
      %v3745 = vpop.f32.mrb[0].mxu0
      %v3746 = vadd.f32 %v3673, %v3745
      %v3747 = vpop.f32.mrb[0].mxu0
      %v3748 = vadd.f32 %v3675, %v3747
      %v3749 = vpop.f32.mrb[0].mxu0
      %v3750 = vadd.f32 %v3677, %v3749
      %v3751 = vpop.f32.mrb[0].mxu0
      %v3752 = vadd.f32 %v3679, %v3751
      %3753 = vdwg.mxu0
      %3754 = vmatprep.subr.bf16.mxu0 %v3323
      %3755 = vmatpush1.bf16.msra.mxu0 %v3322
      %3756 = vmatprep.subr.bf16.mxu0 %v3329
      %3757 = vmatpush1.bf16.msra.mxu0 %v3328
      %3758 = vmatprep.subr.bf16.mxu0 %v3335
      %3759 = vmatpush1.bf16.msra.mxu0 %v3334
      %3760 = vmatprep.subr.bf16.mxu0 %v3341
      %3761 = vmatpush1.bf16.msra.mxu0 %v3340
      %3762 = vmatprep.subr.bf16.mxu0 %v3347
      %3763 = vmatpush1.bf16.msra.mxu0 %v3346
      %3764 = vmatprep.subr.bf16.mxu0 %v3353
      %3765 = vmatpush1.bf16.msra.mxu0 %v3352
      %3766 = vmatprep.subr.bf16.mxu0 %v3359
      %3767 = vmatpush1.bf16.msra.mxu0 %v3358
      %3768 = vmatprep.subr.bf16.mxu0 %v3365
      %3769 = vmatpush1.bf16.msra.mxu0 %v3364
      %3770 = vmatprep.subr.bf16.mxu0 %v3371
      %3771 = vmatpush1.bf16.msra.mxu0 %v3370
      %3772 = vmatprep.subr.bf16.mxu0 %v3377
      %3773 = vmatpush1.bf16.msra.mxu0 %v3376
      %3774 = vmatprep.subr.bf16.mxu0 %v3383
      %3775 = vmatpush1.bf16.msra.mxu0 %v3382
      %3776 = vmatprep.subr.bf16.mxu0 %v3389
      %3777 = vmatpush1.bf16.msra.mxu0 %v3388
      %3778 = vmatprep.subr.bf16.mxu0 %v3395
      %3779 = vmatpush1.bf16.msra.mxu0 %v3394
      %3780 = vmatprep.subr.bf16.mxu0 %v3401
      %3781 = vmatpush1.bf16.msra.mxu0 %v3400
      %3782 = vmatprep.subr.bf16.mxu0 %v3407
      %3783 = vmatpush1.bf16.msra.mxu0 %v3406
      %3784 = vmatprep.subr.bf16.mxu0 %v3413
      %3785 = vmatpush1.bf16.msra.mxu0 %v3412
      %3786 = vmatprep.mubr.bf16.mxu0 %v2701
      %3787 = vmatmul.mubr.bf16.gmra.mrb[0].mxu0 %v2700
      %v3788 = vpop.f32.mrb[0].mxu0
      %v3789 = vadd.f32 %v2869, %v3788
      %v3790 = vpop.f32.mrb[0].mxu0
      %v3791 = vadd.f32 %v2873, %v3790
      %v3792 = vpop.f32.mrb[0].mxu0
      %v3793 = vadd.f32 %v2869, %v3792
      %v3794 = vpop.f32.mrb[0].mxu0
      %v3795 = vadd.f32 %v2873, %v3794
      %3796 = vmatprep.mubr.bf16.mxu0 %v2704
      %3797 = vmatmul.mubr.bf16.gmra.mrb[0].mxu0 %v2703
      %v3798 = vpop.f32.mrb[0].mxu0
      %v3799 = vadd.f32 %v2869, %v3798
      %v3800 = vpop.f32.mrb[0].mxu0
      %v3801 = vadd.f32 %v2873, %v3800
      %v3802 = vpop.f32.mrb[0].mxu0
      %v3803 = vadd.f32 %v2869, %v3802
      %v3804 = vpop.f32.mrb[0].mxu0
      %v3805 = vadd.f32 %v2873, %v3804
      %3806 = vmatprep.mubr.bf16.mxu0 %v2707
      %3807 = vmatmul.mubr.bf16.gmra.mrb[0].mxu0 %v2706
      %v3808 = vpop.f32.mrb[0].mxu0
      %v3809 = vadd.f32 %v2869, %v3808
      %v3810 = vpop.f32.mrb[0].mxu0
      %v3811 = vadd.f32 %v2873, %v3810
      %v3812 = vpop.f32.mrb[0].mxu0
      %v3813 = vadd.f32 %v2869, %v3812
      %v3814 = vpop.f32.mrb[0].mxu0
      %v3815 = vadd.f32 %v2873, %v3814
      %3816 = vmatprep.mubr.bf16.mxu0 %v2710
      %3817 = vmatmul.mubr.bf16.gmra.mrb[0].mxu0 %v2709
      %v3818 = vpop.f32.mrb[0].mxu0
      %v3819 = vadd.f32 %v2869, %v3818
      %v3820 = vpop.f32.mrb[0].mxu0
      %v3821 = vadd.f32 %v2873, %v3820
      %v3822 = vpop.f32.mrb[0].mxu0
      %v3823 = vadd.f32 %v2869, %v3822
      %v3824 = vpop.f32.mrb[0].mxu0
      %v3825 = vadd.f32 %v2873, %v3824
      %3826 = vdwg.mxu0
      %3827 = vmatprep.subr.bf16.mxu0 %v3419
      %3828 = vmatpush1.bf16.msra.mxu0 %v3418
      %3829 = vmatprep.subr.bf16.mxu0 %v3425
      %3830 = vmatpush1.bf16.msra.mxu0 %v3424
      %3831 = vmatprep.subr.bf16.mxu0 %v3431
      %3832 = vmatpush1.bf16.msra.mxu0 %v3430
      %3833 = vmatprep.subr.bf16.mxu0 %v3437
      %3834 = vmatpush1.bf16.msra.mxu0 %v3436
      %3835 = vmatprep.subr.bf16.mxu0 %v3443
      %3836 = vmatpush1.bf16.msra.mxu0 %v3442
      %3837 = vmatprep.subr.bf16.mxu0 %v3449
      %3838 = vmatpush1.bf16.msra.mxu0 %v3448
      %3839 = vmatprep.subr.bf16.mxu0 %v3455
      %3840 = vmatpush1.bf16.msra.mxu0 %v3454
      %3841 = vmatprep.subr.bf16.mxu0 %v3461
      %3842 = vmatpush1.bf16.msra.mxu0 %v3460
      %3843 = vmatprep.subr.bf16.mxu0 0
      %3844 = vmatpush1.bf16.msra.mxu0 0
      %3845 = vmatprep.subr.bf16.mxu0 0
      %3846 = vmatpush1.bf16.msra.mxu0 0
      %3847 = vmatprep.subr.bf16.mxu0 0
      %3848 = vmatpush1.bf16.msra.mxu0 0
      %3849 = vmatprep.subr.bf16.mxu0 0
      %3850 = vmatpush1.bf16.msra.mxu0 0
      %3851 = vmatprep.subr.bf16.mxu0 0
      %3852 = vmatpush1.bf16.msra.mxu0 0
      %3853 = vmatprep.subr.bf16.mxu0 0
      %3854 = vmatpush1.bf16.msra.mxu0 0
      %3855 = vmatprep.subr.bf16.mxu0 0
      %3856 = vmatpush1.bf16.msra.mxu0 0
      %3857 = vmatprep.subr.bf16.mxu0 0
      %3858 = vmatpush1.bf16.msra.mxu0 0
      %3859 = vmatprep.mubr.bf16.mxu0 0
      %3860 = vmatmul.mubr.bf16.gmra.mrb[0].mxu0 %v2702
      %v3861 = vpop.f32.mrb[0].mxu0
      %v3862 = vadd.f32 %v3789, %v3861
      %v3863 = vpop.f32.mrb[0].mxu0
      %v3864 = vadd.f32 %v3791, %v3863
      %v3865 = vpop.f32.mrb[0].mxu0
      %v3866 = vadd.f32 %v3793, %v3865
      %v3867 = vpop.f32.mrb[0].mxu0
      %v3868 = vadd.f32 %v3795, %v3867
      %3869 = vmatprep.mubr.bf16.mxu0 0
      %3870 = vmatmul.mubr.bf16.gmra.mrb[0].mxu0 %v2705
      %v3871 = vpop.f32.mrb[0].mxu0
      %v3872 = vadd.f32 %v3799, %v3871
      %v3873 = vpop.f32.mrb[0].mxu0
      %v3874 = vadd.f32 %v3801, %v3873
      %v3875 = vpop.f32.mrb[0].mxu0
      %v3876 = vadd.f32 %v3803, %v3875
      %v3877 = vpop.f32.mrb[0].mxu0
      %v3878 = vadd.f32 %v3805, %v3877
      %3879 = vmatprep.mubr.bf16.mxu0 0
      %3880 = vmatmul.mubr.bf16.gmra.mrb[0].mxu0 %v2708
      %v3881 = vpop.f32.mrb[0].mxu0
      %v3882 = vadd.f32 %v3809, %v3881
      %v3883 = vpop.f32.mrb[0].mxu0
      %v3884 = vadd.f32 %v3811, %v3883
      %v3885 = vpop.f32.mrb[0].mxu0
      %v3886 = vadd.f32 %v3813, %v3885
      %v3887 = vpop.f32.mrb[0].mxu0
      %v3888 = vadd.f32 %v3815, %v3887
      %3889 = vmatprep.mubr.bf16.mxu0 0
      %3890 = vmatmul.mubr.bf16.gmra.mrb[0].mxu0 %v2711
      %v3891 = vpop.f32.mrb[0].mxu0
      %v3892 = vadd.f32 %v3819, %v3891
      %v3893 = vpop.f32.mrb[0].mxu0
      %v3894 = vadd.f32 %v3821, %v3893
      %v3895 = vpop.f32.mrb[0].mxu0
      %v3896 = vadd.f32 %v3823, %v3895
      %v3897 = vpop.f32.mrb[0].mxu0
      %v3898 = vadd.f32 %v3825, %v3897
      %3899 = vdwg.mxu0
      %3900 = vmatprep.subr.bf16.mxu0 %v3325
      %3901 = vmatpush1.bf16.msra.mxu0 %v3324
      %3902 = vmatprep.subr.bf16.mxu0 %v3331
      %3903 = vmatpush1.bf16.msra.mxu0 %v3330
      %3904 = vmatprep.subr.bf16.mxu0 %v3337
      %3905 = vmatpush1.bf16.msra.mxu0 %v3336
      %3906 = vmatprep.subr.bf16.mxu0 %v3343
      %3907 = vmatpush1.bf16.msra.mxu0 %v3342
      %3908 = vmatprep.subr.bf16.mxu0 %v3349
      %3909 = vmatpush1.bf16.msra.mxu0 %v3348
      %3910 = vmatprep.subr.bf16.mxu0 %v3355
      %3911 = vmatpush1.bf16.msra.mxu0 %v3354
      %3912 = vmatprep.subr.bf16.mxu0 %v3361
      %3913 = vmatpush1.bf16.msra.mxu0 %v3360
      %3914 = vmatprep.subr.bf16.mxu0 %v3367
      %3915 = vmatpush1.bf16.msra.mxu0 %v3366
      %3916 = vmatprep.subr.bf16.mxu0 %v3373
      %3917 = vmatpush1.bf16.msra.mxu0 %v3372
      %3918 = vmatprep.subr.bf16.mxu0 %v3379
      %3919 = vmatpush1.bf16.msra.mxu0 %v3378
      %3920 = vmatprep.subr.bf16.mxu0 %v3385
      %3921 = vmatpush1.bf16.msra.mxu0 %v3384
      %3922 = vmatprep.subr.bf16.mxu0 %v3391
      %3923 = vmatpush1.bf16.msra.mxu0 %v3390
      %3924 = vmatprep.subr.bf16.mxu0 %v3397
      %3925 = vmatpush1.bf16.msra.mxu0 %v3396
      %3926 = vmatprep.subr.bf16.mxu0 %v3403
      %3927 = vmatpush1.bf16.msra.mxu0 %v3402
      %3928 = vmatprep.subr.bf16.mxu0 %v3409
      %3929 = vmatpush1.bf16.msra.mxu0 %v3408
      %3930 = vmatprep.subr.bf16.mxu0 %v3415
      %3931 = vmatpush1.bf16.msra.mxu0 %v3414
      %3932 = vmatprep.mubr.bf16.mxu0 %v2701
      %3933 = vmatmul.mubr.bf16.gmra.mrb[0].mxu0 %v2700
      %v3934 = vpop.f32.mrb[0].mxu0
      %v3935 = vadd.f32 %v2877, %v3934
      %v3936 = vpop.f32.mrb[0].mxu0
      %v3937 = vadd.f32 %v2881, %v3936
      %v3938 = vpop.f32.mrb[0].mxu0
      %v3939 = vadd.f32 %v2877, %v3938
      %v3940 = vpop.f32.mrb[0].mxu0
      %v3941 = vadd.f32 %v2881, %v3940
      %3942 = vmatprep.mubr.bf16.mxu0 %v2704
      %3943 = vmatmul.mubr.bf16.gmra.mrb[0].mxu0 %v2703
      %v3944 = vpop.f32.mrb[0].mxu0
      %v3945 = vadd.f32 %v2877, %v3944
      %v3946 = vpop.f32.mrb[0].mxu0
      %v3947 = vadd.f32 %v2881, %v3946
      %v3948 = vpop.f32.mrb[0].mxu0
      %v3949 = vadd.f32 %v2877, %v3948
      %v3950 = vpop.f32.mrb[0].mxu0
      %v3951 = vadd.f32 %v2881, %v3950
      %3952 = vmatprep.mubr.bf16.mxu0 %v2707
      %3953 = vmatmul.mubr.bf16.gmra.mrb[0].mxu0 %v2706
      %v3954 = vpop.f32.mrb[0].mxu0
      %v3955 = vadd.f32 %v2877, %v3954
      %v3956 = vpop.f32.mrb[0].mxu0
      %v3957 = vadd.f32 %v2881, %v3956
      %v3958 = vpop.f32.mrb[0].mxu0
      %v3959 = vadd.f32 %v2877, %v3958
      %v3960 = vpop.f32.mrb[0].mxu0
      %v3961 = vadd.f32 %v2881, %v3960
      %3962 = vmatprep.mubr.bf16.mxu0 %v2710
      %3963 = vmatmul.mubr.bf16.gmra.mrb[0].mxu0 %v2709
      %v3964 = vpop.f32.mrb[0].mxu0
      %v3965 = vadd.f32 %v2877, %v3964
      %v3966 = vpop.f32.mrb[0].mxu0
      %v3967 = vadd.f32 %v2881, %v3966
      %v3968 = vpop.f32.mrb[0].mxu0
      %v3969 = vadd.f32 %v2877, %v3968
      %v3970 = vpop.f32.mrb[0].mxu0
      %v3971 = vadd.f32 %v2881, %v3970
      %3972 = vdwg.mxu0
      %3973 = vmatprep.subr.bf16.mxu0 %v3421
      %3974 = vmatpush1.bf16.msra.mxu0 %v3420
      %3975 = vmatprep.subr.bf16.mxu0 %v3427
      %3976 = vmatpush1.bf16.msra.mxu0 %v3426
      %3977 = vmatprep.subr.bf16.mxu0 %v3433
      %3978 = vmatpush1.bf16.msra.mxu0 %v3432
      %3979 = vmatprep.subr.bf16.mxu0 %v3439
      %3980 = vmatpush1.bf16.msra.mxu0 %v3438
      %3981 = vmatprep.subr.bf16.mxu0 %v3445
      %3982 = vmatpush1.bf16.msra.mxu0 %v3444
      %3983 = vmatprep.subr.bf16.mxu0 %v3451
      %3984 = vmatpush1.bf16.msra.mxu0 %v3450
      %3985 = vmatprep.subr.bf16.mxu0 %v3457
      %3986 = vmatpush1.bf16.msra.mxu0 %v3456
      %3987 = vmatprep.subr.bf16.mxu0 %v3463
      %3988 = vmatpush1.bf16.msra.mxu0 %v3462
      %3989 = vmatprep.subr.bf16.mxu0 0
      %3990 = vmatpush1.bf16.msra.mxu0 0
      %3991 = vmatprep.subr.bf16.mxu0 0
      %3992 = vmatpush1.bf16.msra.mxu0 0
      %3993 = vmatprep.subr.bf16.mxu0 0
      %3994 = vmatpush1.bf16.msra.mxu0 0
      %3995 = vmatprep.subr.bf16.mxu0 0
      %3996 = vmatpush1.bf16.msra.mxu0 0
      %3997 = vmatprep.subr.bf16.mxu0 0
      %3998 = vmatpush1.bf16.msra.mxu0 0
      %3999 = vmatprep.subr.bf16.mxu0 0
      %4000 = vmatpush1.bf16.msra.mxu0 0
      %4001 = vmatprep.subr.bf16.mxu0 0
      %4002 = vmatpush1.bf16.msra.mxu0 0
      %4003 = vmatprep.subr.bf16.mxu0 0
      %4004 = vmatpush1.bf16.msra.mxu0 0
      %4005 = vmatprep.mubr.bf16.mxu0 0
      %4006 = vmatmul.mubr.bf16.gmra.mrb[0].mxu0 %v2702
      %v4007 = vpop.f32.mrb[0].mxu0
      %v4008 = vadd.f32 %v3935, %v4007
      %v4009 = vpop.f32.mrb[0].mxu0
      %v4010 = vadd.f32 %v3937, %v4009
      %v4011 = vpop.f32.mrb[0].mxu0
      %v4012 = vadd.f32 %v3939, %v4011
      %v4013 = vpop.f32.mrb[0].mxu0
      %v4014 = vadd.f32 %v3941, %v4013
      %4015 = vmatprep.mubr.bf16.mxu0 0
      %4016 = vmatmul.mubr.bf16.gmra.mrb[0].mxu0 %v2705
      %v4017 = vpop.f32.mrb[0].mxu0
      %v4018 = vadd.f32 %v3945, %v4017
      %v4019 = vpop.f32.mrb[0].mxu0
      %v4020 = vadd.f32 %v3947, %v4019
      %v4021 = vpop.f32.mrb[0].mxu0
      %v4022 = vadd.f32 %v3949, %v4021
      %v4023 = vpop.f32.mrb[0].mxu0
      %v4024 = vadd.f32 %v3951, %v4023
      %4025 = vmatprep.mubr.bf16.mxu0 0
      %4026 = vmatmul.mubr.bf16.gmra.mrb[0].mxu0 %v2708
      %v4027 = vpop.f32.mrb[0].mxu0
      %v4028 = vadd.f32 %v3955, %v4027
      %v4029 = vpop.f32.mrb[0].mxu0
      %v4030 = vadd.f32 %v3957, %v4029
      %v4031 = vpop.f32.mrb[0].mxu0
      %v4032 = vadd.f32 %v3959, %v4031
      %v4033 = vpop.f32.mrb[0].mxu0
      %v4034 = vadd.f32 %v3961, %v4033
      %4035 = vmatprep.mubr.bf16.mxu0 0
      %4036 = vmatmul.mubr.bf16.gmra.mrb[0].mxu0 %v2711
      %v4037 = vpop.f32.mrb[0].mxu0
      %v4038 = vadd.f32 %v3965, %v4037
      %v4039 = vpop.f32.mrb[0].mxu0
      %v4040 = vadd.f32 %v3967, %v4039
      %v4041 = vpop.f32.mrb[0].mxu0
      %v4042 = vadd.f32 %v3969, %v4041
      %v4043 = vpop.f32.mrb[0].mxu0
      %v4044 = vadd.f32 %v3971, %v4043
      %4045 = vdwg.mxu0
      %v4046 = vpack.c.bf16 %v3720, %v3716
      %v4047 = vpack.c.bf16 %v3722, %v3718
      %v4048 = vpack.c.bf16 %v3866, %v3862
      %v4049 = vpack.c.bf16 %v3868, %v3864
      %v4050 = vpack.c.bf16 %v4012, %v4008
      %v4051 = vpack.c.bf16 %v4014, %v4010
      %v4052 = vpack.c.bf16 %v3730, %v3726
      %v4053 = vpack.c.bf16 %v3732, %v3728
      %v4054 = vpack.c.bf16 %v3876, %v3872
      %v4055 = vpack.c.bf16 %v3878, %v3874
      %v4056 = vpack.c.bf16 %v4022, %v4018
      %v4057 = vpack.c.bf16 %v4024, %v4020
      %v4058 = vpack.c.bf16 %v3740, %v3736
      %v4059 = vpack.c.bf16 %v3742, %v3738
      %v4060 = vpack.c.bf16 %v3886, %v3882
      %v4061 = vpack.c.bf16 %v3888, %v3884
      %v4062 = vpack.c.bf16 %v4032, %v4028
      %v4063 = vpack.c.bf16 %v4034, %v4030
      %v4064 = vpack.c.bf16 %v3750, %v3746
      %v4065 = vpack.c.bf16 %v3752, %v3748
      %v4066 = vpack.c.bf16 %v3896, %v3892
      %v4067 = vpack.c.bf16 %v3898, %v3894
      %v4068 = vpack.c.bf16 %v4042, %v4038
      %v4069 = vpack.c.bf16 %v4044, %v4040
      %v4094 = vunpack.c.l.b16 %v4046
      %v4095 = vunpack.c.l.b16 %v4047
      %v4096 = vunpack.c.l.b16 %v4048
      %v4097 = vunpack.c.l.b16 %v4049
      %v4098 = vunpack.c.l.b16 %v4050
      %v4099 = vunpack.c.l.b16 %v4051
      %v4100 = vunpack.c.h.b16 %v4046
      %v4101 = vunpack.c.h.b16 %v4047
      %v4102 = vunpack.c.h.b16 %v4048
      %v4103 = vunpack.c.h.b16 %v4049
      %v4104 = vunpack.c.h.b16 %v4050
      %v4105 = vunpack.c.h.b16 %v4051
      %v4106 = vunpack.c.l.b16 %v4052
      %v4107 = vunpack.c.l.b16 %v4053
      %v4108 = vunpack.c.l.b16 %v4054
      %v4109 = vunpack.c.l.b16 %v4055
      %v4110 = vunpack.c.l.b16 %v4056
      %v4111 = vunpack.c.l.b16 %v4057
      %v4112 = vunpack.c.h.b16 %v4052
      %v4113 = vunpack.c.h.b16 %v4053
      %v4114 = vunpack.c.h.b16 %v4054
      %v4115 = vunpack.c.h.b16 %v4055
      %v4116 = vunpack.c.h.b16 %v4056
      %v4117 = vunpack.c.h.b16 %v4057
      %v4118 = vunpack.c.l.b16 %v4058
      %v4119 = vunpack.c.l.b16 %v4059
      %v4120 = vunpack.c.l.b16 %v4060
      %v4121 = vunpack.c.l.b16 %v4061
      %v4122 = vunpack.c.l.b16 %v4062
      %v4123 = vunpack.c.l.b16 %v4063
      %v4124 = vunpack.c.h.b16 %v4058
      %v4125 = vunpack.c.h.b16 %v4059
      %v4126 = vunpack.c.h.b16 %v4060
      %v4127 = vunpack.c.h.b16 %v4061
      %v4128 = vunpack.c.h.b16 %v4062
      %v4129 = vunpack.c.h.b16 %v4063
      %v4130 = vunpack.c.l.b16 %v4064
      %v4131 = vunpack.c.l.b16 %v4065
      %v4132 = vunpack.c.l.b16 %v4066
      %v4133 = vunpack.c.l.b16 %v4067
      %v4134 = vunpack.c.l.b16 %v4068
      %v4135 = vunpack.c.l.b16 %v4069
      %v4136 = vunpack.c.h.b16 %v4064
      %v4137 = vunpack.c.h.b16 %v4065
      %v4138 = vunpack.c.h.b16 %v4066
      %v4139 = vunpack.c.h.b16 %v4067
      %v4140 = vunpack.c.h.b16 %v4068
      %v4141 = vunpack.c.h.b16 %v4069
      %v4142 = vpack.c.b16 %v4095, %v4094
      %v4143 = vpack.c.b16 %v4097, %v4096
      %v4144 = vpack.c.b16 %v4099, %v4098
      %v4145 = vpack.c.b16 %v4101, %v4100
      %v4146 = vpack.c.b16 %v4103, %v4102
      %v4147 = vpack.c.b16 %v4105, %v4104
      %v4148 = vpack.c.b16 %v4107, %v4106
      %v4149 = vpack.c.b16 %v4109, %v4108
      %v4150 = vpack.c.b16 %v4111, %v4110
      %v4151 = vpack.c.b16 %v4113, %v4112
      %v4152 = vpack.c.b16 %v4115, %v4114
      %v4153 = vpack.c.b16 %v4117, %v4116
      %v4154 = vpack.c.b16 %v4119, %v4118
      %v4155 = vpack.c.b16 %v4121, %v4120
      %v4156 = vpack.c.b16 %v4123, %v4122
      %v4157 = vpack.c.b16 %v4125, %v4124
      %v4158 = vpack.c.b16 %v4127, %v4126
      %v4159 = vpack.c.b16 %v4129, %v4128
      %v4160 = vpack.c.b16 %v4131, %v4130
      %v4161 = vpack.c.b16 %v4133, %v4132
      %v4162 = vpack.c.b16 %v4135, %v4134
      %v4163 = vpack.c.b16 %v4137, %v4136
      %v4164 = vpack.c.b16 %v4139, %v4138
      %v4165 = vpack.c.b16 %v4141, %v4140
      %4190 = vst [vmem:[%s408] sm:$0xff] %v4142
      %4191 = vst [vmem:[%s408 + $0x8] sm:$0xff] %v4143
      %4192 = vst [vmem:[%s408 + $0x10] sm:$0xff] %v4144
      %4193 = vst [vmem:[%s408 + $0x18] sm:$0xff] %v4145
      %4194 = vst [vmem:[%s408 + $0x20] sm:$0xff] %v4146
      %4195 = vst [vmem:[%s408 + $0x28] sm:$0xff] %v4147
      %4196 = vst [vmem:[%s408 + $0x30] sm:$0xff] %v4148
      %4197 = vst [vmem:[%s408 + $0x38] sm:$0xff] %v4149
      %4198 = vst [vmem:[%s408 + $0x40] sm:$0xff] %v4150
      %4199 = vst [vmem:[%s408 + $0x48] sm:$0xff] %v4151
      %4200 = vst [vmem:[%s408 + $0x50] sm:$0xff] %v4152
      %4201 = vst [vmem:[%s408 + $0x58] sm:$0xff] %v4153
      %4202 = vst [vmem:[%s408 + $0x60] sm:$0xff] %v4154
      %4203 = vst [vmem:[%s408 + $0x68] sm:$0xff] %v4155
      %4204 = vst [vmem:[%s408 + $0x70] sm:$0xff] %v4156
      %4205 = vst [vmem:[%s408 + $0x78] sm:$0xff] %v4157
      %4206 = vst [vmem:[%s408 + $0x80] sm:$0xff] %v4158
      %4207 = vst [vmem:[%s408 + $0x88] sm:$0xff] %v4159
      %4208 = vst [vmem:[%s408 + $0x90] sm:$0xff] %v4160
      %4209 = vst [vmem:[%s408 + $0x98] sm:$0xff] %v4161
      %4210 = vst [vmem:[%s408 + $0xa0] sm:$0xff] %v4162
      %4211 = vst [vmem:[%s408 + $0xa8] sm:$0xff] %v4163
      %4212 = vst [vmem:[%s408 + $0xb0] sm:$0xff] %v4164
      %4213 = vst [vmem:[%s408 + $0xb8] sm:$0xff] %v4165
      %s4214 = smul.u32 8, %s23
      %p4215 = scmp.lt.s32.totalorder %s4214, 15
      %s4216 = scalar_select %p4215, %s4214, 15
      %s4217 = smul.addr %s4216, 6
      %s4218 = smul.addr %s4217, 4
      %s4219 = scalar_lea.vmem %s9, %s4218
      %s4220 = smul.u32 8, %s23
      %p4221 = scmp.lt.s32.totalorder %s4220, 15
      %s4222 = scalar_select %p4221, %s4220, 15
      %s4223 = smul.addr %s4222, 3
      %s4224 = smul.addr %s4223, 4
      %s4225 = scalar_lea.vmem %s10, %s4224
      %p4226 = scmp.lt.s32.totalorder %s23, 1
      %s4227 = scalar_select %p4226, %s23, 1
      %s4228 = smul.addr %s4227, 8
      %s4229 = scalar_lea.vmem %s11, %s4228
      // Predicated region
      $region57: #{codec_forward.1} parent=55 // pred_check
        %p4230 = pneg %p235
      $region58: #{codec_forward.1} parent=55 // pred_check_branch
        %4232 = sbr.rel (%p4230) target = $region60
      $region59: #{codec_forward.1} parent=55 // pred_region
        %s4233 = smul.u32 8, %s23
      $region60: #{codec_forward.1} parent=55 // pred_fallthru
        _
      // Predicated region
      $region61: #{codec_forward.1} parent=55 // pred_check
        %p4234 = pneg %p261
      $region62: #{codec_forward.1} parent=55 // pred_check_branch
        %4236 = sbr.rel (%p4234) target = $region64
      $region63: #{codec_forward.1} parent=55 // pred_region
        %s4237 = smul.u32 8, %s23
      $region64: #{codec_forward.1} parent=55 // pred_fallthru
        _
      // Predicated region
      $region65: #{codec_forward.1} parent=55 // pred_check
        %p4238 = pneg %p287
      $region66: #{codec_forward.1} parent=55 // pred_check_branch
        %4240 = sbr.rel (%p4238) target = $region68
      $region67: #{codec_forward.1} parent=55 // pred_region
        _
      $region68: #{codec_forward.1} parent=55 // pred_fallthru
        _
    $region56: #{codec_forward.1} parent=5 // pred_fallthru
      _
    %p4241 = scmp.le.s32.totalorder 2, %s18
    // Predicated region
    $region69: #{codec_forward.1} parent=5 // pred_check
      %p4242 = pneg %p4241
    $region70: #{codec_forward.1} parent=5 // pred_check_branch
      %4244 = sbr.rel (%p4242) target = $region72
    $region71: #{codec_forward.1} parent=5 // pred_region
      %s4245 = ssub.s32 %s18, 2
      // Predicated region
      $region73: #{codec_forward.1} parent=71 // pred_check
        %p4246 = pneg %p241
      $region74: #{codec_forward.1} parent=71 // pred_check_branch
        %4248 = sbr.rel (%p4246) target = $region76
      $region75: #{codec_forward.1} parent=71 // pred_region
        %s4249 = smul.u32 8, %s24
        %p4250 = scmp.lt.s32.totalorder %s4249, 15
        %s4251 = scalar_select %p4250, %s4249, 15
        %s4252 = smul.addr %s4251, 6
        %s4253 = smul.addr %s4252, 4
        %s4254 = scalar_lea.vmem %s9, %s4253
      $region76: #{codec_forward.1} parent=71 // pred_fallthru
        _
      // Predicated region
      $region77: #{codec_forward.1} parent=71 // pred_check
        %p4255 = pneg %p267
      $region78: #{codec_forward.1} parent=71 // pred_check_branch
        %4257 = sbr.rel (%p4255) target = $region80
      $region79: #{codec_forward.1} parent=71 // pred_region
        %s4258 = smul.u32 8, %s24
        %p4259 = scmp.lt.s32.totalorder %s4258, 15
        %s4260 = scalar_select %p4259, %s4258, 15
        %s4261 = smul.addr %s4260, 3
        %s4262 = smul.addr %s4261, 4
        %s4263 = scalar_lea.vmem %s10, %s4262
      $region80: #{codec_forward.1} parent=71 // pred_fallthru
        _
      // Predicated region
      $region81: #{codec_forward.1} parent=71 // pred_check
        %p4264 = pneg %p293
      $region82: #{codec_forward.1} parent=71 // pred_check_branch
        %4266 = sbr.rel (%p4264) target = $region84
      $region83: #{codec_forward.1} parent=71 // pred_region
        %p4267 = scmp.lt.s32.totalorder %s24, 1
        %s4268 = scalar_select %p4267, %s24, 1
        %s4269 = smul.addr %s4268, 8
        %s4270 = scalar_lea.vmem %s11, %s4269
      $region84: #{codec_forward.1} parent=71 // pred_fallthru
        _
    $region72: #{codec_forward.1} parent=5 // pred_fallthru
      _
  $region6: #{codec_forward.1} parent=0 // loop_footer
    %s22 = sadd.s32 1, %s18
  $region7: #{codec_forward.1} parent=0 // loop_footer_branch
    %17 = sbr.rel target = $region3
  $region8: #{codec_forward.1} parent=0 // loop_exit
    _

</llo_original>
